<compile_context>
chip_gen: v7x
topology: tpu7x:2x2x1
jax: 0.10.0
libtpu: 0.0.40
codegen_flags: <defaults>
</compile_context>

<pallas_src>
import functools

import jax
import jax.numpy as jnp
from jax.experimental import pallas as pl
from jax.experimental.pallas import tpu as pltpu

HEAD_PAD = 128          # lane-dense padded width of the fused actor+critic head
MAX_BATCH_TILE = 128    # rows per grid step (sized for v7x's 64 MiB VMEM)


def _round_up(x, m):
    return ((x + m - 1) // m) * m


def _fused_forward_kernel(p1_ref, w1_ref, b1_ref, w2_ref, b2_ref,
                          w3_ref, b3_ref, fcw_ref, fcb_ref, hw_ref, hb_ref,
                          heads_ref, logp_ref,
                          a1_s, p2_s, a2_s,
                          *, tb, oh1, oh2, k2, c1, c2, n_act):
    """One batch tile of Network.forward (n_lstm=0, training=True)."""
    npos1 = oh1 * oh1          # conv1 output positions (64)
    npos2 = oh2 * oh2          # conv2 output positions (9)
    k1 = p1_ref.shape[-1]      # 8*8*cin

    # --- conv1 (+ReLU): ONE (npos1*tb, k1) @ (k1, 32) matmul ------------------
    p1 = p1_ref[...].reshape(npos1 * tb, k1)
    a1 = jnp.dot(p1, w1_ref[...], preferred_element_type=jnp.float32)
    a1 = jnp.maximum(a1 + b1_ref[...], 0.0)
    # rows are (pos1, b)-ordered -> leading-dim split is layout-trivial.
    a1_s[...] = a1.reshape(npos1, tb, c1).astype(a1_s.dtype)

    # --- conv2 im2col in VMEM: one lane-dense (tb, k2*k2*c1) store per pos ----
    # Patch column ordering (ki2, kj2, c1) matches w2's row ordering.
    for oi2 in range(oh2):
        for oj2 in range(oh2):
            pos2 = oi2 * oh2 + oj2
            chunks = []
            for ki2 in range(k2):
                for kj2 in range(k2):
                    p = (2 * oi2 + ki2) * oh1 + (2 * oj2 + kj2)
                    chunks.append(a1_s[p])                     # (tb, c1) bf16
            p2_s[pos2] = jnp.concatenate(chunks, axis=-1)      # (tb, 512) full store

    # --- conv2 (+ReLU): (npos2*tb, 512) @ (512, 64) ---------------------------
    a2 = jnp.dot(p2_s[...].reshape(npos2 * tb, k2 * k2 * c1), w2_ref[...],
                 preferred_element_type=jnp.float32)
    a2 = jnp.maximum(a2 + b2_ref[...], 0.0)
    a2_s[...] = a2.reshape(npos2, tb, c2).astype(a2_s.dtype)

    # --- conv3 (+ReLU): output is 1x1 -> accumulate 9 (tb,64)@(64,64) matmuls -
    a3 = jnp.zeros((tb, c2), jnp.float32)
    for pos in range(npos2):
        a3 = a3 + jnp.dot(a2_s[pos], w3_ref[pos],
                          preferred_element_type=jnp.float32)
    a3 = jnp.maximum(a3 + b3_ref[...], 0.0)

    # --- fc (+ReLU): (tb, 64) @ (64, 512) -------------------------------------
    h = jnp.dot(a3.astype(fcw_ref.dtype), fcw_ref[...],
                preferred_element_type=jnp.float32)
    h = jnp.maximum(h + fcb_ref[...], 0.0)

    # --- fused actor+critic head, lane-padded to HEAD_PAD ---------------------
    z = jnp.dot(h.astype(hw_ref.dtype), hw_ref[...],
                preferred_element_type=jnp.float32) + hb_ref[...]
    heads_ref[...] = z            # cols [0:n_act) = logits, col n_act = value

    # --- masked log-softmax over the first n_act lanes ------------------------
    # NOTE: padded lanes (>= n_act) of logp are written as 0.0; the host only
    # ever reads [:, :n_act].
    lane = jax.lax.broadcasted_iota(jnp.int32, z.shape, 1)
    valid = lane < n_act
    zm = jnp.where(valid, z, -1e30)
    m = jnp.max(zm, axis=-1, keepdims=True)
    s = zm - m
    es = jnp.where(valid, jnp.exp(s), 0.0)
    lse = jnp.log(jnp.sum(es, axis=-1, keepdims=True))
    logp_ref[...] = jnp.where(valid, s - lse, 0.0)


class NetworkPallas:
    FEATURE_DIM = 512

    def __init__(self, key, in_channels, spatial, actor_outdim=6):
        ks = jax.random.split(key, 12)

        def w_init(k, shape, scale=0.05):
            return scale * jax.random.normal(k, shape, dtype=jnp.float32)

        self.in_channels = in_channels
        self.actor_outdim = actor_outdim
        assert actor_outdim + 1 <= HEAD_PAD

        # Nature conv geometry.
        self.oh1 = (spatial - 8) // 4 + 1
        self.oh2 = (self.oh1 - 4) // 2 + 1
        oh3 = (self.oh2 - 3) // 1 + 1
        assert oh3 == 1, "fused kernel assumes the conv stack collapses to 1x1"
        fc_in = 64 * oh3 * oh3

        # Raw f32 parameters (also used by the pure-JAX reference check).
        self.conv1_w = w_init(ks[0], (32, in_channels, 8, 8))
        self.conv1_b = w_init(ks[1], (32,))
        self.conv2_w = w_init(ks[2], (64, 32, 4, 4))
        self.conv2_b = w_init(ks[3], (64,))
        self.conv3_w = w_init(ks[4], (64, 64, 3, 3))
        self.conv3_b = w_init(ks[5], (64,))
        self.fc_w = w_init(ks[6], (fc_in, self.FEATURE_DIM))
        self.fc_b = w_init(ks[7], (self.FEATURE_DIM,))
        self.actor_w = w_init(ks[8], (self.FEATURE_DIM, actor_outdim))
        self.actor_b = w_init(ks[9], (actor_outdim,))
        self.critic_w = w_init(ks[10], (self.FEATURE_DIM, 1))
        self.critic_b = w_init(ks[11], (1,))

        # Matmul-layout weights: (kh, kw, cin) patch ordering, bf16 operands,
        # f32 biases.  Actor + critic fused into one lane-padded head; the
        # zero padding of hw/hb past column actor_outdim must be preserved.
        bf16 = jnp.bfloat16
        self.w1 = self.conv1_w.transpose(2, 3, 1, 0).reshape(
            8 * 8 * in_channels, 32).astype(bf16)
        self.b1 = self.conv1_b.reshape(1, 32)
        self.w2 = self.conv2_w.transpose(2, 3, 1, 0).reshape(
            4 * 4 * 32, 64).astype(bf16)
        self.b2 = self.conv2_b.reshape(1, 64)
        self.w3 = self.conv3_w.transpose(2, 3, 1, 0).reshape(
            3 * 3, 64, 64).astype(bf16)                      # (9, 64, 64)
        self.b3 = self.conv3_b.reshape(1, 64)
        self.fcw = self.fc_w.astype(bf16)
        self.fcb = self.fc_b.reshape(1, self.FEATURE_DIM)

        hw = jnp.zeros((self.FEATURE_DIM, HEAD_PAD), jnp.float32)
        hw = hw.at[:, :actor_outdim].set(self.actor_w)
        hw = hw.at[:, actor_outdim:actor_outdim + 1].set(self.critic_w)
        self.hw = hw.astype(bf16)
        hb = jnp.zeros((1, HEAD_PAD), jnp.float32)
        hb = hb.at[0, :actor_outdim].set(self.actor_b)
        hb = hb.at[0, actor_outdim].set(self.critic_b[0])
        self.hb = hb

        self._jit_forward = jax.jit(self._forward)

    # -------- host-side input formatting (plain JAX, fused by XLA) ------------
    def _conv1_patches(self, obs, n_pad):
        """obs NCHW -> (npos1, n_pad, 8*8*cin) bf16 conv1 im2col patches,
        exactly one patch per conv1 output position (no duplication), rows
        ordered (pos1, batch) so the kernel's conv1 matmul output reshapes
        directly into a (npos1, tb, 32) position-major scratch."""
        n = obs.shape[0]
        x = jnp.transpose(obs, (0, 2, 3, 1))                        # NHWC (once)
        if n_pad > n:
            x = jnp.pad(x, ((0, n_pad - n), (0, 0), (0, 0), (0, 0)))
        cols = []
        for ki in range(8):
            for kj in range(8):
                cols.append(x[:, ki:ki + 4 * self.oh1:4,
                              kj:kj + 4 * self.oh1:4, :])
        p = jnp.stack(cols, axis=3)                   # (n_pad, oh1, oh1, 64, cin)
        p = p.reshape(n_pad, self.oh1 * self.oh1, 8 * 8 * self.in_channels)
        return jnp.transpose(p, (1, 0, 2)).astype(jnp.bfloat16)

    def _forward(self, obs):
        n = obs.shape[0]
        tb = min(MAX_BATCH_TILE, _round_up(n, 16))
        n_pad = _round_up(n, tb)
        npos1 = self.oh1 * self.oh1
        npos2 = self.oh2 * self.oh2
        k1 = 8 * 8 * self.in_channels

        p1 = self._conv1_patches(obs, n_pad)          # (npos1, n_pad, k1) bf16

        kernel = functools.partial(
            _fused_forward_kernel, tb=tb, oh1=self.oh1, oh2=self.oh2,
            k2=4, c1=32, c2=64, n_act=self.actor_outdim)

        def _const(arr):
            # weights/biases: constant block index -> stay VMEM-resident
            zeros = (0,) * arr.ndim
            return pl.BlockSpec(arr.shape, lambda i, _z=zeros: _z)

        out_spec = pl.BlockSpec((tb, HEAD_PAD), lambda i: (i, 0))

        heads, logp = pl.pallas_call(
            kernel,
            out_shape=(jax.ShapeDtypeStruct((n_pad, HEAD_PAD), jnp.float32),
                       jax.ShapeDtypeStruct((n_pad, HEAD_PAD), jnp.float32)),
            grid_spec=pltpu.PrefetchScalarGridSpec(
                num_scalar_prefetch=0,
                grid=(n_pad // tb,),
                in_specs=[pl.BlockSpec((npos1, tb, k1), lambda i: (0, i, 0)),
                          _const(self.w1), _const(self.b1),
                          _const(self.w2), _const(self.b2),
                          _const(self.w3), _const(self.b3),
                          _const(self.fcw), _const(self.fcb),
                          _const(self.hw), _const(self.hb)],
                out_specs=(out_spec, out_spec),
                scratch_shapes=[
                    pltpu.VMEM((npos1, tb, 32), jnp.bfloat16),       # conv1 out
                    pltpu.VMEM((npos2, tb, 4 * 4 * 32), jnp.bfloat16),  # conv2 im2col
                    pltpu.VMEM((npos2, tb, 64), jnp.bfloat16),       # conv2 out
                ]),
            compiler_params=pltpu.CompilerParams(
                dimension_semantics=("parallel",),
                vmem_limit_bytes=32 * 1024 * 1024),
        )(p1, self.w1, self.b1, self.w2, self.b2, self.w3, self.b3,
          self.fcw, self.fcb, self.hw, self.hb)

        logits = heads[:n, :self.actor_outdim]
        value = heads[:n, self.actor_outdim:self.actor_outdim + 1]
        log_probs = logp[:n, :self.actor_outdim]
        return log_probs, value, logits

    def forward(self, obs, lstm_states=None, masks=None, training=True):
        # n_lstm == 0 path: shared conv -> actor/critic heads. Categorical(logits)
        # is represented by its log-probabilities.
        # TODO(synk): n_lstm>0 masked LSTM unroll and inference-path dist.sample()
        # are not implemented.
        return self._jit_forward(obs)

    # -------- pure-JAX f32 reference (for validation only) --------------------
    def reference_forward(self, obs):
        def conv(x, w, b, stride):
            y = jax.lax.conv_general_dilated(
                x, w, (stride, stride), "VALID",
                dimension_numbers=("NCHW", "OIHW", "NCHW"))
            return jax.nn.relu(y + b.reshape(1, -1, 1, 1))

        x = conv(obs, self.conv1_w, self.conv1_b, 4)
        x = conv(x, self.conv2_w, self.conv2_b, 2)
        x = conv(x, self.conv3_w, self.conv3_b, 1)
        h = jax.nn.relu(x.reshape(x.shape[0], -1) @ self.fc_w + self.fc_b)
        logits = h @ self.actor_w + self.actor_b
        value = h @ self.critic_w + self.critic_b
        return jax.nn.log_softmax(logits, axis=-1), value, logits


if __name__ == "__main__":
    key = jax.random.PRNGKey(0)
    k_param, k_obs = jax.random.split(key)

    batch_size = 2          # n_steps=1 -> n_envs=2 (unused since n_lstm=0)
    in_channels = 4
    spatial = 36            # 36 -> 8x8 -> 3x3 -> 1x1 (fc_in = 64)

    net = NetworkPallas(k_param, in_channels, spatial, actor_outdim=6)

    obs = jax.random.normal(
        k_obs, (batch_size, in_channels, spatial, spatial), dtype=jnp.float32)

    log_probs, value, logits = net.forward(obs, training=True)
    jax.block_until_ready((log_probs, value, logits))

    assert logits.shape == (batch_size, 6)
    assert value.shape == (batch_size, 1)
    assert log_probs.shape == (batch_size, 6)
    assert bool(jnp.all(jnp.isfinite(log_probs)))
    # log-softmax sanity: probabilities sum to 1.
    assert bool(jnp.allclose(jnp.exp(log_probs).sum(-1), 1.0, atol=1e-3))

    # Validate against a pure-JAX f32 reference (kernel uses bf16 matmul
    # operands with f32 accumulation -> relaxed tolerance).
    ref_logp, ref_value, ref_logits = net.reference_forward(obs)
    assert bool(jnp.allclose(logits, ref_logits, atol=5e-2, rtol=5e-2))
    assert bool(jnp.allclose(value, ref_value, atol=5e-2, rtol=5e-2))
    assert bool(jnp.allclose(log_probs, ref_logp, atol=5e-2, rtol=5e-2))

    print("KERNEL_OK")
</pallas_src>

<mosaic_0001>
module attributes {stable_mosaic.version = 11 : i64} {
  func.func @_fused_forward_kernel(%arg0: i32, %arg1: memref<64x16x256xbf16, #tpu.memory_space<vmem>>, %arg2: memref<256x32xbf16, #tpu.memory_space<vmem>>, %arg3: memref<1x32xf32, #tpu.memory_space<vmem>>, %arg4: memref<512x64xbf16, #tpu.memory_space<vmem>>, %arg5: memref<1x64xf32, #tpu.memory_space<vmem>>, %arg6: memref<9x64x64xbf16, #tpu.memory_space<vmem>>, %arg7: memref<1x64xf32, #tpu.memory_space<vmem>>, %arg8: memref<64x512xbf16, #tpu.memory_space<vmem>>, %arg9: memref<1x512xf32, #tpu.memory_space<vmem>>, %arg10: memref<512x128xbf16, #tpu.memory_space<vmem>>, %arg11: memref<1x128xf32, #tpu.memory_space<vmem>>, %arg12: memref<16x128xf32, #tpu.memory_space<vmem>>, %arg13: memref<16x128xf32, #tpu.memory_space<vmem>>, %arg14: memref<64x16x32xbf16, #tpu.memory_space<vmem>>, %arg15: memref<9x16x512xbf16, #tpu.memory_space<vmem>>, %arg16: memref<9x16x64xbf16, #tpu.memory_space<vmem>>) attributes {dimension_semantics = [#tpu.dimension_semantics<parallel>], iteration_bounds = array<i64: 1>, scalar_prefetch = 0 : i64, scratch_operands = 3 : i64, tpu.core_type = #tpu.core_type<tc>, window_params = [{transform_indices = @transform_0, window_bounds = array<i64: 64, 16, 256>}, {pipeline_mode = #tpu.pipeline_mode<synchronous>, transform_indices = @transform_1, window_bounds = array<i64: 256, 32>}, {pipeline_mode = #tpu.pipeline_mode<synchronous>, transform_indices = @transform_2, window_bounds = array<i64: 1, 32>}, {pipeline_mode = #tpu.pipeline_mode<synchronous>, transform_indices = @transform_3, window_bounds = array<i64: 512, 64>}, {pipeline_mode = #tpu.pipeline_mode<synchronous>, transform_indices = @transform_4, window_bounds = array<i64: 1, 64>}, {pipeline_mode = #tpu.pipeline_mode<synchronous>, transform_indices = @transform_5, window_bounds = array<i64: 9, 64, 64>}, {pipeline_mode = #tpu.pipeline_mode<synchronous>, transform_indices = @transform_6, window_bounds = array<i64: 1, 64>}, {pipeline_mode = #tpu.pipeline_mode<synchronous>, transform_indices = @transform_7, window_bounds = array<i64: 64, 512>}, {pipeline_mode = #tpu.pipeline_mode<synchronous>, transform_indices = @transform_8, window_bounds = array<i64: 1, 512>}, {pipeline_mode = #tpu.pipeline_mode<synchronous>, transform_indices = @transform_9, window_bounds = array<i64: 512, 128>}, {pipeline_mode = #tpu.pipeline_mode<synchronous>, transform_indices = @transform_10, window_bounds = array<i64: 1, 128>}, {transform_indices = @transform_11, window_bounds = array<i64: 16, 128>}, {transform_indices = @transform_12, window_bounds = array<i64: 16, 128>}]} {
    %c0 = arith.constant 0 : index
    %c0_0 = arith.constant 0 : index
    %c0_1 = arith.constant 0 : index
    %0 = vector.load %arg1[%c0, %c0_0, %c0_1] : memref<64x16x256xbf16, #tpu.memory_space<vmem>>, vector<64x16x256xbf16>
    %1 = vector.shape_cast %0 : vector<64x16x256xbf16> to vector<1024x256xbf16>
    %c0_2 = arith.constant 0 : index
    %c0_3 = arith.constant 0 : index
    %2 = vector.load %arg2[%c0_2, %c0_3] : memref<256x32xbf16, #tpu.memory_space<vmem>>, vector<256x32xbf16>
    %cst = arith.constant dense<0.000000e+00> : vector<1024x32xf32>
    %3 = tpu.matmul %1, %2, %cst {dimension_numbers = #tpu.dot_dimension_numbers<[1], [0], [0], [1], [0, 0, 1, 1], [], []>} : vector<1024x256xbf16>, vector<256x32xbf16>, vector<1024x32xf32> -> vector<1024x32xf32>
    %c0_4 = arith.constant 0 : index
    %c0_5 = arith.constant 0 : index
    %4 = vector.load %arg3[%c0_4, %c0_5] : memref<1x32xf32, #tpu.memory_space<vmem>>, vector<1x32xf32>
    %5 = vector.broadcast %4 : vector<1x32xf32> to vector<1024x32xf32>
    %6 = arith.addf %3, %5 : vector<1024x32xf32>
    %cst_6 = arith.constant 0.000000e+00 : f32
    %7 = vector.broadcast %cst_6 : f32 to vector<1024x32xf32>
    %8 = arith.maximumf %6, %7 : vector<1024x32xf32>
    %9 = vector.shape_cast %8 : vector<1024x32xf32> to vector<64x16x32xf32>
    %10 = arith.truncf %9 : vector<64x16x32xf32> to vector<64x16x32xbf16>
    %c0_7 = arith.constant 0 : index
    %c0_8 = arith.constant 0 : index
    %c0_9 = arith.constant 0 : index
    %11 = vector.load %arg14[%c0_7, %c0_8, %c0_9] : memref<64x16x32xbf16, #tpu.memory_space<vmem>>, vector<64x16x32xbf16>
    tpu.vector_store %arg14[%c0_7, %c0_8, %c0_9], %10 {strides = array<i32>} : memref<64x16x32xbf16, #tpu.memory_space<vmem>>, vector<64x16x32xbf16>,
    %c0_10 = arith.constant 0 : index
    %c0_11 = arith.constant 0 : index
    %c0_12 = arith.constant 0 : index
    %12 = vector.load %arg14[%c0_10, %c0_11, %c0_12] : memref<64x16x32xbf16, #tpu.memory_space<vmem>>, vector<1x16x32xbf16>
    %13 = vector.shape_cast %12 : vector<1x16x32xbf16> to vector<16x32xbf16>
    %c1 = arith.constant 1 : index
    %c0_13 = arith.constant 0 : index
    %c0_14 = arith.constant 0 : index
    %14 = vector.load %arg14[%c1, %c0_13, %c0_14] : memref<64x16x32xbf16, #tpu.memory_space<vmem>>, vector<1x16x32xbf16>
    %15 = vector.shape_cast %14 : vector<1x16x32xbf16> to vector<16x32xbf16>
    %c2 = arith.constant 2 : index
    %c0_15 = arith.constant 0 : index
    %c0_16 = arith.constant 0 : index
    %16 = vector.load %arg14[%c2, %c0_15, %c0_16] : memref<64x16x32xbf16, #tpu.memory_space<vmem>>, vector<1x16x32xbf16>
    %17 = vector.shape_cast %16 : vector<1x16x32xbf16> to vector<16x32xbf16>
    %c3 = arith.constant 3 : index
    %c0_17 = arith.constant 0 : index
    %c0_18 = arith.constant 0 : index
    %18 = vector.load %arg14[%c3, %c0_17, %c0_18] : memref<64x16x32xbf16, #tpu.memory_space<vmem>>, vector<1x16x32xbf16>
    %19 = vector.shape_cast %18 : vector<1x16x32xbf16> to vector<16x32xbf16>
    %c8 = arith.constant 8 : index
    %c0_19 = arith.constant 0 : index
    %c0_20 = arith.constant 0 : index
    %20 = vector.load %arg14[%c8, %c0_19, %c0_20] : memref<64x16x32xbf16, #tpu.memory_space<vmem>>, vector<1x16x32xbf16>
    %21 = vector.shape_cast %20 : vector<1x16x32xbf16> to vector<16x32xbf16>
    %c9 = arith.constant 9 : index
    %c0_21 = arith.constant 0 : index
    %c0_22 = arith.constant 0 : index
    %22 = vector.load %arg14[%c9, %c0_21, %c0_22] : memref<64x16x32xbf16, #tpu.memory_space<vmem>>, vector<1x16x32xbf16>
    %23 = vector.shape_cast %22 : vector<1x16x32xbf16> to vector<16x32xbf16>
    %c10 = arith.constant 10 : index
    %c0_23 = arith.constant 0 : index
    %c0_24 = arith.constant 0 : index
    %24 = vector.load %arg14[%c10, %c0_23, %c0_24] : memref<64x16x32xbf16, #tpu.memory_space<vmem>>, vector<1x16x32xbf16>
    %25 = vector.shape_cast %24 : vector<1x16x32xbf16> to vector<16x32xbf16>
    %c11 = arith.constant 11 : index
    %c0_25 = arith.constant 0 : index
    %c0_26 = arith.constant 0 : index
    %26 = vector.load %arg14[%c11, %c0_25, %c0_26] : memref<64x16x32xbf16, #tpu.memory_space<vmem>>, vector<1x16x32xbf16>
    %27 = vector.shape_cast %26 : vector<1x16x32xbf16> to vector<16x32xbf16>
    %c16 = arith.constant 16 : index
    %c0_27 = arith.constant 0 : index
    %c0_28 = arith.constant 0 : index
    %28 = vector.load %arg14[%c16, %c0_27, %c0_28] : memref<64x16x32xbf16, #tpu.memory_space<vmem>>, vector<1x16x32xbf16>
    %29 = vector.shape_cast %28 : vector<1x16x32xbf16> to vector<16x32xbf16>
    %c17 = arith.constant 17 : index
    %c0_29 = arith.constant 0 : index
    %c0_30 = arith.constant 0 : index
    %30 = vector.load %arg14[%c17, %c0_29, %c0_30] : memref<64x16x32xbf16, #tpu.memory_space<vmem>>, vector<1x16x32xbf16>
    %31 = vector.shape_cast %30 : vector<1x16x32xbf16> to vector<16x32xbf16>
    %c18 = arith.constant 18 : index
    %c0_31 = arith.constant 0 : index
    %c0_32 = arith.constant 0 : index
    %32 = vector.load %arg14[%c18, %c0_31, %c0_32] : memref<64x16x32xbf16, #tpu.memory_space<vmem>>, vector<1x16x32xbf16>
    %33 = vector.shape_cast %32 : vector<1x16x32xbf16> to vector<16x32xbf16>
    %c19 = arith.constant 19 : index
    %c0_33 = arith.constant 0 : index
    %c0_34 = arith.constant 0 : index
    %34 = vector.load %arg14[%c19, %c0_33, %c0_34] : memref<64x16x32xbf16, #tpu.memory_space<vmem>>, vector<1x16x32xbf16>
    %35 = vector.shape_cast %34 : vector<1x16x32xbf16> to vector<16x32xbf16>
    %c24 = arith.constant 24 : index
    %c0_35 = arith.constant 0 : index
    %c0_36 = arith.constant 0 : index
    %36 = vector.load %arg14[%c24, %c0_35, %c0_36] : memref<64x16x32xbf16, #tpu.memory_space<vmem>>, vector<1x16x32xbf16>
    %37 = vector.shape_cast %36 : vector<1x16x32xbf16> to vector<16x32xbf16>
    %c25 = arith.constant 25 : index
    %c0_37 = arith.constant 0 : index
    %c0_38 = arith.constant 0 : index
    %38 = vector.load %arg14[%c25, %c0_37, %c0_38] : memref<64x16x32xbf16, #tpu.memory_space<vmem>>, vector<1x16x32xbf16>
    %39 = vector.shape_cast %38 : vector<1x16x32xbf16> to vector<16x32xbf16>
    %c26 = arith.constant 26 : index
    %c0_39 = arith.constant 0 : index
    %c0_40 = arith.constant 0 : index
    %40 = vector.load %arg14[%c26, %c0_39, %c0_40] : memref<64x16x32xbf16, #tpu.memory_space<vmem>>, vector<1x16x32xbf16>
    %41 = vector.shape_cast %40 : vector<1x16x32xbf16> to vector<16x32xbf16>
    %c27 = arith.constant 27 : index
    %c0_41 = arith.constant 0 : index
    %c0_42 = arith.constant 0 : index
    %42 = vector.load %arg14[%c27, %c0_41, %c0_42] : memref<64x16x32xbf16, #tpu.memory_space<vmem>>, vector<1x16x32xbf16>
    %43 = vector.shape_cast %42 : vector<1x16x32xbf16> to vector<16x32xbf16>
    %44 = tpu.concatenate %13, %15, %17, %19, %21, %23, %25, %27, %29, %31, %33, %35, %37, %39, %41, %43 in 1 : vector<16x32xbf16>, vector<16x32xbf16>, vector<16x32xbf16>, vector<16x32xbf16>, vector<16x32xbf16>, vector<16x32xbf16>, vector<16x32xbf16>, vector<16x32xbf16>, vector<16x32xbf16>, vector<16x32xbf16>, vector<16x32xbf16>, vector<16x32xbf16>, vector<16x32xbf16>, vector<16x32xbf16>, vector<16x32xbf16>, vector<16x32xbf16> -> vector<16x512xbf16>
    %c0_43 = arith.constant 0 : index
    %c0_44 = arith.constant 0 : index
    %c0_45 = arith.constant 0 : index
    %45 = vector.load %arg15[%c0_43, %c0_44, %c0_45] : memref<9x16x512xbf16, #tpu.memory_space<vmem>>, vector<1x16x512xbf16>
    %46 = vector.shape_cast %45 : vector<1x16x512xbf16> to vector<16x512xbf16>
    %47 = vector.shape_cast %44 : vector<16x512xbf16> to vector<1x16x512xbf16>
    tpu.vector_store %arg15[%c0_43, %c0_44, %c0_45], %47 {strides = array<i32>} : memref<9x16x512xbf16, #tpu.memory_space<vmem>>, vector<1x16x512xbf16>,
    %c2_46 = arith.constant 2 : index
    %c0_47 = arith.constant 0 : index
    %c0_48 = arith.constant 0 : index
    %48 = vector.load %arg14[%c2_46, %c0_47, %c0_48] : memref<64x16x32xbf16, #tpu.memory_space<vmem>>, vector<1x16x32xbf16>
    %49 = vector.shape_cast %48 : vector<1x16x32xbf16> to vector<16x32xbf16>
    %c3_49 = arith.constant 3 : index
    %c0_50 = arith.constant 0 : index
    %c0_51 = arith.constant 0 : index
    %50 = vector.load %arg14[%c3_49, %c0_50, %c0_51] : memref<64x16x32xbf16, #tpu.memory_space<vmem>>, vector<1x16x32xbf16>
    %51 = vector.shape_cast %50 : vector<1x16x32xbf16> to vector<16x32xbf16>
    %c4 = arith.constant 4 : index
    %c0_52 = arith.constant 0 : index
    %c0_53 = arith.constant 0 : index
    %52 = vector.load %arg14[%c4, %c0_52, %c0_53] : memref<64x16x32xbf16, #tpu.memory_space<vmem>>, vector<1x16x32xbf16>
    %53 = vector.shape_cast %52 : vector<1x16x32xbf16> to vector<16x32xbf16>
    %c5 = arith.constant 5 : index
    %c0_54 = arith.constant 0 : index
    %c0_55 = arith.constant 0 : index
    %54 = vector.load %arg14[%c5, %c0_54, %c0_55] : memref<64x16x32xbf16, #tpu.memory_space<vmem>>, vector<1x16x32xbf16>
    %55 = vector.shape_cast %54 : vector<1x16x32xbf16> to vector<16x32xbf16>
    %c10_56 = arith.constant 10 : index
    %c0_57 = arith.constant 0 : index
    %c0_58 = arith.constant 0 : index
    %56 = vector.load %arg14[%c10_56, %c0_57, %c0_58] : memref<64x16x32xbf16, #tpu.memory_space<vmem>>, vector<1x16x32xbf16>
    %57 = vector.shape_cast %56 : vector<1x16x32xbf16> to vector<16x32xbf16>
    %c11_59 = arith.constant 11 : index
    %c0_60 = arith.constant 0 : index
    %c0_61 = arith.constant 0 : index
    %58 = vector.load %arg14[%c11_59, %c0_60, %c0_61] : memref<64x16x32xbf16, #tpu.memory_space<vmem>>, vector<1x16x32xbf16>
    %59 = vector.shape_cast %58 : vector<1x16x32xbf16> to vector<16x32xbf16>
    %c12 = arith.constant 12 : index
    %c0_62 = arith.constant 0 : index
    %c0_63 = arith.constant 0 : index
    %60 = vector.load %arg14[%c12, %c0_62, %c0_63] : memref<64x16x32xbf16, #tpu.memory_space<vmem>>, vector<1x16x32xbf16>
    %61 = vector.shape_cast %60 : vector<1x16x32xbf16> to vector<16x32xbf16>
    %c13 = arith.constant 13 : index
    %c0_64 = arith.constant 0 : index
    %c0_65 = arith.constant 0 : index
    %62 = vector.load %arg14[%c13, %c0_64, %c0_65] : memref<64x16x32xbf16, #tpu.memory_space<vmem>>, vector<1x16x32xbf16>
    %63 = vector.shape_cast %62 : vector<1x16x32xbf16> to vector<16x32xbf16>
    %c18_66 = arith.constant 18 : index
    %c0_67 = arith.constant 0 : index
    %c0_68 = arith.constant 0 : index
    %64 = vector.load %arg14[%c18_66, %c0_67, %c0_68] : memref<64x16x32xbf16, #tpu.memory_space<vmem>>, vector<1x16x32xbf16>
    %65 = vector.shape_cast %64 : vector<1x16x32xbf16> to vector<16x32xbf16>
    %c19_69 = arith.constant 19 : index
    %c0_70 = arith.constant 0 : index
    %c0_71 = arith.constant 0 : index
    %66 = vector.load %arg14[%c19_69, %c0_70, %c0_71] : memref<64x16x32xbf16, #tpu.memory_space<vmem>>, vector<1x16x32xbf16>
    %67 = vector.shape_cast %66 : vector<1x16x32xbf16> to vector<16x32xbf16>
    %c20 = arith.constant 20 : index
    %c0_72 = arith.constant 0 : index
    %c0_73 = arith.constant 0 : index
    %68 = vector.load %arg14[%c20, %c0_72, %c0_73] : memref<64x16x32xbf16, #tpu.memory_space<vmem>>, vector<1x16x32xbf16>
    %69 = vector.shape_cast %68 : vector<1x16x32xbf16> to vector<16x32xbf16>
    %c21 = arith.constant 21 : index
    %c0_74 = arith.constant 0 : index
    %c0_75 = arith.constant 0 : index
    %70 = vector.load %arg14[%c21, %c0_74, %c0_75] : memref<64x16x32xbf16, #tpu.memory_space<vmem>>, vector<1x16x32xbf16>
    %71 = vector.shape_cast %70 : vector<1x16x32xbf16> to vector<16x32xbf16>
    %c26_76 = arith.constant 26 : index
    %c0_77 = arith.constant 0 : index
    %c0_78 = arith.constant 0 : index
    %72 = vector.load %arg14[%c26_76, %c0_77, %c0_78] : memref<64x16x32xbf16, #tpu.memory_space<vmem>>, vector<1x16x32xbf16>
    %73 = vector.shape_cast %72 : vector<1x16x32xbf16> to vector<16x32xbf16>
    %c27_79 = arith.constant 27 : index
    %c0_80 = arith.constant 0 : index
    %c0_81 = arith.constant 0 : index
    %74 = vector.load %arg14[%c27_79, %c0_80, %c0_81] : memref<64x16x32xbf16, #tpu.memory_space<vmem>>, vector<1x16x32xbf16>
    %75 = vector.shape_cast %74 : vector<1x16x32xbf16> to vector<16x32xbf16>
    %c28 = arith.constant 28 : index
    %c0_82 = arith.constant 0 : index
    %c0_83 = arith.constant 0 : index
    %76 = vector.load %arg14[%c28, %c0_82, %c0_83] : memref<64x16x32xbf16, #tpu.memory_space<vmem>>, vector<1x16x32xbf16>
    %77 = vector.shape_cast %76 : vector<1x16x32xbf16> to vector<16x32xbf16>
    %c29 = arith.constant 29 : index
    %c0_84 = arith.constant 0 : index
    %c0_85 = arith.constant 0 : index
    %78 = vector.load %arg14[%c29, %c0_84, %c0_85] : memref<64x16x32xbf16, #tpu.memory_space<vmem>>, vector<1x16x32xbf16>
    %79 = vector.shape_cast %78 : vector<1x16x32xbf16> to vector<16x32xbf16>
    %80 = tpu.concatenate %49, %51, %53, %55, %57, %59, %61, %63, %65, %67, %69, %71, %73, %75, %77, %79 in 1 : vector<16x32xbf16>, vector<16x32xbf16>, vector<16x32xbf16>, vector<16x32xbf16>, vector<16x32xbf16>, vector<16x32xbf16>, vector<16x32xbf16>, vector<16x32xbf16>, vector<16x32xbf16>, vector<16x32xbf16>, vector<16x32xbf16>, vector<16x32xbf16>, vector<16x32xbf16>, vector<16x32xbf16>, vector<16x32xbf16>, vector<16x32xbf16> -> vector<16x512xbf16>
    %c1_86 = arith.constant 1 : index
    %c0_87 = arith.constant 0 : index
    %c0_88 = arith.constant 0 : index
    %81 = vector.load %arg15[%c1_86, %c0_87, %c0_88] : memref<9x16x512xbf16, #tpu.memory_space<vmem>>, vector<1x16x512xbf16>
    %82 = vector.shape_cast %81 : vector<1x16x512xbf16> to vector<16x512xbf16>
    %83 = vector.shape_cast %80 : vector<16x512xbf16> to vector<1x16x512xbf16>
    tpu.vector_store %arg15[%c1_86, %c0_87, %c0_88], %83 {strides = array<i32>} : memref<9x16x512xbf16, #tpu.memory_space<vmem>>, vector<1x16x512xbf16>,
    %c4_89 = arith.constant 4 : index
    %c0_90 = arith.constant 0 : index
    %c0_91 = arith.constant 0 : index
    %84 = vector.load %arg14[%c4_89, %c0_90, %c0_91] : memref<64x16x32xbf16, #tpu.memory_space<vmem>>, vector<1x16x32xbf16>
    %85 = vector.shape_cast %84 : vector<1x16x32xbf16> to vector<16x32xbf16>
    %c5_92 = arith.constant 5 : index
    %c0_93 = arith.constant 0 : index
    %c0_94 = arith.constant 0 : index
    %86 = vector.load %arg14[%c5_92, %c0_93, %c0_94] : memref<64x16x32xbf16, #tpu.memory_space<vmem>>, vector<1x16x32xbf16>
    %87 = vector.shape_cast %86 : vector<1x16x32xbf16> to vector<16x32xbf16>
    %c6 = arith.constant 6 : index
    %c0_95 = arith.constant 0 : index
    %c0_96 = arith.constant 0 : index
    %88 = vector.load %arg14[%c6, %c0_95, %c0_96] : memref<64x16x32xbf16, #tpu.memory_space<vmem>>, vector<1x16x32xbf16>
    %89 = vector.shape_cast %88 : vector<1x16x32xbf16> to vector<16x32xbf16>
    %c7 = arith.constant 7 : index
    %c0_97 = arith.constant 0 : index
    %c0_98 = arith.constant 0 : index
    %90 = vector.load %arg14[%c7, %c0_97, %c0_98] : memref<64x16x32xbf16, #tpu.memory_space<vmem>>, vector<1x16x32xbf16>
    %91 = vector.shape_cast %90 : vector<1x16x32xbf16> to vector<16x32xbf16>
    %c12_99 = arith.constant 12 : index
    %c0_100 = arith.constant 0 : index
    %c0_101 = arith.constant 0 : index
    %92 = vector.load %arg14[%c12_99, %c0_100, %c0_101] : memref<64x16x32xbf16, #tpu.memory_space<vmem>>, vector<1x16x32xbf16>
    %93 = vector.shape_cast %92 : vector<1x16x32xbf16> to vector<16x32xbf16>
    %c13_102 = arith.constant 13 : index
    %c0_103 = arith.constant 0 : index
    %c0_104 = arith.constant 0 : index
    %94 = vector.load %arg14[%c13_102, %c0_103, %c0_104] : memref<64x16x32xbf16, #tpu.memory_space<vmem>>, vector<1x16x32xbf16>
    %95 = vector.shape_cast %94 : vector<1x16x32xbf16> to vector<16x32xbf16>
    %c14 = arith.constant 14 : index
    %c0_105 = arith.constant 0 : index
    %c0_106 = arith.constant 0 : index
    %96 = vector.load %arg14[%c14, %c0_105, %c0_106] : memref<64x16x32xbf16, #tpu.memory_space<vmem>>, vector<1x16x32xbf16>
    %97 = vector.shape_cast %96 : vector<1x16x32xbf16> to vector<16x32xbf16>
    %c15 = arith.constant 15 : index
    %c0_107 = arith.constant 0 : index
    %c0_108 = arith.constant 0 : index
    %98 = vector.load %arg14[%c15, %c0_107, %c0_108] : memref<64x16x32xbf16, #tpu.memory_space<vmem>>, vector<1x16x32xbf16>
    %99 = vector.shape_cast %98 : vector<1x16x32xbf16> to vector<16x32xbf16>
    %c20_109 = arith.constant 20 : index
    %c0_110 = arith.constant 0 : index
    %c0_111 = arith.constant 0 : index
    %100 = vector.load %arg14[%c20_109, %c0_110, %c0_111] : memref<64x16x32xbf16, #tpu.memory_space<vmem>>, vector<1x16x32xbf16>
    %101 = vector.shape_cast %100 : vector<1x16x32xbf16> to vector<16x32xbf16>
    %c21_112 = arith.constant 21 : index
    %c0_113 = arith.constant 0 : index
    %c0_114 = arith.constant 0 : index
    %102 = vector.load %arg14[%c21_112, %c0_113, %c0_114] : memref<64x16x32xbf16, #tpu.memory_space<vmem>>, vector<1x16x32xbf16>
    %103 = vector.shape_cast %102 : vector<1x16x32xbf16> to vector<16x32xbf16>
    %c22 = arith.constant 22 : index
    %c0_115 = arith.constant 0 : index
    %c0_116 = arith.constant 0 : index
    %104 = vector.load %arg14[%c22, %c0_115, %c0_116] : memref<64x16x32xbf16, #tpu.memory_space<vmem>>, vector<1x16x32xbf16>
    %105 = vector.shape_cast %104 : vector<1x16x32xbf16> to vector<16x32xbf16>
    %c23 = arith.constant 23 : index
    %c0_117 = arith.constant 0 : index
    %c0_118 = arith.constant 0 : index
    %106 = vector.load %arg14[%c23, %c0_117, %c0_118] : memref<64x16x32xbf16, #tpu.memory_space<vmem>>, vector<1x16x32xbf16>
    %107 = vector.shape_cast %106 : vector<1x16x32xbf16> to vector<16x32xbf16>
    %c28_119 = arith.constant 28 : index
    %c0_120 = arith.constant 0 : index
    %c0_121 = arith.constant 0 : index
    %108 = vector.load %arg14[%c28_119, %c0_120, %c0_121] : memref<64x16x32xbf16, #tpu.memory_space<vmem>>, vector<1x16x32xbf16>
    %109 = vector.shape_cast %108 : vector<1x16x32xbf16> to vector<16x32xbf16>
    %c29_122 = arith.constant 29 : index
    %c0_123 = arith.constant 0 : index
    %c0_124 = arith.constant 0 : index
    %110 = vector.load %arg14[%c29_122, %c0_123, %c0_124] : memref<64x16x32xbf16, #tpu.memory_space<vmem>>, vector<1x16x32xbf16>
    %111 = vector.shape_cast %110 : vector<1x16x32xbf16> to vector<16x32xbf16>
    %c30 = arith.constant 30 : index
    %c0_125 = arith.constant 0 : index
    %c0_126 = arith.constant 0 : index
    %112 = vector.load %arg14[%c30, %c0_125, %c0_126] : memref<64x16x32xbf16, #tpu.memory_space<vmem>>, vector<1x16x32xbf16>
    %113 = vector.shape_cast %112 : vector<1x16x32xbf16> to vector<16x32xbf16>
    %c31 = arith.constant 31 : index
    %c0_127 = arith.constant 0 : index
    %c0_128 = arith.constant 0 : index
    %114 = vector.load %arg14[%c31, %c0_127, %c0_128] : memref<64x16x32xbf16, #tpu.memory_space<vmem>>, vector<1x16x32xbf16>
    %115 = vector.shape_cast %114 : vector<1x16x32xbf16> to vector<16x32xbf16>
    %116 = tpu.concatenate %85, %87, %89, %91, %93, %95, %97, %99, %101, %103, %105, %107, %109, %111, %113, %115 in 1 : vector<16x32xbf16>, vector<16x32xbf16>, vector<16x32xbf16>, vector<16x32xbf16>, vector<16x32xbf16>, vector<16x32xbf16>, vector<16x32xbf16>, vector<16x32xbf16>, vector<16x32xbf16>, vector<16x32xbf16>, vector<16x32xbf16>, vector<16x32xbf16>, vector<16x32xbf16>, vector<16x32xbf16>, vector<16x32xbf16>, vector<16x32xbf16> -> vector<16x512xbf16>
    %c2_129 = arith.constant 2 : index
    %c0_130 = arith.constant 0 : index
    %c0_131 = arith.constant 0 : index
    %117 = vector.load %arg15[%c2_129, %c0_130, %c0_131] : memref<9x16x512xbf16, #tpu.memory_space<vmem>>, vector<1x16x512xbf16>
    %118 = vector.shape_cast %117 : vector<1x16x512xbf16> to vector<16x512xbf16>
    %119 = vector.shape_cast %116 : vector<16x512xbf16> to vector<1x16x512xbf16>
    tpu.vector_store %arg15[%c2_129, %c0_130, %c0_131], %119 {strides = array<i32>} : memref<9x16x512xbf16, #tpu.memory_space<vmem>>, vector<1x16x512xbf16>,
    %c16_132 = arith.constant 16 : index
    %c0_133 = arith.constant 0 : index
    %c0_134 = arith.constant 0 : index
    %120 = vector.load %arg14[%c16_132, %c0_133, %c0_134] : memref<64x16x32xbf16, #tpu.memory_space<vmem>>, vector<1x16x32xbf16>
    %121 = vector.shape_cast %120 : vector<1x16x32xbf16> to vector<16x32xbf16>
    %c17_135 = arith.constant 17 : index
    %c0_136 = arith.constant 0 : index
    %c0_137 = arith.constant 0 : index
    %122 = vector.load %arg14[%c17_135, %c0_136, %c0_137] : memref<64x16x32xbf16, #tpu.memory_space<vmem>>, vector<1x16x32xbf16>
    %123 = vector.shape_cast %122 : vector<1x16x32xbf16> to vector<16x32xbf16>
    %c18_138 = arith.constant 18 : index
    %c0_139 = arith.constant 0 : index
    %c0_140 = arith.constant 0 : index
    %124 = vector.load %arg14[%c18_138, %c0_139, %c0_140] : memref<64x16x32xbf16, #tpu.memory_space<vmem>>, vector<1x16x32xbf16>
    %125 = vector.shape_cast %124 : vector<1x16x32xbf16> to vector<16x32xbf16>
    %c19_141 = arith.constant 19 : index
    %c0_142 = arith.constant 0 : index
    %c0_143 = arith.constant 0 : index
    %126 = vector.load %arg14[%c19_141, %c0_142, %c0_143] : memref<64x16x32xbf16, #tpu.memory_space<vmem>>, vector<1x16x32xbf16>
    %127 = vector.shape_cast %126 : vector<1x16x32xbf16> to vector<16x32xbf16>
    %c24_144 = arith.constant 24 : index
    %c0_145 = arith.constant 0 : index
    %c0_146 = arith.constant 0 : index
    %128 = vector.load %arg14[%c24_144, %c0_145, %c0_146] : memref<64x16x32xbf16, #tpu.memory_space<vmem>>, vector<1x16x32xbf16>
    %129 = vector.shape_cast %128 : vector<1x16x32xbf16> to vector<16x32xbf16>
    %c25_147 = arith.constant 25 : index
    %c0_148 = arith.constant 0 : index
    %c0_149 = arith.constant 0 : index
    %130 = vector.load %arg14[%c25_147, %c0_148, %c0_149] : memref<64x16x32xbf16, #tpu.memory_space<vmem>>, vector<1x16x32xbf16>
    %131 = vector.shape_cast %130 : vector<1x16x32xbf16> to vector<16x32xbf16>
    %c26_150 = arith.constant 26 : index
    %c0_151 = arith.constant 0 : index
    %c0_152 = arith.constant 0 : index
    %132 = vector.load %arg14[%c26_150, %c0_151, %c0_152] : memref<64x16x32xbf16, #tpu.memory_space<vmem>>, vector<1x16x32xbf16>
    %133 = vector.shape_cast %132 : vector<1x16x32xbf16> to vector<16x32xbf16>
    %c27_153 = arith.constant 27 : index
    %c0_154 = arith.constant 0 : index
    %c0_155 = arith.constant 0 : index
    %134 = vector.load %arg14[%c27_153, %c0_154, %c0_155] : memref<64x16x32xbf16, #tpu.memory_space<vmem>>, vector<1x16x32xbf16>
    %135 = vector.shape_cast %134 : vector<1x16x32xbf16> to vector<16x32xbf16>
    %c32 = arith.constant 32 : index
    %c0_156 = arith.constant 0 : index
    %c0_157 = arith.constant 0 : index
    %136 = vector.load %arg14[%c32, %c0_156, %c0_157] : memref<64x16x32xbf16, #tpu.memory_space<vmem>>, vector<1x16x32xbf16>
    %137 = vector.shape_cast %136 : vector<1x16x32xbf16> to vector<16x32xbf16>
    %c33 = arith.constant 33 : index
    %c0_158 = arith.constant 0 : index
    %c0_159 = arith.constant 0 : index
    %138 = vector.load %arg14[%c33, %c0_158, %c0_159] : memref<64x16x32xbf16, #tpu.memory_space<vmem>>, vector<1x16x32xbf16>
    %139 = vector.shape_cast %138 : vector<1x16x32xbf16> to vector<16x32xbf16>
    %c34 = arith.constant 34 : index
    %c0_160 = arith.constant 0 : index
    %c0_161 = arith.constant 0 : index
    %140 = vector.load %arg14[%c34, %c0_160, %c0_161] : memref<64x16x32xbf16, #tpu.memory_space<vmem>>, vector<1x16x32xbf16>
    %141 = vector.shape_cast %140 : vector<1x16x32xbf16> to vector<16x32xbf16>
    %c35 = arith.constant 35 : index
    %c0_162 = arith.constant 0 : index
    %c0_163 = arith.constant 0 : index
    %142 = vector.load %arg14[%c35, %c0_162, %c0_163] : memref<64x16x32xbf16, #tpu.memory_space<vmem>>, vector<1x16x32xbf16>
    %143 = vector.shape_cast %142 : vector<1x16x32xbf16> to vector<16x32xbf16>
    %c40 = arith.constant 40 : index
    %c0_164 = arith.constant 0 : index
    %c0_165 = arith.constant 0 : index
    %144 = vector.load %arg14[%c40, %c0_164, %c0_165] : memref<64x16x32xbf16, #tpu.memory_space<vmem>>, vector<1x16x32xbf16>
    %145 = vector.shape_cast %144 : vector<1x16x32xbf16> to vector<16x32xbf16>
    %c41 = arith.constant 41 : index
    %c0_166 = arith.constant 0 : index
    %c0_167 = arith.constant 0 : index
    %146 = vector.load %arg14[%c41, %c0_166, %c0_167] : memref<64x16x32xbf16, #tpu.memory_space<vmem>>, vector<1x16x32xbf16>
    %147 = vector.shape_cast %146 : vector<1x16x32xbf16> to vector<16x32xbf16>
    %c42 = arith.constant 42 : index
    %c0_168 = arith.constant 0 : index
    %c0_169 = arith.constant 0 : index
    %148 = vector.load %arg14[%c42, %c0_168, %c0_169] : memref<64x16x32xbf16, #tpu.memory_space<vmem>>, vector<1x16x32xbf16>
    %149 = vector.shape_cast %148 : vector<1x16x32xbf16> to vector<16x32xbf16>
    %c43 = arith.constant 43 : index
    %c0_170 = arith.constant 0 : index
    %c0_171 = arith.constant 0 : index
    %150 = vector.load %arg14[%c43, %c0_170, %c0_171] : memref<64x16x32xbf16, #tpu.memory_space<vmem>>, vector<1x16x32xbf16>
    %151 = vector.shape_cast %150 : vector<1x16x32xbf16> to vector<16x32xbf16>
    %152 = tpu.concatenate %121, %123, %125, %127, %129, %131, %133, %135, %137, %139, %141, %143, %145, %147, %149, %151 in 1 : vector<16x32xbf16>, vector<16x32xbf16>, vector<16x32xbf16>, vector<16x32xbf16>, vector<16x32xbf16>, vector<16x32xbf16>, vector<16x32xbf16>, vector<16x32xbf16>, vector<16x32xbf16>, vector<16x32xbf16>, vector<16x32xbf16>, vector<16x32xbf16>, vector<16x32xbf16>, vector<16x32xbf16>, vector<16x32xbf16>, vector<16x32xbf16> -> vector<16x512xbf16>
    %c3_172 = arith.constant 3 : index
    %c0_173 = arith.constant 0 : index
    %c0_174 = arith.constant 0 : index
    %153 = vector.load %arg15[%c3_172, %c0_173, %c0_174] : memref<9x16x512xbf16, #tpu.memory_space<vmem>>, vector<1x16x512xbf16>
    %154 = vector.shape_cast %153 : vector<1x16x512xbf16> to vector<16x512xbf16>
    %155 = vector.shape_cast %152 : vector<16x512xbf16> to vector<1x16x512xbf16>
    tpu.vector_store %arg15[%c3_172, %c0_173, %c0_174], %155 {strides = array<i32>} : memref<9x16x512xbf16, #tpu.memory_space<vmem>>, vector<1x16x512xbf16>,
    %c18_175 = arith.constant 18 : index
    %c0_176 = arith.constant 0 : index
    %c0_177 = arith.constant 0 : index
    %156 = vector.load %arg14[%c18_175, %c0_176, %c0_177] : memref<64x16x32xbf16, #tpu.memory_space<vmem>>, vector<1x16x32xbf16>
    %157 = vector.shape_cast %156 : vector<1x16x32xbf16> to vector<16x32xbf16>
    %c19_178 = arith.constant 19 : index
    %c0_179 = arith.constant 0 : index
    %c0_180 = arith.constant 0 : index
    %158 = vector.load %arg14[%c19_178, %c0_179, %c0_180] : memref<64x16x32xbf16, #tpu.memory_space<vmem>>, vector<1x16x32xbf16>
    %159 = vector.shape_cast %158 : vector<1x16x32xbf16> to vector<16x32xbf16>
    %c20_181 = arith.constant 20 : index
    %c0_182 = arith.constant 0 : index
    %c0_183 = arith.constant 0 : index
    %160 = vector.load %arg14[%c20_181, %c0_182, %c0_183] : memref<64x16x32xbf16, #tpu.memory_space<vmem>>, vector<1x16x32xbf16>
    %161 = vector.shape_cast %160 : vector<1x16x32xbf16> to vector<16x32xbf16>
    %c21_184 = arith.constant 21 : index
    %c0_185 = arith.constant 0 : index
    %c0_186 = arith.constant 0 : index
    %162 = vector.load %arg14[%c21_184, %c0_185, %c0_186] : memref<64x16x32xbf16, #tpu.memory_space<vmem>>, vector<1x16x32xbf16>
    %163 = vector.shape_cast %162 : vector<1x16x32xbf16> to vector<16x32xbf16>
    %c26_187 = arith.constant 26 : index
    %c0_188 = arith.constant 0 : index
    %c0_189 = arith.constant 0 : index
    %164 = vector.load %arg14[%c26_187, %c0_188, %c0_189] : memref<64x16x32xbf16, #tpu.memory_space<vmem>>, vector<1x16x32xbf16>
    %165 = vector.shape_cast %164 : vector<1x16x32xbf16> to vector<16x32xbf16>
    %c27_190 = arith.constant 27 : index
    %c0_191 = arith.constant 0 : index
    %c0_192 = arith.constant 0 : index
    %166 = vector.load %arg14[%c27_190, %c0_191, %c0_192] : memref<64x16x32xbf16, #tpu.memory_space<vmem>>, vector<1x16x32xbf16>
    %167 = vector.shape_cast %166 : vector<1x16x32xbf16> to vector<16x32xbf16>
    %c28_193 = arith.constant 28 : index
    %c0_194 = arith.constant 0 : index
    %c0_195 = arith.constant 0 : index
    %168 = vector.load %arg14[%c28_193, %c0_194, %c0_195] : memref<64x16x32xbf16, #tpu.memory_space<vmem>>, vector<1x16x32xbf16>
    %169 = vector.shape_cast %168 : vector<1x16x32xbf16> to vector<16x32xbf16>
    %c29_196 = arith.constant 29 : index
    %c0_197 = arith.constant 0 : index
    %c0_198 = arith.constant 0 : index
    %170 = vector.load %arg14[%c29_196, %c0_197, %c0_198] : memref<64x16x32xbf16, #tpu.memory_space<vmem>>, vector<1x16x32xbf16>
    %171 = vector.shape_cast %170 : vector<1x16x32xbf16> to vector<16x32xbf16>
    %c34_199 = arith.constant 34 : index
    %c0_200 = arith.constant 0 : index
    %c0_201 = arith.constant 0 : index
    %172 = vector.load %arg14[%c34_199, %c0_200, %c0_201] : memref<64x16x32xbf16, #tpu.memory_space<vmem>>, vector<1x16x32xbf16>
    %173 = vector.shape_cast %172 : vector<1x16x32xbf16> to vector<16x32xbf16>
    %c35_202 = arith.constant 35 : index
    %c0_203 = arith.constant 0 : index
    %c0_204 = arith.constant 0 : index
    %174 = vector.load %arg14[%c35_202, %c0_203, %c0_204] : memref<64x16x32xbf16, #tpu.memory_space<vmem>>, vector<1x16x32xbf16>
    %175 = vector.shape_cast %174 : vector<1x16x32xbf16> to vector<16x32xbf16>
    %c36 = arith.constant 36 : index
    %c0_205 = arith.constant 0 : index
    %c0_206 = arith.constant 0 : index
    %176 = vector.load %arg14[%c36, %c0_205, %c0_206] : memref<64x16x32xbf16, #tpu.memory_space<vmem>>, vector<1x16x32xbf16>
    %177 = vector.shape_cast %176 : vector<1x16x32xbf16> to vector<16x32xbf16>
    %c37 = arith.constant 37 : index
    %c0_207 = arith.constant 0 : index
    %c0_208 = arith.constant 0 : index
    %178 = vector.load %arg14[%c37, %c0_207, %c0_208] : memref<64x16x32xbf16, #tpu.memory_space<vmem>>, vector<1x16x32xbf16>
    %179 = vector.shape_cast %178 : vector<1x16x32xbf16> to vector<16x32xbf16>
    %c42_209 = arith.constant 42 : index
    %c0_210 = arith.constant 0 : index
    %c0_211 = arith.constant 0 : index
    %180 = vector.load %arg14[%c42_209, %c0_210, %c0_211] : memref<64x16x32xbf16, #tpu.memory_space<vmem>>, vector<1x16x32xbf16>
    %181 = vector.shape_cast %180 : vector<1x16x32xbf16> to vector<16x32xbf16>
    %c43_212 = arith.constant 43 : index
    %c0_213 = arith.constant 0 : index
    %c0_214 = arith.constant 0 : index
    %182 = vector.load %arg14[%c43_212, %c0_213, %c0_214] : memref<64x16x32xbf16, #tpu.memory_space<vmem>>, vector<1x16x32xbf16>
    %183 = vector.shape_cast %182 : vector<1x16x32xbf16> to vector<16x32xbf16>
    %c44 = arith.constant 44 : index
    %c0_215 = arith.constant 0 : index
    %c0_216 = arith.constant 0 : index
    %184 = vector.load %arg14[%c44, %c0_215, %c0_216] : memref<64x16x32xbf16, #tpu.memory_space<vmem>>, vector<1x16x32xbf16>
    %185 = vector.shape_cast %184 : vector<1x16x32xbf16> to vector<16x32xbf16>
    %c45 = arith.constant 45 : index
    %c0_217 = arith.constant 0 : index
    %c0_218 = arith.constant 0 : index
    %186 = vector.load %arg14[%c45, %c0_217, %c0_218] : memref<64x16x32xbf16, #tpu.memory_space<vmem>>, vector<1x16x32xbf16>
    %187 = vector.shape_cast %186 : vector<1x16x32xbf16> to vector<16x32xbf16>
    %188 = tpu.concatenate %157, %159, %161, %163, %165, %167, %169, %171, %173, %175, %177, %179, %181, %183, %185, %187 in 1 : vector<16x32xbf16>, vector<16x32xbf16>, vector<16x32xbf16>, vector<16x32xbf16>, vector<16x32xbf16>, vector<16x32xbf16>, vector<16x32xbf16>, vector<16x32xbf16>, vector<16x32xbf16>, vector<16x32xbf16>, vector<16x32xbf16>, vector<16x32xbf16>, vector<16x32xbf16>, vector<16x32xbf16>, vector<16x32xbf16>, vector<16x32xbf16> -> vector<16x512xbf16>
    %c4_219 = arith.constant 4 : index
    %c0_220 = arith.constant 0 : index
    %c0_221 = arith.constant 0 : index
    %189 = vector.load %arg15[%c4_219, %c0_220, %c0_221] : memref<9x16x512xbf16, #tpu.memory_space<vmem>>, vector<1x16x512xbf16>
    %190 = vector.shape_cast %189 : vector<1x16x512xbf16> to vector<16x512xbf16>
    %191 = vector.shape_cast %188 : vector<16x512xbf16> to vector<1x16x512xbf16>
    tpu.vector_store %arg15[%c4_219, %c0_220, %c0_221], %191 {strides = array<i32>} : memref<9x16x512xbf16, #tpu.memory_space<vmem>>, vector<1x16x512xbf16>,
    %c20_222 = arith.constant 20 : index
    %c0_223 = arith.constant 0 : index
    %c0_224 = arith.constant 0 : index
    %192 = vector.load %arg14[%c20_222, %c0_223, %c0_224] : memref<64x16x32xbf16, #tpu.memory_space<vmem>>, vector<1x16x32xbf16>
    %193 = vector.shape_cast %192 : vector<1x16x32xbf16> to vector<16x32xbf16>
    %c21_225 = arith.constant 21 : index
    %c0_226 = arith.constant 0 : index
    %c0_227 = arith.constant 0 : index
    %194 = vector.load %arg14[%c21_225, %c0_226, %c0_227] : memref<64x16x32xbf16, #tpu.memory_space<vmem>>, vector<1x16x32xbf16>
    %195 = vector.shape_cast %194 : vector<1x16x32xbf16> to vector<16x32xbf16>
    %c22_228 = arith.constant 22 : index
    %c0_229 = arith.constant 0 : index
    %c0_230 = arith.constant 0 : index
    %196 = vector.load %arg14[%c22_228, %c0_229, %c0_230] : memref<64x16x32xbf16, #tpu.memory_space<vmem>>, vector<1x16x32xbf16>
    %197 = vector.shape_cast %196 : vector<1x16x32xbf16> to vector<16x32xbf16>
    %c23_231 = arith.constant 23 : index
    %c0_232 = arith.constant 0 : index
    %c0_233 = arith.constant 0 : index
    %198 = vector.load %arg14[%c23_231, %c0_232, %c0_233] : memref<64x16x32xbf16, #tpu.memory_space<vmem>>, vector<1x16x32xbf16>
    %199 = vector.shape_cast %198 : vector<1x16x32xbf16> to vector<16x32xbf16>
    %c28_234 = arith.constant 28 : index
    %c0_235 = arith.constant 0 : index
    %c0_236 = arith.constant 0 : index
    %200 = vector.load %arg14[%c28_234, %c0_235, %c0_236] : memref<64x16x32xbf16, #tpu.memory_space<vmem>>, vector<1x16x32xbf16>
    %201 = vector.shape_cast %200 : vector<1x16x32xbf16> to vector<16x32xbf16>
    %c29_237 = arith.constant 29 : index
    %c0_238 = arith.constant 0 : index
    %c0_239 = arith.constant 0 : index
    %202 = vector.load %arg14[%c29_237, %c0_238, %c0_239] : memref<64x16x32xbf16, #tpu.memory_space<vmem>>, vector<1x16x32xbf16>
    %203 = vector.shape_cast %202 : vector<1x16x32xbf16> to vector<16x32xbf16>
    %c30_240 = arith.constant 30 : index
    %c0_241 = arith.constant 0 : index
    %c0_242 = arith.constant 0 : index
    %204 = vector.load %arg14[%c30_240, %c0_241, %c0_242] : memref<64x16x32xbf16, #tpu.memory_space<vmem>>, vector<1x16x32xbf16>
    %205 = vector.shape_cast %204 : vector<1x16x32xbf16> to vector<16x32xbf16>
    %c31_243 = arith.constant 31 : index
    %c0_244 = arith.constant 0 : index
    %c0_245 = arith.constant 0 : index
    %206 = vector.load %arg14[%c31_243, %c0_244, %c0_245] : memref<64x16x32xbf16, #tpu.memory_space<vmem>>, vector<1x16x32xbf16>
    %207 = vector.shape_cast %206 : vector<1x16x32xbf16> to vector<16x32xbf16>
    %c36_246 = arith.constant 36 : index
    %c0_247 = arith.constant 0 : index
    %c0_248 = arith.constant 0 : index
    %208 = vector.load %arg14[%c36_246, %c0_247, %c0_248] : memref<64x16x32xbf16, #tpu.memory_space<vmem>>, vector<1x16x32xbf16>
    %209 = vector.shape_cast %208 : vector<1x16x32xbf16> to vector<16x32xbf16>
    %c37_249 = arith.constant 37 : index
    %c0_250 = arith.constant 0 : index
    %c0_251 = arith.constant 0 : index
    %210 = vector.load %arg14[%c37_249, %c0_250, %c0_251] : memref<64x16x32xbf16, #tpu.memory_space<vmem>>, vector<1x16x32xbf16>
    %211 = vector.shape_cast %210 : vector<1x16x32xbf16> to vector<16x32xbf16>
    %c38 = arith.constant 38 : index
    %c0_252 = arith.constant 0 : index
    %c0_253 = arith.constant 0 : index
    %212 = vector.load %arg14[%c38, %c0_252, %c0_253] : memref<64x16x32xbf16, #tpu.memory_space<vmem>>, vector<1x16x32xbf16>
    %213 = vector.shape_cast %212 : vector<1x16x32xbf16> to vector<16x32xbf16>
    %c39 = arith.constant 39 : index
    %c0_254 = arith.constant 0 : index
    %c0_255 = arith.constant 0 : index
    %214 = vector.load %arg14[%c39, %c0_254, %c0_255] : memref<64x16x32xbf16, #tpu.memory_space<vmem>>, vector<1x16x32xbf16>
    %215 = vector.shape_cast %214 : vector<1x16x32xbf16> to vector<16x32xbf16>
    %c44_256 = arith.constant 44 : index
    %c0_257 = arith.constant 0 : index
    %c0_258 = arith.constant 0 : index
    %216 = vector.load %arg14[%c44_256, %c0_257, %c0_258] : memref<64x16x32xbf16, #tpu.memory_space<vmem>>, vector<1x16x32xbf16>
    %217 = vector.shape_cast %216 : vector<1x16x32xbf16> to vector<16x32xbf16>
    %c45_259 = arith.constant 45 : index
    %c0_260 = arith.constant 0 : index
    %c0_261 = arith.constant 0 : index
    %218 = vector.load %arg14[%c45_259, %c0_260, %c0_261] : memref<64x16x32xbf16, #tpu.memory_space<vmem>>, vector<1x16x32xbf16>
    %219 = vector.shape_cast %218 : vector<1x16x32xbf16> to vector<16x32xbf16>
    %c46 = arith.constant 46 : index
    %c0_262 = arith.constant 0 : index
    %c0_263 = arith.constant 0 : index
    %220 = vector.load %arg14[%c46, %c0_262, %c0_263] : memref<64x16x32xbf16, #tpu.memory_space<vmem>>, vector<1x16x32xbf16>
    %221 = vector.shape_cast %220 : vector<1x16x32xbf16> to vector<16x32xbf16>
    %c47 = arith.constant 47 : index
    %c0_264 = arith.constant 0 : index
    %c0_265 = arith.constant 0 : index
    %222 = vector.load %arg14[%c47, %c0_264, %c0_265] : memref<64x16x32xbf16, #tpu.memory_space<vmem>>, vector<1x16x32xbf16>
    %223 = vector.shape_cast %222 : vector<1x16x32xbf16> to vector<16x32xbf16>
    %224 = tpu.concatenate %193, %195, %197, %199, %201, %203, %205, %207, %209, %211, %213, %215, %217, %219, %221, %223 in 1 : vector<16x32xbf16>, vector<16x32xbf16>, vector<16x32xbf16>, vector<16x32xbf16>, vector<16x32xbf16>, vector<16x32xbf16>, vector<16x32xbf16>, vector<16x32xbf16>, vector<16x32xbf16>, vector<16x32xbf16>, vector<16x32xbf16>, vector<16x32xbf16>, vector<16x32xbf16>, vector<16x32xbf16>, vector<16x32xbf16>, vector<16x32xbf16> -> vector<16x512xbf16>
    %c5_266 = arith.constant 5 : index
    %c0_267 = arith.constant 0 : index
    %c0_268 = arith.constant 0 : index
    %225 = vector.load %arg15[%c5_266, %c0_267, %c0_268] : memref<9x16x512xbf16, #tpu.memory_space<vmem>>, vector<1x16x512xbf16>
    %226 = vector.shape_cast %225 : vector<1x16x512xbf16> to vector<16x512xbf16>
    %227 = vector.shape_cast %224 : vector<16x512xbf16> to vector<1x16x512xbf16>
    tpu.vector_store %arg15[%c5_266, %c0_267, %c0_268], %227 {strides = array<i32>} : memref<9x16x512xbf16, #tpu.memory_space<vmem>>, vector<1x16x512xbf16>,
    %c32_269 = arith.constant 32 : index
    %c0_270 = arith.constant 0 : index
    %c0_271 = arith.constant 0 : index
    %228 = vector.load %arg14[%c32_269, %c0_270, %c0_271] : memref<64x16x32xbf16, #tpu.memory_space<vmem>>, vector<1x16x32xbf16>
    %229 = vector.shape_cast %228 : vector<1x16x32xbf16> to vector<16x32xbf16>
    %c33_272 = arith.constant 33 : index
    %c0_273 = arith.constant 0 : index
    %c0_274 = arith.constant 0 : index
    %230 = vector.load %arg14[%c33_272, %c0_273, %c0_274] : memref<64x16x32xbf16, #tpu.memory_space<vmem>>, vector<1x16x32xbf16>
    %231 = vector.shape_cast %230 : vector<1x16x32xbf16> to vector<16x32xbf16>
    %c34_275 = arith.constant 34 : index
    %c0_276 = arith.constant 0 : index
    %c0_277 = arith.constant 0 : index
    %232 = vector.load %arg14[%c34_275, %c0_276, %c0_277] : memref<64x16x32xbf16, #tpu.memory_space<vmem>>, vector<1x16x32xbf16>
    %233 = vector.shape_cast %232 : vector<1x16x32xbf16> to vector<16x32xbf16>
    %c35_278 = arith.constant 35 : index
    %c0_279 = arith.constant 0 : index
    %c0_280 = arith.constant 0 : index
    %234 = vector.load %arg14[%c35_278, %c0_279, %c0_280] : memref<64x16x32xbf16, #tpu.memory_space<vmem>>, vector<1x16x32xbf16>
    %235 = vector.shape_cast %234 : vector<1x16x32xbf16> to vector<16x32xbf16>
    %c40_281 = arith.constant 40 : index
    %c0_282 = arith.constant 0 : index
    %c0_283 = arith.constant 0 : index
    %236 = vector.load %arg14[%c40_281, %c0_282, %c0_283] : memref<64x16x32xbf16, #tpu.memory_space<vmem>>, vector<1x16x32xbf16>
    %237 = vector.shape_cast %236 : vector<1x16x32xbf16> to vector<16x32xbf16>
    %c41_284 = arith.constant 41 : index
    %c0_285 = arith.constant 0 : index
    %c0_286 = arith.constant 0 : index
    %238 = vector.load %arg14[%c41_284, %c0_285, %c0_286] : memref<64x16x32xbf16, #tpu.memory_space<vmem>>, vector<1x16x32xbf16>
    %239 = vector.shape_cast %238 : vector<1x16x32xbf16> to vector<16x32xbf16>
    %c42_287 = arith.constant 42 : index
    %c0_288 = arith.constant 0 : index
    %c0_289 = arith.constant 0 : index
    %240 = vector.load %arg14[%c42_287, %c0_288, %c0_289] : memref<64x16x32xbf16, #tpu.memory_space<vmem>>, vector<1x16x32xbf16>
    %241 = vector.shape_cast %240 : vector<1x16x32xbf16> to vector<16x32xbf16>
    %c43_290 = arith.constant 43 : index
    %c0_291 = arith.constant 0 : index
    %c0_292 = arith.constant 0 : index
    %242 = vector.load %arg14[%c43_290, %c0_291, %c0_292] : memref<64x16x32xbf16, #tpu.memory_space<vmem>>, vector<1x16x32xbf16>
    %243 = vector.shape_cast %242 : vector<1x16x32xbf16> to vector<16x32xbf16>
    %c48 = arith.constant 48 : index
    %c0_293 = arith.constant 0 : index
    %c0_294 = arith.constant 0 : index
    %244 = vector.load %arg14[%c48, %c0_293, %c0_294] : memref<64x16x32xbf16, #tpu.memory_space<vmem>>, vector<1x16x32xbf16>
    %245 = vector.shape_cast %244 : vector<1x16x32xbf16> to vector<16x32xbf16>
    %c49 = arith.constant 49 : index
    %c0_295 = arith.constant 0 : index
    %c0_296 = arith.constant 0 : index
    %246 = vector.load %arg14[%c49, %c0_295, %c0_296] : memref<64x16x32xbf16, #tpu.memory_space<vmem>>, vector<1x16x32xbf16>
    %247 = vector.shape_cast %246 : vector<1x16x32xbf16> to vector<16x32xbf16>
    %c50 = arith.constant 50 : index
    %c0_297 = arith.constant 0 : index
    %c0_298 = arith.constant 0 : index
    %248 = vector.load %arg14[%c50, %c0_297, %c0_298] : memref<64x16x32xbf16, #tpu.memory_space<vmem>>, vector<1x16x32xbf16>
    %249 = vector.shape_cast %248 : vector<1x16x32xbf16> to vector<16x32xbf16>
    %c51 = arith.constant 51 : index
    %c0_299 = arith.constant 0 : index
    %c0_300 = arith.constant 0 : index
    %250 = vector.load %arg14[%c51, %c0_299, %c0_300] : memref<64x16x32xbf16, #tpu.memory_space<vmem>>, vector<1x16x32xbf16>
    %251 = vector.shape_cast %250 : vector<1x16x32xbf16> to vector<16x32xbf16>
    %c56 = arith.constant 56 : index
    %c0_301 = arith.constant 0 : index
    %c0_302 = arith.constant 0 : index
    %252 = vector.load %arg14[%c56, %c0_301, %c0_302] : memref<64x16x32xbf16, #tpu.memory_space<vmem>>, vector<1x16x32xbf16>
    %253 = vector.shape_cast %252 : vector<1x16x32xbf16> to vector<16x32xbf16>
    %c57 = arith.constant 57 : index
    %c0_303 = arith.constant 0 : index
    %c0_304 = arith.constant 0 : index
    %254 = vector.load %arg14[%c57, %c0_303, %c0_304] : memref<64x16x32xbf16, #tpu.memory_space<vmem>>, vector<1x16x32xbf16>
    %255 = vector.shape_cast %254 : vector<1x16x32xbf16> to vector<16x32xbf16>
    %c58 = arith.constant 58 : index
    %c0_305 = arith.constant 0 : index
    %c0_306 = arith.constant 0 : index
    %256 = vector.load %arg14[%c58, %c0_305, %c0_306] : memref<64x16x32xbf16, #tpu.memory_space<vmem>>, vector<1x16x32xbf16>
    %257 = vector.shape_cast %256 : vector<1x16x32xbf16> to vector<16x32xbf16>
    %c59 = arith.constant 59 : index
    %c0_307 = arith.constant 0 : index
    %c0_308 = arith.constant 0 : index
    %258 = vector.load %arg14[%c59, %c0_307, %c0_308] : memref<64x16x32xbf16, #tpu.memory_space<vmem>>, vector<1x16x32xbf16>
    %259 = vector.shape_cast %258 : vector<1x16x32xbf16> to vector<16x32xbf16>
    %260 = tpu.concatenate %229, %231, %233, %235, %237, %239, %241, %243, %245, %247, %249, %251, %253, %255, %257, %259 in 1 : vector<16x32xbf16>, vector<16x32xbf16>, vector<16x32xbf16>, vector<16x32xbf16>, vector<16x32xbf16>, vector<16x32xbf16>, vector<16x32xbf16>, vector<16x32xbf16>, vector<16x32xbf16>, vector<16x32xbf16>, vector<16x32xbf16>, vector<16x32xbf16>, vector<16x32xbf16>, vector<16x32xbf16>, vector<16x32xbf16>, vector<16x32xbf16> -> vector<16x512xbf16>
    %c6_309 = arith.constant 6 : index
    %c0_310 = arith.constant 0 : index
    %c0_311 = arith.constant 0 : index
    %261 = vector.load %arg15[%c6_309, %c0_310, %c0_311] : memref<9x16x512xbf16, #tpu.memory_space<vmem>>, vector<1x16x512xbf16>
    %262 = vector.shape_cast %261 : vector<1x16x512xbf16> to vector<16x512xbf16>
    %263 = vector.shape_cast %260 : vector<16x512xbf16> to vector<1x16x512xbf16>
    tpu.vector_store %arg15[%c6_309, %c0_310, %c0_311], %263 {strides = array<i32>} : memref<9x16x512xbf16, #tpu.memory_space<vmem>>, vector<1x16x512xbf16>,
    %c34_312 = arith.constant 34 : index
    %c0_313 = arith.constant 0 : index
    %c0_314 = arith.constant 0 : index
    %264 = vector.load %arg14[%c34_312, %c0_313, %c0_314] : memref<64x16x32xbf16, #tpu.memory_space<vmem>>, vector<1x16x32xbf16>
    %265 = vector.shape_cast %264 : vector<1x16x32xbf16> to vector<16x32xbf16>
    %c35_315 = arith.constant 35 : index
    %c0_316 = arith.constant 0 : index
    %c0_317 = arith.constant 0 : index
    %266 = vector.load %arg14[%c35_315, %c0_316, %c0_317] : memref<64x16x32xbf16, #tpu.memory_space<vmem>>, vector<1x16x32xbf16>
    %267 = vector.shape_cast %266 : vector<1x16x32xbf16> to vector<16x32xbf16>
    %c36_318 = arith.constant 36 : index
    %c0_319 = arith.constant 0 : index
    %c0_320 = arith.constant 0 : index
    %268 = vector.load %arg14[%c36_318, %c0_319, %c0_320] : memref<64x16x32xbf16, #tpu.memory_space<vmem>>, vector<1x16x32xbf16>
    %269 = vector.shape_cast %268 : vector<1x16x32xbf16> to vector<16x32xbf16>
    %c37_321 = arith.constant 37 : index
    %c0_322 = arith.constant 0 : index
    %c0_323 = arith.constant 0 : index
    %270 = vector.load %arg14[%c37_321, %c0_322, %c0_323] : memref<64x16x32xbf16, #tpu.memory_space<vmem>>, vector<1x16x32xbf16>
    %271 = vector.shape_cast %270 : vector<1x16x32xbf16> to vector<16x32xbf16>
    %c42_324 = arith.constant 42 : index
    %c0_325 = arith.constant 0 : index
    %c0_326 = arith.constant 0 : index
    %272 = vector.load %arg14[%c42_324, %c0_325, %c0_326] : memref<64x16x32xbf16, #tpu.memory_space<vmem>>, vector<1x16x32xbf16>
    %273 = vector.shape_cast %272 : vector<1x16x32xbf16> to vector<16x32xbf16>
    %c43_327 = arith.constant 43 : index
    %c0_328 = arith.constant 0 : index
    %c0_329 = arith.constant 0 : index
    %274 = vector.load %arg14[%c43_327, %c0_328, %c0_329] : memref<64x16x32xbf16, #tpu.memory_space<vmem>>, vector<1x16x32xbf16>
    %275 = vector.shape_cast %274 : vector<1x16x32xbf16> to vector<16x32xbf16>
    %c44_330 = arith.constant 44 : index
    %c0_331 = arith.constant 0 : index
    %c0_332 = arith.constant 0 : index
    %276 = vector.load %arg14[%c44_330, %c0_331, %c0_332] : memref<64x16x32xbf16, #tpu.memory_space<vmem>>, vector<1x16x32xbf16>
    %277 = vector.shape_cast %276 : vector<1x16x32xbf16> to vector<16x32xbf16>
    %c45_333 = arith.constant 45 : index
    %c0_334 = arith.constant 0 : index
    %c0_335 = arith.constant 0 : index
    %278 = vector.load %arg14[%c45_333, %c0_334, %c0_335] : memref<64x16x32xbf16, #tpu.memory_space<vmem>>, vector<1x16x32xbf16>
    %279 = vector.shape_cast %278 : vector<1x16x32xbf16> to vector<16x32xbf16>
    %c50_336 = arith.constant 50 : index
    %c0_337 = arith.constant 0 : index
    %c0_338 = arith.constant 0 : index
    %280 = vector.load %arg14[%c50_336, %c0_337, %c0_338] : memref<64x16x32xbf16, #tpu.memory_space<vmem>>, vector<1x16x32xbf16>
    %281 = vector.shape_cast %280 : vector<1x16x32xbf16> to vector<16x32xbf16>
    %c51_339 = arith.constant 51 : index
    %c0_340 = arith.constant 0 : index
    %c0_341 = arith.constant 0 : index
    %282 = vector.load %arg14[%c51_339, %c0_340, %c0_341] : memref<64x16x32xbf16, #tpu.memory_space<vmem>>, vector<1x16x32xbf16>
    %283 = vector.shape_cast %282 : vector<1x16x32xbf16> to vector<16x32xbf16>
    %c52 = arith.constant 52 : index
    %c0_342 = arith.constant 0 : index
    %c0_343 = arith.constant 0 : index
    %284 = vector.load %arg14[%c52, %c0_342, %c0_343] : memref<64x16x32xbf16, #tpu.memory_space<vmem>>, vector<1x16x32xbf16>
    %285 = vector.shape_cast %284 : vector<1x16x32xbf16> to vector<16x32xbf16>
    %c53 = arith.constant 53 : index
    %c0_344 = arith.constant 0 : index
    %c0_345 = arith.constant 0 : index
    %286 = vector.load %arg14[%c53, %c0_344, %c0_345] : memref<64x16x32xbf16, #tpu.memory_space<vmem>>, vector<1x16x32xbf16>
    %287 = vector.shape_cast %286 : vector<1x16x32xbf16> to vector<16x32xbf16>
    %c58_346 = arith.constant 58 : index
    %c0_347 = arith.constant 0 : index
    %c0_348 = arith.constant 0 : index
    %288 = vector.load %arg14[%c58_346, %c0_347, %c0_348] : memref<64x16x32xbf16, #tpu.memory_space<vmem>>, vector<1x16x32xbf16>
    %289 = vector.shape_cast %288 : vector<1x16x32xbf16> to vector<16x32xbf16>
    %c59_349 = arith.constant 59 : index
    %c0_350 = arith.constant 0 : index
    %c0_351 = arith.constant 0 : index
    %290 = vector.load %arg14[%c59_349, %c0_350, %c0_351] : memref<64x16x32xbf16, #tpu.memory_space<vmem>>, vector<1x16x32xbf16>
    %291 = vector.shape_cast %290 : vector<1x16x32xbf16> to vector<16x32xbf16>
    %c60 = arith.constant 60 : index
    %c0_352 = arith.constant 0 : index
    %c0_353 = arith.constant 0 : index
    %292 = vector.load %arg14[%c60, %c0_352, %c0_353] : memref<64x16x32xbf16, #tpu.memory_space<vmem>>, vector<1x16x32xbf16>
    %293 = vector.shape_cast %292 : vector<1x16x32xbf16> to vector<16x32xbf16>
    %c61 = arith.constant 61 : index
    %c0_354 = arith.constant 0 : index
    %c0_355 = arith.constant 0 : index
    %294 = vector.load %arg14[%c61, %c0_354, %c0_355] : memref<64x16x32xbf16, #tpu.memory_space<vmem>>, vector<1x16x32xbf16>
    %295 = vector.shape_cast %294 : vector<1x16x32xbf16> to vector<16x32xbf16>
    %296 = tpu.concatenate %265, %267, %269, %271, %273, %275, %277, %279, %281, %283, %285, %287, %289, %291, %293, %295 in 1 : vector<16x32xbf16>, vector<16x32xbf16>, vector<16x32xbf16>, vector<16x32xbf16>, vector<16x32xbf16>, vector<16x32xbf16>, vector<16x32xbf16>, vector<16x32xbf16>, vector<16x32xbf16>, vector<16x32xbf16>, vector<16x32xbf16>, vector<16x32xbf16>, vector<16x32xbf16>, vector<16x32xbf16>, vector<16x32xbf16>, vector<16x32xbf16> -> vector<16x512xbf16>
    %c7_356 = arith.constant 7 : index
    %c0_357 = arith.constant 0 : index
    %c0_358 = arith.constant 0 : index
    %297 = vector.load %arg15[%c7_356, %c0_357, %c0_358] : memref<9x16x512xbf16, #tpu.memory_space<vmem>>, vector<1x16x512xbf16>
    %298 = vector.shape_cast %297 : vector<1x16x512xbf16> to vector<16x512xbf16>
    %299 = vector.shape_cast %296 : vector<16x512xbf16> to vector<1x16x512xbf16>
    tpu.vector_store %arg15[%c7_356, %c0_357, %c0_358], %299 {strides = array<i32>} : memref<9x16x512xbf16, #tpu.memory_space<vmem>>, vector<1x16x512xbf16>,
    %c36_359 = arith.constant 36 : index
    %c0_360 = arith.constant 0 : index
    %c0_361 = arith.constant 0 : index
    %300 = vector.load %arg14[%c36_359, %c0_360, %c0_361] : memref<64x16x32xbf16, #tpu.memory_space<vmem>>, vector<1x16x32xbf16>
    %301 = vector.shape_cast %300 : vector<1x16x32xbf16> to vector<16x32xbf16>
    %c37_362 = arith.constant 37 : index
    %c0_363 = arith.constant 0 : index
    %c0_364 = arith.constant 0 : index
    %302 = vector.load %arg14[%c37_362, %c0_363, %c0_364] : memref<64x16x32xbf16, #tpu.memory_space<vmem>>, vector<1x16x32xbf16>
    %303 = vector.shape_cast %302 : vector<1x16x32xbf16> to vector<16x32xbf16>
    %c38_365 = arith.constant 38 : index
    %c0_366 = arith.constant 0 : index
    %c0_367 = arith.constant 0 : index
    %304 = vector.load %arg14[%c38_365, %c0_366, %c0_367] : memref<64x16x32xbf16, #tpu.memory_space<vmem>>, vector<1x16x32xbf16>
    %305 = vector.shape_cast %304 : vector<1x16x32xbf16> to vector<16x32xbf16>
    %c39_368 = arith.constant 39 : index
    %c0_369 = arith.constant 0 : index
    %c0_370 = arith.constant 0 : index
    %306 = vector.load %arg14[%c39_368, %c0_369, %c0_370] : memref<64x16x32xbf16, #tpu.memory_space<vmem>>, vector<1x16x32xbf16>
    %307 = vector.shape_cast %306 : vector<1x16x32xbf16> to vector<16x32xbf16>
    %c44_371 = arith.constant 44 : index
    %c0_372 = arith.constant 0 : index
    %c0_373 = arith.constant 0 : index
    %308 = vector.load %arg14[%c44_371, %c0_372, %c0_373] : memref<64x16x32xbf16, #tpu.memory_space<vmem>>, vector<1x16x32xbf16>
    %309 = vector.shape_cast %308 : vector<1x16x32xbf16> to vector<16x32xbf16>
    %c45_374 = arith.constant 45 : index
    %c0_375 = arith.constant 0 : index
    %c0_376 = arith.constant 0 : index
    %310 = vector.load %arg14[%c45_374, %c0_375, %c0_376] : memref<64x16x32xbf16, #tpu.memory_space<vmem>>, vector<1x16x32xbf16>
    %311 = vector.shape_cast %310 : vector<1x16x32xbf16> to vector<16x32xbf16>
    %c46_377 = arith.constant 46 : index
    %c0_378 = arith.constant 0 : index
    %c0_379 = arith.constant 0 : index
    %312 = vector.load %arg14[%c46_377, %c0_378, %c0_379] : memref<64x16x32xbf16, #tpu.memory_space<vmem>>, vector<1x16x32xbf16>
    %313 = vector.shape_cast %312 : vector<1x16x32xbf16> to vector<16x32xbf16>
    %c47_380 = arith.constant 47 : index
    %c0_381 = arith.constant 0 : index
    %c0_382 = arith.constant 0 : index
    %314 = vector.load %arg14[%c47_380, %c0_381, %c0_382] : memref<64x16x32xbf16, #tpu.memory_space<vmem>>, vector<1x16x32xbf16>
    %315 = vector.shape_cast %314 : vector<1x16x32xbf16> to vector<16x32xbf16>
    %c52_383 = arith.constant 52 : index
    %c0_384 = arith.constant 0 : index
    %c0_385 = arith.constant 0 : index
    %316 = vector.load %arg14[%c52_383, %c0_384, %c0_385] : memref<64x16x32xbf16, #tpu.memory_space<vmem>>, vector<1x16x32xbf16>
    %317 = vector.shape_cast %316 : vector<1x16x32xbf16> to vector<16x32xbf16>
    %c53_386 = arith.constant 53 : index
    %c0_387 = arith.constant 0 : index
    %c0_388 = arith.constant 0 : index
    %318 = vector.load %arg14[%c53_386, %c0_387, %c0_388] : memref<64x16x32xbf16, #tpu.memory_space<vmem>>, vector<1x16x32xbf16>
    %319 = vector.shape_cast %318 : vector<1x16x32xbf16> to vector<16x32xbf16>
    %c54 = arith.constant 54 : index
    %c0_389 = arith.constant 0 : index
    %c0_390 = arith.constant 0 : index
    %320 = vector.load %arg14[%c54, %c0_389, %c0_390] : memref<64x16x32xbf16, #tpu.memory_space<vmem>>, vector<1x16x32xbf16>
    %321 = vector.shape_cast %320 : vector<1x16x32xbf16> to vector<16x32xbf16>
    %c55 = arith.constant 55 : index
    %c0_391 = arith.constant 0 : index
    %c0_392 = arith.constant 0 : index
    %322 = vector.load %arg14[%c55, %c0_391, %c0_392] : memref<64x16x32xbf16, #tpu.memory_space<vmem>>, vector<1x16x32xbf16>
    %323 = vector.shape_cast %322 : vector<1x16x32xbf16> to vector<16x32xbf16>
    %c60_393 = arith.constant 60 : index
    %c0_394 = arith.constant 0 : index
    %c0_395 = arith.constant 0 : index
    %324 = vector.load %arg14[%c60_393, %c0_394, %c0_395] : memref<64x16x32xbf16, #tpu.memory_space<vmem>>, vector<1x16x32xbf16>
    %325 = vector.shape_cast %324 : vector<1x16x32xbf16> to vector<16x32xbf16>
    %c61_396 = arith.constant 61 : index
    %c0_397 = arith.constant 0 : index
    %c0_398 = arith.constant 0 : index
    %326 = vector.load %arg14[%c61_396, %c0_397, %c0_398] : memref<64x16x32xbf16, #tpu.memory_space<vmem>>, vector<1x16x32xbf16>
    %327 = vector.shape_cast %326 : vector<1x16x32xbf16> to vector<16x32xbf16>
    %c62 = arith.constant 62 : index
    %c0_399 = arith.constant 0 : index
    %c0_400 = arith.constant 0 : index
    %328 = vector.load %arg14[%c62, %c0_399, %c0_400] : memref<64x16x32xbf16, #tpu.memory_space<vmem>>, vector<1x16x32xbf16>
    %329 = vector.shape_cast %328 : vector<1x16x32xbf16> to vector<16x32xbf16>
    %c63 = arith.constant 63 : index
    %c0_401 = arith.constant 0 : index
    %c0_402 = arith.constant 0 : index
    %330 = vector.load %arg14[%c63, %c0_401, %c0_402] : memref<64x16x32xbf16, #tpu.memory_space<vmem>>, vector<1x16x32xbf16>
    %331 = vector.shape_cast %330 : vector<1x16x32xbf16> to vector<16x32xbf16>
    %332 = tpu.concatenate %301, %303, %305, %307, %309, %311, %313, %315, %317, %319, %321, %323, %325, %327, %329, %331 in 1 : vector<16x32xbf16>, vector<16x32xbf16>, vector<16x32xbf16>, vector<16x32xbf16>, vector<16x32xbf16>, vector<16x32xbf16>, vector<16x32xbf16>, vector<16x32xbf16>, vector<16x32xbf16>, vector<16x32xbf16>, vector<16x32xbf16>, vector<16x32xbf16>, vector<16x32xbf16>, vector<16x32xbf16>, vector<16x32xbf16>, vector<16x32xbf16> -> vector<16x512xbf16>
    %c8_403 = arith.constant 8 : index
    %c0_404 = arith.constant 0 : index
    %c0_405 = arith.constant 0 : index
    %333 = vector.load %arg15[%c8_403, %c0_404, %c0_405] : memref<9x16x512xbf16, #tpu.memory_space<vmem>>, vector<1x16x512xbf16>
    %334 = vector.shape_cast %333 : vector<1x16x512xbf16> to vector<16x512xbf16>
    %335 = vector.shape_cast %332 : vector<16x512xbf16> to vector<1x16x512xbf16>
    tpu.vector_store %arg15[%c8_403, %c0_404, %c0_405], %335 {strides = array<i32>} : memref<9x16x512xbf16, #tpu.memory_space<vmem>>, vector<1x16x512xbf16>,
    %c0_406 = arith.constant 0 : index
    %c0_407 = arith.constant 0 : index
    %c0_408 = arith.constant 0 : index
    %336 = vector.load %arg15[%c0_406, %c0_407, %c0_408] : memref<9x16x512xbf16, #tpu.memory_space<vmem>>, vector<9x16x512xbf16>
    %337 = vector.shape_cast %336 : vector<9x16x512xbf16> to vector<144x512xbf16>
    %c0_409 = arith.constant 0 : index
    %c0_410 = arith.constant 0 : index
    %338 = vector.load %arg4[%c0_409, %c0_410] : memref<512x64xbf16, #tpu.memory_space<vmem>>, vector<512x64xbf16>
    %cst_411 = arith.constant dense<0.000000e+00> : vector<144x64xf32>
    %339 = tpu.matmul %337, %338, %cst_411 {dimension_numbers = #tpu.dot_dimension_numbers<[1], [0], [0], [1], [0, 0, 1, 1], [], []>} : vector<144x512xbf16>, vector<512x64xbf16>, vector<144x64xf32> -> vector<144x64xf32>
    %c0_412 = arith.constant 0 : index
    %c0_413 = arith.constant 0 : index
    %340 = vector.load %arg5[%c0_412, %c0_413] : memref<1x64xf32, #tpu.memory_space<vmem>>, vector<1x64xf32>
    %341 = vector.broadcast %340 : vector<1x64xf32> to vector<144x64xf32>
    %342 = arith.addf %339, %341 : vector<144x64xf32>
    %cst_414 = arith.constant 0.000000e+00 : f32
    %343 = vector.broadcast %cst_414 : f32 to vector<144x64xf32>
    %344 = arith.maximumf %342, %343 : vector<144x64xf32>
    %345 = vector.shape_cast %344 : vector<144x64xf32> to vector<9x16x64xf32>
    %346 = arith.truncf %345 : vector<9x16x64xf32> to vector<9x16x64xbf16>
    %c0_415 = arith.constant 0 : index
    %c0_416 = arith.constant 0 : index
    %c0_417 = arith.constant 0 : index
    %347 = vector.load %arg16[%c0_415, %c0_416, %c0_417] : memref<9x16x64xbf16, #tpu.memory_space<vmem>>, vector<9x16x64xbf16>
    tpu.vector_store %arg16[%c0_415, %c0_416, %c0_417], %346 {strides = array<i32>} : memref<9x16x64xbf16, #tpu.memory_space<vmem>>, vector<9x16x64xbf16>,
    %cst_418 = arith.constant 0.000000e+00 : f32
    %348 = vector.broadcast %cst_418 : f32 to vector<16x64xf32>
    %c0_419 = arith.constant 0 : index
    %c0_420 = arith.constant 0 : index
    %c0_421 = arith.constant 0 : index
    %349 = vector.load %arg16[%c0_419, %c0_420, %c0_421] : memref<9x16x64xbf16, #tpu.memory_space<vmem>>, vector<1x16x64xbf16>
    %350 = vector.shape_cast %349 : vector<1x16x64xbf16> to vector<16x64xbf16>
    %c0_422 = arith.constant 0 : index
    %c0_423 = arith.constant 0 : index
    %c0_424 = arith.constant 0 : index
    %351 = vector.load %arg6[%c0_422, %c0_423, %c0_424] : memref<9x64x64xbf16, #tpu.memory_space<vmem>>, vector<1x64x64xbf16>
    %352 = vector.shape_cast %351 : vector<1x64x64xbf16> to vector<64x64xbf16>
    %cst_425 = arith.constant dense<0.000000e+00> : vector<16x64xf32>
    %353 = tpu.matmul %350, %352, %cst_425 {dimension_numbers = #tpu.dot_dimension_numbers<[1], [0], [0], [1], [0, 0, 1, 1], [], []>} : vector<16x64xbf16>, vector<64x64xbf16>, vector<16x64xf32> -> vector<16x64xf32>
    %354 = arith.addf %348, %353 : vector<16x64xf32>
    %c1_426 = arith.constant 1 : index
    %c0_427 = arith.constant 0 : index
    %c0_428 = arith.constant 0 : index
    %355 = vector.load %arg16[%c1_426, %c0_427, %c0_428] : memref<9x16x64xbf16, #tpu.memory_space<vmem>>, vector<1x16x64xbf16>
    %356 = vector.shape_cast %355 : vector<1x16x64xbf16> to vector<16x64xbf16>
    %c1_429 = arith.constant 1 : index
    %c0_430 = arith.constant 0 : index
    %c0_431 = arith.constant 0 : index
    %357 = vector.load %arg6[%c1_429, %c0_430, %c0_431] : memref<9x64x64xbf16, #tpu.memory_space<vmem>>, vector<1x64x64xbf16>
    %358 = vector.shape_cast %357 : vector<1x64x64xbf16> to vector<64x64xbf16>
    %cst_432 = arith.constant dense<0.000000e+00> : vector<16x64xf32>
    %359 = tpu.matmul %356, %358, %cst_432 {dimension_numbers = #tpu.dot_dimension_numbers<[1], [0], [0], [1], [0, 0, 1, 1], [], []>} : vector<16x64xbf16>, vector<64x64xbf16>, vector<16x64xf32> -> vector<16x64xf32>
    %360 = arith.addf %354, %359 : vector<16x64xf32>
    %c2_433 = arith.constant 2 : index
    %c0_434 = arith.constant 0 : index
    %c0_435 = arith.constant 0 : index
    %361 = vector.load %arg16[%c2_433, %c0_434, %c0_435] : memref<9x16x64xbf16, #tpu.memory_space<vmem>>, vector<1x16x64xbf16>
    %362 = vector.shape_cast %361 : vector<1x16x64xbf16> to vector<16x64xbf16>
    %c2_436 = arith.constant 2 : index
    %c0_437 = arith.constant 0 : index
    %c0_438 = arith.constant 0 : index
    %363 = vector.load %arg6[%c2_436, %c0_437, %c0_438] : memref<9x64x64xbf16, #tpu.memory_space<vmem>>, vector<1x64x64xbf16>
    %364 = vector.shape_cast %363 : vector<1x64x64xbf16> to vector<64x64xbf16>
    %cst_439 = arith.constant dense<0.000000e+00> : vector<16x64xf32>
    %365 = tpu.matmul %362, %364, %cst_439 {dimension_numbers = #tpu.dot_dimension_numbers<[1], [0], [0], [1], [0, 0, 1, 1], [], []>} : vector<16x64xbf16>, vector<64x64xbf16>, vector<16x64xf32> -> vector<16x64xf32>
    %366 = arith.addf %360, %365 : vector<16x64xf32>
    %c3_440 = arith.constant 3 : index
    %c0_441 = arith.constant 0 : index
    %c0_442 = arith.constant 0 : index
    %367 = vector.load %arg16[%c3_440, %c0_441, %c0_442] : memref<9x16x64xbf16, #tpu.memory_space<vmem>>, vector<1x16x64xbf16>
    %368 = vector.shape_cast %367 : vector<1x16x64xbf16> to vector<16x64xbf16>
    %c3_443 = arith.constant 3 : index
    %c0_444 = arith.constant 0 : index
    %c0_445 = arith.constant 0 : index
    %369 = vector.load %arg6[%c3_443, %c0_444, %c0_445] : memref<9x64x64xbf16, #tpu.memory_space<vmem>>, vector<1x64x64xbf16>
    %370 = vector.shape_cast %369 : vector<1x64x64xbf16> to vector<64x64xbf16>
    %cst_446 = arith.constant dense<0.000000e+00> : vector<16x64xf32>
    %371 = tpu.matmul %368, %370, %cst_446 {dimension_numbers = #tpu.dot_dimension_numbers<[1], [0], [0], [1], [0, 0, 1, 1], [], []>} : vector<16x64xbf16>, vector<64x64xbf16>, vector<16x64xf32> -> vector<16x64xf32>
    %372 = arith.addf %366, %371 : vector<16x64xf32>
    %c4_447 = arith.constant 4 : index
    %c0_448 = arith.constant 0 : index
    %c0_449 = arith.constant 0 : index
    %373 = vector.load %arg16[%c4_447, %c0_448, %c0_449] : memref<9x16x64xbf16, #tpu.memory_space<vmem>>, vector<1x16x64xbf16>
    %374 = vector.shape_cast %373 : vector<1x16x64xbf16> to vector<16x64xbf16>
    %c4_450 = arith.constant 4 : index
    %c0_451 = arith.constant 0 : index
    %c0_452 = arith.constant 0 : index
    %375 = vector.load %arg6[%c4_450, %c0_451, %c0_452] : memref<9x64x64xbf16, #tpu.memory_space<vmem>>, vector<1x64x64xbf16>
    %376 = vector.shape_cast %375 : vector<1x64x64xbf16> to vector<64x64xbf16>
    %cst_453 = arith.constant dense<0.000000e+00> : vector<16x64xf32>
    %377 = tpu.matmul %374, %376, %cst_453 {dimension_numbers = #tpu.dot_dimension_numbers<[1], [0], [0], [1], [0, 0, 1, 1], [], []>} : vector<16x64xbf16>, vector<64x64xbf16>, vector<16x64xf32> -> vector<16x64xf32>
    %378 = arith.addf %372, %377 : vector<16x64xf32>
    %c5_454 = arith.constant 5 : index
    %c0_455 = arith.constant 0 : index
    %c0_456 = arith.constant 0 : index
    %379 = vector.load %arg16[%c5_454, %c0_455, %c0_456] : memref<9x16x64xbf16, #tpu.memory_space<vmem>>, vector<1x16x64xbf16>
    %380 = vector.shape_cast %379 : vector<1x16x64xbf16> to vector<16x64xbf16>
    %c5_457 = arith.constant 5 : index
    %c0_458 = arith.constant 0 : index
    %c0_459 = arith.constant 0 : index
    %381 = vector.load %arg6[%c5_457, %c0_458, %c0_459] : memref<9x64x64xbf16, #tpu.memory_space<vmem>>, vector<1x64x64xbf16>
    %382 = vector.shape_cast %381 : vector<1x64x64xbf16> to vector<64x64xbf16>
    %cst_460 = arith.constant dense<0.000000e+00> : vector<16x64xf32>
    %383 = tpu.matmul %380, %382, %cst_460 {dimension_numbers = #tpu.dot_dimension_numbers<[1], [0], [0], [1], [0, 0, 1, 1], [], []>} : vector<16x64xbf16>, vector<64x64xbf16>, vector<16x64xf32> -> vector<16x64xf32>
    %384 = arith.addf %378, %383 : vector<16x64xf32>
    %c6_461 = arith.constant 6 : index
    %c0_462 = arith.constant 0 : index
    %c0_463 = arith.constant 0 : index
    %385 = vector.load %arg16[%c6_461, %c0_462, %c0_463] : memref<9x16x64xbf16, #tpu.memory_space<vmem>>, vector<1x16x64xbf16>
    %386 = vector.shape_cast %385 : vector<1x16x64xbf16> to vector<16x64xbf16>
    %c6_464 = arith.constant 6 : index
    %c0_465 = arith.constant 0 : index
    %c0_466 = arith.constant 0 : index
    %387 = vector.load %arg6[%c6_464, %c0_465, %c0_466] : memref<9x64x64xbf16, #tpu.memory_space<vmem>>, vector<1x64x64xbf16>
    %388 = vector.shape_cast %387 : vector<1x64x64xbf16> to vector<64x64xbf16>
    %cst_467 = arith.constant dense<0.000000e+00> : vector<16x64xf32>
    %389 = tpu.matmul %386, %388, %cst_467 {dimension_numbers = #tpu.dot_dimension_numbers<[1], [0], [0], [1], [0, 0, 1, 1], [], []>} : vector<16x64xbf16>, vector<64x64xbf16>, vector<16x64xf32> -> vector<16x64xf32>
    %390 = arith.addf %384, %389 : vector<16x64xf32>
    %c7_468 = arith.constant 7 : index
    %c0_469 = arith.constant 0 : index
    %c0_470 = arith.constant 0 : index
    %391 = vector.load %arg16[%c7_468, %c0_469, %c0_470] : memref<9x16x64xbf16, #tpu.memory_space<vmem>>, vector<1x16x64xbf16>
    %392 = vector.shape_cast %391 : vector<1x16x64xbf16> to vector<16x64xbf16>
    %c7_471 = arith.constant 7 : index
    %c0_472 = arith.constant 0 : index
    %c0_473 = arith.constant 0 : index
    %393 = vector.load %arg6[%c7_471, %c0_472, %c0_473] : memref<9x64x64xbf16, #tpu.memory_space<vmem>>, vector<1x64x64xbf16>
    %394 = vector.shape_cast %393 : vector<1x64x64xbf16> to vector<64x64xbf16>
    %cst_474 = arith.constant dense<0.000000e+00> : vector<16x64xf32>
    %395 = tpu.matmul %392, %394, %cst_474 {dimension_numbers = #tpu.dot_dimension_numbers<[1], [0], [0], [1], [0, 0, 1, 1], [], []>} : vector<16x64xbf16>, vector<64x64xbf16>, vector<16x64xf32> -> vector<16x64xf32>
    %396 = arith.addf %390, %395 : vector<16x64xf32>
    %c8_475 = arith.constant 8 : index
    %c0_476 = arith.constant 0 : index
    %c0_477 = arith.constant 0 : index
    %397 = vector.load %arg16[%c8_475, %c0_476, %c0_477] : memref<9x16x64xbf16, #tpu.memory_space<vmem>>, vector<1x16x64xbf16>
    %398 = vector.shape_cast %397 : vector<1x16x64xbf16> to vector<16x64xbf16>
    %c8_478 = arith.constant 8 : index
    %c0_479 = arith.constant 0 : index
    %c0_480 = arith.constant 0 : index
    %399 = vector.load %arg6[%c8_478, %c0_479, %c0_480] : memref<9x64x64xbf16, #tpu.memory_space<vmem>>, vector<1x64x64xbf16>
    %400 = vector.shape_cast %399 : vector<1x64x64xbf16> to vector<64x64xbf16>
    %cst_481 = arith.constant dense<0.000000e+00> : vector<16x64xf32>
    %401 = tpu.matmul %398, %400, %cst_481 {dimension_numbers = #tpu.dot_dimension_numbers<[1], [0], [0], [1], [0, 0, 1, 1], [], []>} : vector<16x64xbf16>, vector<64x64xbf16>, vector<16x64xf32> -> vector<16x64xf32>
    %402 = arith.addf %396, %401 : vector<16x64xf32>
    %c0_482 = arith.constant 0 : index
    %c0_483 = arith.constant 0 : index
    %403 = vector.load %arg7[%c0_482, %c0_483] : memref<1x64xf32, #tpu.memory_space<vmem>>, vector<1x64xf32>
    %404 = vector.broadcast %403 : vector<1x64xf32> to vector<16x64xf32>
    %405 = arith.addf %402, %404 : vector<16x64xf32>
    %cst_484 = arith.constant 0.000000e+00 : f32
    %406 = vector.broadcast %cst_484 : f32 to vector<16x64xf32>
    %407 = arith.maximumf %405, %406 : vector<16x64xf32>
    %408 = arith.truncf %407 : vector<16x64xf32> to vector<16x64xbf16>
    %c0_485 = arith.constant 0 : index
    %c0_486 = arith.constant 0 : index
    %409 = vector.load %arg8[%c0_485, %c0_486] : memref<64x512xbf16, #tpu.memory_space<vmem>>, vector<64x512xbf16>
    %cst_487 = arith.constant dense<0.000000e+00> : vector<16x512xf32>
    %410 = tpu.matmul %408, %409, %cst_487 {dimension_numbers = #tpu.dot_dimension_numbers<[1], [0], [0], [1], [0, 0, 1, 1], [], []>} : vector<16x64xbf16>, vector<64x512xbf16>, vector<16x512xf32> -> vector<16x512xf32>
    %c0_488 = arith.constant 0 : index
    %c0_489 = arith.constant 0 : index
    %411 = vector.load %arg9[%c0_488, %c0_489] : memref<1x512xf32, #tpu.memory_space<vmem>>, vector<1x512xf32>
    %412 = vector.broadcast %411 : vector<1x512xf32> to vector<16x512xf32>
    %413 = arith.addf %410, %412 : vector<16x512xf32>
    %cst_490 = arith.constant 0.000000e+00 : f32
    %414 = vector.broadcast %cst_490 : f32 to vector<16x512xf32>
    %415 = arith.maximumf %413, %414 : vector<16x512xf32>
    %416 = arith.truncf %415 : vector<16x512xf32> to vector<16x512xbf16>
    %c0_491 = arith.constant 0 : index
    %c0_492 = arith.constant 0 : index
    %417 = vector.load %arg10[%c0_491, %c0_492] : memref<512x128xbf16, #tpu.memory_space<vmem>>, vector<512x128xbf16>
    %cst_493 = arith.constant dense<0.000000e+00> : vector<16x128xf32>
    %418 = tpu.matmul %416, %417, %cst_493 {dimension_numbers = #tpu.dot_dimension_numbers<[1], [0], [0], [1], [0, 0, 1, 1], [], []>} : vector<16x512xbf16>, vector<512x128xbf16>, vector<16x128xf32> -> vector<16x128xf32>
    %c0_494 = arith.constant 0 : index
    %c0_495 = arith.constant 0 : index
    %419 = vector.load %arg11[%c0_494, %c0_495] : memref<1x128xf32, #tpu.memory_space<vmem>>, vector<1x128xf32>
    %420 = vector.broadcast %419 : vector<1x128xf32> to vector<16x128xf32>
    %421 = arith.addf %418, %420 : vector<16x128xf32>
    %c0_496 = arith.constant 0 : index
    %c0_497 = arith.constant 0 : index
    %422 = vector.load %arg12[%c0_496, %c0_497] : memref<16x128xf32, #tpu.memory_space<vmem>>, vector<16x128xf32>
    tpu.vector_store %arg12[%c0_496, %c0_497], %421 {strides = array<i32>} : memref<16x128xf32, #tpu.memory_space<vmem>>, vector<16x128xf32>,
    %423 = tpu.iota {dimensions = array<i32: 1>} : vector<16x128xi32>
    %c6_i32 = arith.constant 6 : i32
    %424 = vector.broadcast %c6_i32 : i32 to vector<16x128xi32>
    %425 = arith.cmpi slt, %423, %424 : vector<16x128xi32>
    %cst_498 = arith.constant -1.000000e+30 : f32
    %426 = vector.broadcast %cst_498 : f32 to vector<16x128xf32>
    %427 = arith.select %425, %421, %426 : vector<16x128xi1>, vector<16x128xf32>
    %cst_499 = arith.constant dense<0xFF800000> : vector<16xf32>
    %428 = vector.multi_reduction <maximumf>, %427, %cst_499 [1] : vector<16x128xf32> to vector<16xf32>
    %429 = vector.shape_cast %428 : vector<16xf32> to vector<16x1xf32>
    %430 = vector.broadcast %429 : vector<16x1xf32> to vector<16x128xf32>
    %431 = arith.subf %427, %430 : vector<16x128xf32>
    %432 = math.exp %431 : vector<16x128xf32>
    %cst_500 = arith.constant 0.000000e+00 : f32
    %433 = vector.broadcast %cst_500 : f32 to vector<16x128xf32>
    %434 = arith.select %425, %432, %433 : vector<16x128xi1>, vector<16x128xf32>
    %cst_501 = arith.constant dense<0.000000e+00> : vector<16xf32>
    %435 = vector.multi_reduction <add>, %434, %cst_501 [1] : vector<16x128xf32> to vector<16xf32>
    %436 = vector.shape_cast %435 : vector<16xf32> to vector<16x1xf32>
    %437 = math.log %436 : vector<16x1xf32>
    %438 = vector.broadcast %437 : vector<16x1xf32> to vector<16x128xf32>
    %439 = arith.subf %431, %438 : vector<16x128xf32>
    %cst_502 = arith.constant 0.000000e+00 : f32
    %440 = vector.broadcast %cst_502 : f32 to vector<16x128xf32>
    %441 = arith.select %425, %439, %440 : vector<16x128xi1>, vector<16x128xf32>
    %c0_503 = arith.constant 0 : index
    %c0_504 = arith.constant 0 : index
    %442 = vector.load %arg13[%c0_503, %c0_504] : memref<16x128xf32, #tpu.memory_space<vmem>>, vector<16x128xf32>
    tpu.vector_store %arg13[%c0_503, %c0_504], %441 {strides = array<i32>} : memref<16x128xf32, #tpu.memory_space<vmem>>, vector<16x128xf32>,
    return
  }
  func.func @transform_0(%arg0: i32) -> (i32, i32, i32) {
    %c0_i32 = arith.constant 0 : i32
    %c0_i32_0 = arith.constant 0 : i32
    %c0_i32_1 = arith.constant 0 : i32
    return %c0_i32, %arg0, %c0_i32_0 : i32, i32, i32
  }
  func.func @transform_1(%arg0: i32) -> (i32, i32) {
    %c0_i32 = arith.constant 0 : i32
    %c0_i32_0 = arith.constant 0 : i32
    %c0_i32_1 = arith.constant 0 : i32
    return %c0_i32, %c0_i32_0 : i32, i32
  }
  func.func @transform_2(%arg0: i32) -> (i32, i32) {
    %c0_i32 = arith.constant 0 : i32
    %c0_i32_0 = arith.constant 0 : i32
    %c0_i32_1 = arith.constant 0 : i32
    return %c0_i32, %c0_i32_0 : i32, i32
  }
  func.func @transform_3(%arg0: i32) -> (i32, i32) {
    %c0_i32 = arith.constant 0 : i32
    %c0_i32_0 = arith.constant 0 : i32
    %c0_i32_1 = arith.constant 0 : i32
    return %c0_i32, %c0_i32_0 : i32, i32
  }
  func.func @transform_4(%arg0: i32) -> (i32, i32) {
    %c0_i32 = arith.constant 0 : i32
    %c0_i32_0 = arith.constant 0 : i32
    %c0_i32_1 = arith.constant 0 : i32
    return %c0_i32, %c0_i32_0 : i32, i32
  }
  func.func @transform_5(%arg0: i32) -> (i32, i32, i32) {
    %c0_i32 = arith.constant 0 : i32
    %c0_i32_0 = arith.constant 0 : i32
    %c0_i32_1 = arith.constant 0 : i32
    %c0_i32_2 = arith.constant 0 : i32
    return %c0_i32, %c0_i32_0, %c0_i32_1 : i32, i32, i32
  }
  func.func @transform_6(%arg0: i32) -> (i32, i32) {
    %c0_i32 = arith.constant 0 : i32
    %c0_i32_0 = arith.constant 0 : i32
    %c0_i32_1 = arith.constant 0 : i32
    return %c0_i32, %c0_i32_0 : i32, i32
  }
  func.func @transform_7(%arg0: i32) -> (i32, i32) {
    %c0_i32 = arith.constant 0 : i32
    %c0_i32_0 = arith.constant 0 : i32
    %c0_i32_1 = arith.constant 0 : i32
    return %c0_i32, %c0_i32_0 : i32, i32
  }
  func.func @transform_8(%arg0: i32) -> (i32, i32) {
    %c0_i32 = arith.constant 0 : i32
    %c0_i32_0 = arith.constant 0 : i32
    %c0_i32_1 = arith.constant 0 : i32
    return %c0_i32, %c0_i32_0 : i32, i32
  }
  func.func @transform_9(%arg0: i32) -> (i32, i32) {
    %c0_i32 = arith.constant 0 : i32
    %c0_i32_0 = arith.constant 0 : i32
    %c0_i32_1 = arith.constant 0 : i32
    return %c0_i32, %c0_i32_0 : i32, i32
  }
  func.func @transform_10(%arg0: i32) -> (i32, i32) {
    %c0_i32 = arith.constant 0 : i32
    %c0_i32_0 = arith.constant 0 : i32
    %c0_i32_1 = arith.constant 0 : i32
    return %c0_i32, %c0_i32_0 : i32, i32
  }
  func.func @transform_11(%arg0: i32) -> (i32, i32) {
    %c0_i32 = arith.constant 0 : i32
    %c0_i32_0 = arith.constant 0 : i32
    return %arg0, %c0_i32 : i32, i32
  }
  func.func @transform_12(%arg0: i32) -> (i32, i32) {
    %c0_i32 = arith.constant 0 : i32
    %c0_i32_0 = arith.constant 0 : i32
    return %arg0, %c0_i32 : i32, i32
  }
}

</mosaic_0001>

<llo_original>
// kernel: _forward.1
$region0: #{_forward.1}
  #allocation0 [shape = 'u32[]', space=smem, size = 0x4, offset = 0x4, fixed_abs, tag = 'smem constant byte address 0x4 - core index']
  #allocation1 [shape = 'u32[144,128]{1,0:T(1,128)}', space=vmem, size = 0x12000, scoped, tag = 'internal scratch']
  #allocation2 [shape = 'bf16[64,16,32]{2,1,0:T(16,128)(2,1)}', space=vmem, size = 0x40000, scoped, tag = 'scratch operand']
  #allocation3 [shape = 'bf16[9,16,512]{2,1,0:T(16,128)(2,1)}', space=vmem, size = 0x24000, scoped, tag = 'scratch operand']
  #allocation4 [shape = 'bf16[9,16,64]{2,1,0:T(16,128)(2,1)}', space=vmem, size = 0x9000, scoped, tag = 'scratch operand']
  %s0 = inlined_call_operand.vmem [shape: bf16[64,16,256], index: 0, kind: input, shape index: {}]
  %s1 = inlined_call_operand.vmem [shape: bf16[256,32], index: 1, kind: input, shape index: {}]
  %s2 = inlined_call_operand.vmem [shape: f32[1,32], index: 2, kind: input, shape index: {}]
  %s3 = inlined_call_operand.vmem [shape: bf16[512,64], index: 3, kind: input, shape index: {}]
  %s4 = inlined_call_operand.vmem [shape: f32[1,64], index: 4, kind: input, shape index: {}]
  %s5 = inlined_call_operand.vmem [shape: bf16[9,64,64], index: 5, kind: input, shape index: {}]
  %s6 = inlined_call_operand.vmem [shape: f32[1,64], index: 6, kind: input, shape index: {}]
  %s7 = inlined_call_operand.vmem [shape: bf16[64,512], index: 7, kind: input, shape index: {}]
  %s8 = inlined_call_operand.vmem [shape: f32[1,512], index: 8, kind: input, shape index: {}]
  %s9 = inlined_call_operand.vmem [shape: bf16[512,128], index: 9, kind: input, shape index: {}]
  %s10 = inlined_call_operand.vmem [shape: f32[1,128], index: 10, kind: input, shape index: {}]
  %s11 = inlined_call_operand.vmem [shape: f32[16,128], index: 11, kind: output, shape index: {0}]
  %s12 = inlined_call_operand.vmem [shape: f32[16,128], index: 12, kind: output, shape index: {1}]
  %13 = xla_tuple %s11, %s12
  %s14 = sld [smem:[#allocation0]]
  $region62: #{_forward.1} parent=0
    _
  %s16 = ssub.s32 1, %s14
  %s17 = scalar_select 0, %s16, %s14
  // Predicated region
  $region2: #{_forward.1} parent=0 // pred_check
    _
  $region3: #{_forward.1} parent=0 // pred_check_branch
    %19 = sbr.rel (0) target = $region5
  $region4: #{_forward.1} parent=0 // pred_region
    _
  $region5: #{_forward.1} parent=0 // pred_fallthru
    _
  // Predicated region
  $region6: #{_forward.1} parent=0 // pred_check
    _
  $region7: #{_forward.1} parent=0 // pred_check_branch
    %21 = sbr.rel (0) target = $region9
  $region8: #{_forward.1} parent=0 // pred_region
    _
  $region9: #{_forward.1} parent=0 // pred_fallthru
    _
  // Predicated region
  $region10: #{_forward.1} parent=0 // pred_check
    _
  $region11: #{_forward.1} parent=0 // pred_check_branch
    %23 = sbr.rel (0) target = $region13
  $region12: #{_forward.1} parent=0 // pred_region
    _
  $region13: #{_forward.1} parent=0 // pred_fallthru
    _
  // Predicated region
  $region14: #{_forward.1} parent=0 // pred_check
    _
  $region15: #{_forward.1} parent=0 // pred_check_branch
    %25 = sbr.rel (0) target = $region17
  $region16: #{_forward.1} parent=0 // pred_region
    _
  $region17: #{_forward.1} parent=0 // pred_fallthru
    _
  // Predicated region
  $region18: #{_forward.1} parent=0 // pred_check
    _
  $region19: #{_forward.1} parent=0 // pred_check_branch
    %27 = sbr.rel (0) target = $region21
  $region20: #{_forward.1} parent=0 // pred_region
    _
  $region21: #{_forward.1} parent=0 // pred_fallthru
    _
  // Predicated region
  $region22: #{_forward.1} parent=0 // pred_check
    _
  $region23: #{_forward.1} parent=0 // pred_check_branch
    %29 = sbr.rel (0) target = $region25
  $region24: #{_forward.1} parent=0 // pred_region
    _
  $region25: #{_forward.1} parent=0 // pred_fallthru
    _
  // Predicated region
  $region26: #{_forward.1} parent=0 // pred_check
    _
  $region27: #{_forward.1} parent=0 // pred_check_branch
    %31 = sbr.rel (0) target = $region29
  $region28: #{_forward.1} parent=0 // pred_region
    _
  $region29: #{_forward.1} parent=0 // pred_fallthru
    _
  // Predicated region
  $region30: #{_forward.1} parent=0 // pred_check
    _
  $region31: #{_forward.1} parent=0 // pred_check_branch
    %33 = sbr.rel (0) target = $region33
  $region32: #{_forward.1} parent=0 // pred_region
    _
  $region33: #{_forward.1} parent=0 // pred_fallthru
    _
  // Predicated region
  $region34: #{_forward.1} parent=0 // pred_check
    _
  $region35: #{_forward.1} parent=0 // pred_check_branch
    %35 = sbr.rel (0) target = $region37
  $region36: #{_forward.1} parent=0 // pred_region
    _
  $region37: #{_forward.1} parent=0 // pred_fallthru
    _
  // Predicated region
  $region38: #{_forward.1} parent=0 // pred_check
    _
  $region39: #{_forward.1} parent=0 // pred_check_branch
    %37 = sbr.rel (0) target = $region41
  $region40: #{_forward.1} parent=0 // pred_region
    _
  $region41: #{_forward.1} parent=0 // pred_fallthru
    _
  // Predicated region
  $region42: #{_forward.1} parent=0 // pred_check
    _
  $region43: #{_forward.1} parent=0 // pred_check_branch
    %39 = sbr.rel (0) target = $region45
  $region44: #{_forward.1} parent=0 // pred_region
    _
  $region45: #{_forward.1} parent=0 // pred_fallthru
    _
  %v41 = vld [vmem:[%s0] sm:$0xff]
  %v42 = vld [vmem:[%s0 + $0x8] sm:$0xff]
  %v43 = vld [vmem:[%s0 + $0x10] sm:$0xff]
  %v44 = vld [vmem:[%s0 + $0x18] sm:$0xff]
  %v45 = vld [vmem:[%s0 + $0x20] sm:$0xff]
  %v46 = vld [vmem:[%s0 + $0x28] sm:$0xff]
  %v47 = vld [vmem:[%s0 + $0x30] sm:$0xff]
  %v48 = vld [vmem:[%s0 + $0x38] sm:$0xff]
  %v49 = vld [vmem:[%s0 + $0x40] sm:$0xff]
  %v50 = vld [vmem:[%s0 + $0x48] sm:$0xff]
  %v51 = vld [vmem:[%s0 + $0x50] sm:$0xff]
  %v52 = vld [vmem:[%s0 + $0x58] sm:$0xff]
  %v53 = vld [vmem:[%s0 + $0x60] sm:$0xff]
  %v54 = vld [vmem:[%s0 + $0x68] sm:$0xff]
  %v55 = vld [vmem:[%s0 + $0x70] sm:$0xff]
  %v56 = vld [vmem:[%s0 + $0x78] sm:$0xff]
  %v57 = vld [vmem:[%s0 + $0x80] sm:$0xff]
  %v58 = vld [vmem:[%s0 + $0x88] sm:$0xff]
  %v59 = vld [vmem:[%s0 + $0x90] sm:$0xff]
  %v60 = vld [vmem:[%s0 + $0x98] sm:$0xff]
  %v61 = vld [vmem:[%s0 + $0xa0] sm:$0xff]
  %v62 = vld [vmem:[%s0 + $0xa8] sm:$0xff]
  %v63 = vld [vmem:[%s0 + $0xb0] sm:$0xff]
  %v64 = vld [vmem:[%s0 + $0xb8] sm:$0xff]
  %v65 = vld [vmem:[%s0 + $0xc0] sm:$0xff]
  %v66 = vld [vmem:[%s0 + $0xc8] sm:$0xff]
  %v67 = vld [vmem:[%s0 + $0xd0] sm:$0xff]
  %v68 = vld [vmem:[%s0 + $0xd8] sm:$0xff]
  %v69 = vld [vmem:[%s0 + $0xe0] sm:$0xff]
  %v70 = vld [vmem:[%s0 + $0xe8] sm:$0xff]
  %v71 = vld [vmem:[%s0 + $0xf0] sm:$0xff]
  %v72 = vld [vmem:[%s0 + $0xf8] sm:$0xff]
  %v73 = vld [vmem:[%s0 + $0x100] sm:$0xff]
  %v74 = vld [vmem:[%s0 + $0x108] sm:$0xff]
  %v75 = vld [vmem:[%s0 + $0x110] sm:$0xff]
  %v76 = vld [vmem:[%s0 + $0x118] sm:$0xff]
  %v77 = vld [vmem:[%s0 + $0x120] sm:$0xff]
  %v78 = vld [vmem:[%s0 + $0x128] sm:$0xff]
  %v79 = vld [vmem:[%s0 + $0x130] sm:$0xff]
  %v80 = vld [vmem:[%s0 + $0x138] sm:$0xff]
  %v81 = vld [vmem:[%s0 + $0x140] sm:$0xff]
  %v82 = vld [vmem:[%s0 + $0x148] sm:$0xff]
  %v83 = vld [vmem:[%s0 + $0x150] sm:$0xff]
  %v84 = vld [vmem:[%s0 + $0x158] sm:$0xff]
  %v85 = vld [vmem:[%s0 + $0x160] sm:$0xff]
  %v86 = vld [vmem:[%s0 + $0x168] sm:$0xff]
  %v87 = vld [vmem:[%s0 + $0x170] sm:$0xff]
  %v88 = vld [vmem:[%s0 + $0x178] sm:$0xff]
  %v89 = vld [vmem:[%s0 + $0x180] sm:$0xff]
  %v90 = vld [vmem:[%s0 + $0x188] sm:$0xff]
  %v91 = vld [vmem:[%s0 + $0x190] sm:$0xff]
  %v92 = vld [vmem:[%s0 + $0x198] sm:$0xff]
  %v93 = vld [vmem:[%s0 + $0x1a0] sm:$0xff]
  %v94 = vld [vmem:[%s0 + $0x1a8] sm:$0xff]
  %v95 = vld [vmem:[%s0 + $0x1b0] sm:$0xff]
  %v96 = vld [vmem:[%s0 + $0x1b8] sm:$0xff]
  %v97 = vld [vmem:[%s0 + $0x1c0] sm:$0xff]
  %v98 = vld [vmem:[%s0 + $0x1c8] sm:$0xff]
  %v99 = vld [vmem:[%s0 + $0x1d0] sm:$0xff]
  %v100 = vld [vmem:[%s0 + $0x1d8] sm:$0xff]
  %v101 = vld [vmem:[%s0 + $0x1e0] sm:$0xff]
  %v102 = vld [vmem:[%s0 + $0x1e8] sm:$0xff]
  %v103 = vld [vmem:[%s0 + $0x1f0] sm:$0xff]
  %v104 = vld [vmem:[%s0 + $0x1f8] sm:$0xff]
  %v105 = vld [vmem:[%s0 + $0x200] sm:$0xff]
  %v106 = vld [vmem:[%s0 + $0x208] sm:$0xff]
  %v107 = vld [vmem:[%s0 + $0x210] sm:$0xff]
  %v108 = vld [vmem:[%s0 + $0x218] sm:$0xff]
  %v109 = vld [vmem:[%s0 + $0x220] sm:$0xff]
  %v110 = vld [vmem:[%s0 + $0x228] sm:$0xff]
  %v111 = vld [vmem:[%s0 + $0x230] sm:$0xff]
  %v112 = vld [vmem:[%s0 + $0x238] sm:$0xff]
  %v113 = vld [vmem:[%s0 + $0x240] sm:$0xff]
  %v114 = vld [vmem:[%s0 + $0x248] sm:$0xff]
  %v115 = vld [vmem:[%s0 + $0x250] sm:$0xff]
  %v116 = vld [vmem:[%s0 + $0x258] sm:$0xff]
  %v117 = vld [vmem:[%s0 + $0x260] sm:$0xff]
  %v118 = vld [vmem:[%s0 + $0x268] sm:$0xff]
  %v119 = vld [vmem:[%s0 + $0x270] sm:$0xff]
  %v120 = vld [vmem:[%s0 + $0x278] sm:$0xff]
  %v121 = vld [vmem:[%s0 + $0x280] sm:$0xff]
  %v122 = vld [vmem:[%s0 + $0x288] sm:$0xff]
  %v123 = vld [vmem:[%s0 + $0x290] sm:$0xff]
  %v124 = vld [vmem:[%s0 + $0x298] sm:$0xff]
  %v125 = vld [vmem:[%s0 + $0x2a0] sm:$0xff]
  %v126 = vld [vmem:[%s0 + $0x2a8] sm:$0xff]
  %v127 = vld [vmem:[%s0 + $0x2b0] sm:$0xff]
  %v128 = vld [vmem:[%s0 + $0x2b8] sm:$0xff]
  %v129 = vld [vmem:[%s0 + $0x2c0] sm:$0xff]
  %v130 = vld [vmem:[%s0 + $0x2c8] sm:$0xff]
  %v131 = vld [vmem:[%s0 + $0x2d0] sm:$0xff]
  %v132 = vld [vmem:[%s0 + $0x2d8] sm:$0xff]
  %v133 = vld [vmem:[%s0 + $0x2e0] sm:$0xff]
  %v134 = vld [vmem:[%s0 + $0x2e8] sm:$0xff]
  %v135 = vld [vmem:[%s0 + $0x2f0] sm:$0xff]
  %v136 = vld [vmem:[%s0 + $0x2f8] sm:$0xff]
  %v137 = vld [vmem:[%s0 + $0x300] sm:$0xff]
  %v138 = vld [vmem:[%s0 + $0x308] sm:$0xff]
  %v139 = vld [vmem:[%s0 + $0x310] sm:$0xff]
  %v140 = vld [vmem:[%s0 + $0x318] sm:$0xff]
  %v141 = vld [vmem:[%s0 + $0x320] sm:$0xff]
  %v142 = vld [vmem:[%s0 + $0x328] sm:$0xff]
  %v143 = vld [vmem:[%s0 + $0x330] sm:$0xff]
  %v144 = vld [vmem:[%s0 + $0x338] sm:$0xff]
  %v145 = vld [vmem:[%s0 + $0x340] sm:$0xff]
  %v146 = vld [vmem:[%s0 + $0x348] sm:$0xff]
  %v147 = vld [vmem:[%s0 + $0x350] sm:$0xff]
  %v148 = vld [vmem:[%s0 + $0x358] sm:$0xff]
  %v149 = vld [vmem:[%s0 + $0x360] sm:$0xff]
  %v150 = vld [vmem:[%s0 + $0x368] sm:$0xff]
  %v151 = vld [vmem:[%s0 + $0x370] sm:$0xff]
  %v152 = vld [vmem:[%s0 + $0x378] sm:$0xff]
  %v153 = vld [vmem:[%s0 + $0x380] sm:$0xff]
  %v154 = vld [vmem:[%s0 + $0x388] sm:$0xff]
  %v155 = vld [vmem:[%s0 + $0x390] sm:$0xff]
  %v156 = vld [vmem:[%s0 + $0x398] sm:$0xff]
  %v157 = vld [vmem:[%s0 + $0x3a0] sm:$0xff]
  %v158 = vld [vmem:[%s0 + $0x3a8] sm:$0xff]
  %v159 = vld [vmem:[%s0 + $0x3b0] sm:$0xff]
  %v160 = vld [vmem:[%s0 + $0x3b8] sm:$0xff]
  %v161 = vld [vmem:[%s0 + $0x3c0] sm:$0xff]
  %v162 = vld [vmem:[%s0 + $0x3c8] sm:$0xff]
  %v163 = vld [vmem:[%s0 + $0x3d0] sm:$0xff]
  %v164 = vld [vmem:[%s0 + $0x3d8] sm:$0xff]
  %v165 = vld [vmem:[%s0 + $0x3e0] sm:$0xff]
  %v166 = vld [vmem:[%s0 + $0x3e8] sm:$0xff]
  %v167 = vld [vmem:[%s0 + $0x3f0] sm:$0xff]
  %v168 = vld [vmem:[%s0 + $0x3f8] sm:$0xff]
  %v169 = vld [vmem:[%s1] sm:$0xf]
  %v170 = vld [vmem:[%s1 + $0x4] sm:$0xf]
  %v171 = vld [vmem:[%s1 + $0x8] sm:$0xf]
  %v172 = vld [vmem:[%s1 + $0xc] sm:$0xf]
  %v173 = vld [vmem:[%s1 + $0x10] sm:$0xf]
  %v174 = vld [vmem:[%s1 + $0x14] sm:$0xf]
  %v175 = vld [vmem:[%s1 + $0x18] sm:$0xf]
  %v176 = vld [vmem:[%s1 + $0x1c] sm:$0xf]
  %v177 = vld [vmem:[%s1 + $0x20] sm:$0xf]
  %v178 = vld [vmem:[%s1 + $0x24] sm:$0xf]
  %v179 = vld [vmem:[%s1 + $0x28] sm:$0xf]
  %v180 = vld [vmem:[%s1 + $0x2c] sm:$0xf]
  %v181 = vld [vmem:[%s1 + $0x30] sm:$0xf]
  %v182 = vld [vmem:[%s1 + $0x34] sm:$0xf]
  %v183 = vld [vmem:[%s1 + $0x38] sm:$0xf]
  %v184 = vld [vmem:[%s1 + $0x3c] sm:$0xf]
  %v185 = vld [vmem:[%s1 + $0x40] sm:$0xf]
  %v186 = vld [vmem:[%s1 + $0x44] sm:$0xf]
  %v187 = vld [vmem:[%s1 + $0x48] sm:$0xf]
  %v188 = vld [vmem:[%s1 + $0x4c] sm:$0xf]
  %v189 = vld [vmem:[%s1 + $0x50] sm:$0xf]
  %v190 = vld [vmem:[%s1 + $0x54] sm:$0xf]
  %v191 = vld [vmem:[%s1 + $0x58] sm:$0xf]
  %v192 = vld [vmem:[%s1 + $0x5c] sm:$0xf]
  %v193 = vld [vmem:[%s1 + $0x60] sm:$0xf]
  %v194 = vld [vmem:[%s1 + $0x64] sm:$0xf]
  %v195 = vld [vmem:[%s1 + $0x68] sm:$0xf]
  %v196 = vld [vmem:[%s1 + $0x6c] sm:$0xf]
  %v197 = vld [vmem:[%s1 + $0x70] sm:$0xf]
  %v198 = vld [vmem:[%s1 + $0x74] sm:$0xf]
  %v199 = vld [vmem:[%s1 + $0x78] sm:$0xf]
  %v200 = vld [vmem:[%s1 + $0x7c] sm:$0xf]
  %v201 = vld [vmem:[%s2] sm:$0x1]
  %v203 = vlaneseq
  %v204 = vshrl.u32 %v203, 7
  %v205 = vsub.s32 0, %v204
  %v206 = vrot.slane %v201, %v205
  %v336 = vunpack.c.l.b16 %v41
  %v337 = vunpack.c.h.b16 %v41
  %v338 = vunpack.c.l.b16 %v42
  %v339 = vunpack.c.h.b16 %v42
  %v340 = vunpack.c.l.b16 %v43
  %v341 = vunpack.c.h.b16 %v43
  %v342 = vunpack.c.l.b16 %v44
  %v343 = vunpack.c.h.b16 %v44
  %v344 = vunpack.c.l.b16 %v45
  %v345 = vunpack.c.h.b16 %v45
  %v346 = vunpack.c.l.b16 %v46
  %v347 = vunpack.c.h.b16 %v46
  %v348 = vunpack.c.l.b16 %v47
  %v349 = vunpack.c.h.b16 %v47
  %v350 = vunpack.c.l.b16 %v48
  %v351 = vunpack.c.h.b16 %v48
  %v352 = vunpack.c.l.b16 %v49
  %v353 = vunpack.c.h.b16 %v49
  %v354 = vunpack.c.l.b16 %v50
  %v355 = vunpack.c.h.b16 %v50
  %v356 = vunpack.c.l.b16 %v51
  %v357 = vunpack.c.h.b16 %v51
  %v358 = vunpack.c.l.b16 %v52
  %v359 = vunpack.c.h.b16 %v52
  %v360 = vunpack.c.l.b16 %v53
  %v361 = vunpack.c.h.b16 %v53
  %v362 = vunpack.c.l.b16 %v54
  %v363 = vunpack.c.h.b16 %v54
  %v364 = vunpack.c.l.b16 %v55
  %v365 = vunpack.c.h.b16 %v55
  %v366 = vunpack.c.l.b16 %v56
  %v367 = vunpack.c.h.b16 %v56
  %v368 = vunpack.c.l.b16 %v57
  %v369 = vunpack.c.h.b16 %v57
  %v370 = vunpack.c.l.b16 %v58
  %v371 = vunpack.c.h.b16 %v58
  %v372 = vunpack.c.l.b16 %v59
  %v373 = vunpack.c.h.b16 %v59
  %v374 = vunpack.c.l.b16 %v60
  %v375 = vunpack.c.h.b16 %v60
  %v376 = vunpack.c.l.b16 %v61
  %v377 = vunpack.c.h.b16 %v61
  %v378 = vunpack.c.l.b16 %v62
  %v379 = vunpack.c.h.b16 %v62
  %v380 = vunpack.c.l.b16 %v63
  %v381 = vunpack.c.h.b16 %v63
  %v382 = vunpack.c.l.b16 %v64
  %v383 = vunpack.c.h.b16 %v64
  %v384 = vunpack.c.l.b16 %v65
  %v385 = vunpack.c.h.b16 %v65
  %v386 = vunpack.c.l.b16 %v66
  %v387 = vunpack.c.h.b16 %v66
  %v388 = vunpack.c.l.b16 %v67
  %v389 = vunpack.c.h.b16 %v67
  %v390 = vunpack.c.l.b16 %v68
  %v391 = vunpack.c.h.b16 %v68
  %v392 = vunpack.c.l.b16 %v69
  %v393 = vunpack.c.h.b16 %v69
  %v394 = vunpack.c.l.b16 %v70
  %v395 = vunpack.c.h.b16 %v70
  %v396 = vunpack.c.l.b16 %v71
  %v397 = vunpack.c.h.b16 %v71
  %v398 = vunpack.c.l.b16 %v72
  %v399 = vunpack.c.h.b16 %v72
  %v400 = vunpack.c.l.b16 %v73
  %v401 = vunpack.c.h.b16 %v73
  %v402 = vunpack.c.l.b16 %v74
  %v403 = vunpack.c.h.b16 %v74
  %v404 = vunpack.c.l.b16 %v75
  %v405 = vunpack.c.h.b16 %v75
  %v406 = vunpack.c.l.b16 %v76
  %v407 = vunpack.c.h.b16 %v76
  %v408 = vunpack.c.l.b16 %v77
  %v409 = vunpack.c.h.b16 %v77
  %v410 = vunpack.c.l.b16 %v78
  %v411 = vunpack.c.h.b16 %v78
  %v412 = vunpack.c.l.b16 %v79
  %v413 = vunpack.c.h.b16 %v79
  %v414 = vunpack.c.l.b16 %v80
  %v415 = vunpack.c.h.b16 %v80
  %v416 = vunpack.c.l.b16 %v81
  %v417 = vunpack.c.h.b16 %v81
  %v418 = vunpack.c.l.b16 %v82
  %v419 = vunpack.c.h.b16 %v82
  %v420 = vunpack.c.l.b16 %v83
  %v421 = vunpack.c.h.b16 %v83
  %v422 = vunpack.c.l.b16 %v84
  %v423 = vunpack.c.h.b16 %v84
  %v424 = vunpack.c.l.b16 %v85
  %v425 = vunpack.c.h.b16 %v85
  %v426 = vunpack.c.l.b16 %v86
  %v427 = vunpack.c.h.b16 %v86
  %v428 = vunpack.c.l.b16 %v87
  %v429 = vunpack.c.h.b16 %v87
  %v430 = vunpack.c.l.b16 %v88
  %v431 = vunpack.c.h.b16 %v88
  %v432 = vunpack.c.l.b16 %v89
  %v433 = vunpack.c.h.b16 %v89
  %v434 = vunpack.c.l.b16 %v90
  %v435 = vunpack.c.h.b16 %v90
  %v436 = vunpack.c.l.b16 %v91
  %v437 = vunpack.c.h.b16 %v91
  %v438 = vunpack.c.l.b16 %v92
  %v439 = vunpack.c.h.b16 %v92
  %v440 = vunpack.c.l.b16 %v93
  %v441 = vunpack.c.h.b16 %v93
  %v442 = vunpack.c.l.b16 %v94
  %v443 = vunpack.c.h.b16 %v94
  %v444 = vunpack.c.l.b16 %v95
  %v445 = vunpack.c.h.b16 %v95
  %v446 = vunpack.c.l.b16 %v96
  %v447 = vunpack.c.h.b16 %v96
  %v448 = vunpack.c.l.b16 %v97
  %v449 = vunpack.c.h.b16 %v97
  %v450 = vunpack.c.l.b16 %v98
  %v451 = vunpack.c.h.b16 %v98
  %v452 = vunpack.c.l.b16 %v99
  %v453 = vunpack.c.h.b16 %v99
  %v454 = vunpack.c.l.b16 %v100
  %v455 = vunpack.c.h.b16 %v100
  %v456 = vunpack.c.l.b16 %v101
  %v457 = vunpack.c.h.b16 %v101
  %v458 = vunpack.c.l.b16 %v102
  %v459 = vunpack.c.h.b16 %v102
  %v460 = vunpack.c.l.b16 %v103
  %v461 = vunpack.c.h.b16 %v103
  %v462 = vunpack.c.l.b16 %v104
  %v463 = vunpack.c.h.b16 %v104
  %v464 = vunpack.c.l.b16 %v105
  %v465 = vunpack.c.h.b16 %v105
  %v466 = vunpack.c.l.b16 %v106
  %v467 = vunpack.c.h.b16 %v106
  %v468 = vunpack.c.l.b16 %v107
  %v469 = vunpack.c.h.b16 %v107
  %v470 = vunpack.c.l.b16 %v108
  %v471 = vunpack.c.h.b16 %v108
  %v472 = vunpack.c.l.b16 %v109
  %v473 = vunpack.c.h.b16 %v109
  %v474 = vunpack.c.l.b16 %v110
  %v475 = vunpack.c.h.b16 %v110
  %v476 = vunpack.c.l.b16 %v111
  %v477 = vunpack.c.h.b16 %v111
  %v478 = vunpack.c.l.b16 %v112
  %v479 = vunpack.c.h.b16 %v112
  %v480 = vunpack.c.l.b16 %v113
  %v481 = vunpack.c.h.b16 %v113
  %v482 = vunpack.c.l.b16 %v114
  %v483 = vunpack.c.h.b16 %v114
  %v484 = vunpack.c.l.b16 %v115
  %v485 = vunpack.c.h.b16 %v115
  %v486 = vunpack.c.l.b16 %v116
  %v487 = vunpack.c.h.b16 %v116
  %v488 = vunpack.c.l.b16 %v117
  %v489 = vunpack.c.h.b16 %v117
  %v490 = vunpack.c.l.b16 %v118
  %v491 = vunpack.c.h.b16 %v118
  %v492 = vunpack.c.l.b16 %v119
  %v493 = vunpack.c.h.b16 %v119
  %v494 = vunpack.c.l.b16 %v120
  %v495 = vunpack.c.h.b16 %v120
  %v496 = vunpack.c.l.b16 %v121
  %v497 = vunpack.c.h.b16 %v121
  %v498 = vunpack.c.l.b16 %v122
  %v499 = vunpack.c.h.b16 %v122
  %v500 = vunpack.c.l.b16 %v123
  %v501 = vunpack.c.h.b16 %v123
  %v502 = vunpack.c.l.b16 %v124
  %v503 = vunpack.c.h.b16 %v124
  %v504 = vunpack.c.l.b16 %v125
  %v505 = vunpack.c.h.b16 %v125
  %v506 = vunpack.c.l.b16 %v126
  %v507 = vunpack.c.h.b16 %v126
  %v508 = vunpack.c.l.b16 %v127
  %v509 = vunpack.c.h.b16 %v127
  %v510 = vunpack.c.l.b16 %v128
  %v511 = vunpack.c.h.b16 %v128
  %v512 = vunpack.c.l.b16 %v129
  %v513 = vunpack.c.h.b16 %v129
  %v514 = vunpack.c.l.b16 %v130
  %v515 = vunpack.c.h.b16 %v130
  %v516 = vunpack.c.l.b16 %v131
  %v517 = vunpack.c.h.b16 %v131
  %v518 = vunpack.c.l.b16 %v132
  %v519 = vunpack.c.h.b16 %v132
  %v520 = vunpack.c.l.b16 %v133
  %v521 = vunpack.c.h.b16 %v133
  %v522 = vunpack.c.l.b16 %v134
  %v523 = vunpack.c.h.b16 %v134
  %v524 = vunpack.c.l.b16 %v135
  %v525 = vunpack.c.h.b16 %v135
  %v526 = vunpack.c.l.b16 %v136
  %v527 = vunpack.c.h.b16 %v136
  %v528 = vunpack.c.l.b16 %v137
  %v529 = vunpack.c.h.b16 %v137
  %v530 = vunpack.c.l.b16 %v138
  %v531 = vunpack.c.h.b16 %v138
  %v532 = vunpack.c.l.b16 %v139
  %v533 = vunpack.c.h.b16 %v139
  %v534 = vunpack.c.l.b16 %v140
  %v535 = vunpack.c.h.b16 %v140
  %v536 = vunpack.c.l.b16 %v141
  %v537 = vunpack.c.h.b16 %v141
  %v538 = vunpack.c.l.b16 %v142
  %v539 = vunpack.c.h.b16 %v142
  %v540 = vunpack.c.l.b16 %v143
  %v541 = vunpack.c.h.b16 %v143
  %v542 = vunpack.c.l.b16 %v144
  %v543 = vunpack.c.h.b16 %v144
  %v544 = vunpack.c.l.b16 %v145
  %v545 = vunpack.c.h.b16 %v145
  %v546 = vunpack.c.l.b16 %v146
  %v547 = vunpack.c.h.b16 %v146
  %v548 = vunpack.c.l.b16 %v147
  %v549 = vunpack.c.h.b16 %v147
  %v550 = vunpack.c.l.b16 %v148
  %v551 = vunpack.c.h.b16 %v148
  %v552 = vunpack.c.l.b16 %v149
  %v553 = vunpack.c.h.b16 %v149
  %v554 = vunpack.c.l.b16 %v150
  %v555 = vunpack.c.h.b16 %v150
  %v556 = vunpack.c.l.b16 %v151
  %v557 = vunpack.c.h.b16 %v151
  %v558 = vunpack.c.l.b16 %v152
  %v559 = vunpack.c.h.b16 %v152
  %v560 = vunpack.c.l.b16 %v153
  %v561 = vunpack.c.h.b16 %v153
  %v562 = vunpack.c.l.b16 %v154
  %v563 = vunpack.c.h.b16 %v154
  %v564 = vunpack.c.l.b16 %v155
  %v565 = vunpack.c.h.b16 %v155
  %v566 = vunpack.c.l.b16 %v156
  %v567 = vunpack.c.h.b16 %v156
  %v568 = vunpack.c.l.b16 %v157
  %v569 = vunpack.c.h.b16 %v157
  %v570 = vunpack.c.l.b16 %v158
  %v571 = vunpack.c.h.b16 %v158
  %v572 = vunpack.c.l.b16 %v159
  %v573 = vunpack.c.h.b16 %v159
  %v574 = vunpack.c.l.b16 %v160
  %v575 = vunpack.c.h.b16 %v160
  %v576 = vunpack.c.l.b16 %v161
  %v577 = vunpack.c.h.b16 %v161
  %v578 = vunpack.c.l.b16 %v162
  %v579 = vunpack.c.h.b16 %v162
  %v580 = vunpack.c.l.b16 %v163
  %v581 = vunpack.c.h.b16 %v163
  %v582 = vunpack.c.l.b16 %v164
  %v583 = vunpack.c.h.b16 %v164
  %v584 = vunpack.c.l.b16 %v165
  %v585 = vunpack.c.h.b16 %v165
  %v586 = vunpack.c.l.b16 %v166
  %v587 = vunpack.c.h.b16 %v166
  %v588 = vunpack.c.l.b16 %v167
  %v589 = vunpack.c.h.b16 %v167
  %v590 = vunpack.c.l.b16 %v168
  %v591 = vunpack.c.h.b16 %v168
  %v592 = vpack.c.b16 %v338, %v336
  %v593 = vpack.c.b16 %v339, %v337
  %v594 = vpack.c.b16 %v342, %v340
  %v595 = vpack.c.b16 %v343, %v341
  %v596 = vpack.c.b16 %v346, %v344
  %v597 = vpack.c.b16 %v347, %v345
  %v598 = vpack.c.b16 %v350, %v348
  %v599 = vpack.c.b16 %v351, %v349
  %v600 = vpack.c.b16 %v354, %v352
  %v601 = vpack.c.b16 %v355, %v353
  %v602 = vpack.c.b16 %v358, %v356
  %v603 = vpack.c.b16 %v359, %v357
  %v604 = vpack.c.b16 %v362, %v360
  %v605 = vpack.c.b16 %v363, %v361
  %v606 = vpack.c.b16 %v366, %v364
  %v607 = vpack.c.b16 %v367, %v365
  %v608 = vpack.c.b16 %v370, %v368
  %v609 = vpack.c.b16 %v371, %v369
  %v610 = vpack.c.b16 %v374, %v372
  %v611 = vpack.c.b16 %v375, %v373
  %v612 = vpack.c.b16 %v378, %v376
  %v613 = vpack.c.b16 %v379, %v377
  %v614 = vpack.c.b16 %v382, %v380
  %v615 = vpack.c.b16 %v383, %v381
  %v616 = vpack.c.b16 %v386, %v384
  %v617 = vpack.c.b16 %v387, %v385
  %v618 = vpack.c.b16 %v390, %v388
  %v619 = vpack.c.b16 %v391, %v389
  %v620 = vpack.c.b16 %v394, %v392
  %v621 = vpack.c.b16 %v395, %v393
  %v622 = vpack.c.b16 %v398, %v396
  %v623 = vpack.c.b16 %v399, %v397
  %v624 = vpack.c.b16 %v402, %v400
  %v625 = vpack.c.b16 %v403, %v401
  %v626 = vpack.c.b16 %v406, %v404
  %v627 = vpack.c.b16 %v407, %v405
  %v628 = vpack.c.b16 %v410, %v408
  %v629 = vpack.c.b16 %v411, %v409
  %v630 = vpack.c.b16 %v414, %v412
  %v631 = vpack.c.b16 %v415, %v413
  %v632 = vpack.c.b16 %v418, %v416
  %v633 = vpack.c.b16 %v419, %v417
  %v634 = vpack.c.b16 %v422, %v420
  %v635 = vpack.c.b16 %v423, %v421
  %v636 = vpack.c.b16 %v426, %v424
  %v637 = vpack.c.b16 %v427, %v425
  %v638 = vpack.c.b16 %v430, %v428
  %v639 = vpack.c.b16 %v431, %v429
  %v640 = vpack.c.b16 %v434, %v432
  %v641 = vpack.c.b16 %v435, %v433
  %v642 = vpack.c.b16 %v438, %v436
  %v643 = vpack.c.b16 %v439, %v437
  %v644 = vpack.c.b16 %v442, %v440
  %v645 = vpack.c.b16 %v443, %v441
  %v646 = vpack.c.b16 %v446, %v444
  %v647 = vpack.c.b16 %v447, %v445
  %v648 = vpack.c.b16 %v450, %v448
  %v649 = vpack.c.b16 %v451, %v449
  %v650 = vpack.c.b16 %v454, %v452
  %v651 = vpack.c.b16 %v455, %v453
  %v652 = vpack.c.b16 %v458, %v456
  %v653 = vpack.c.b16 %v459, %v457
  %v654 = vpack.c.b16 %v462, %v460
  %v655 = vpack.c.b16 %v463, %v461
  %v656 = vpack.c.b16 %v466, %v464
  %v657 = vpack.c.b16 %v467, %v465
  %v658 = vpack.c.b16 %v470, %v468
  %v659 = vpack.c.b16 %v471, %v469
  %v660 = vpack.c.b16 %v474, %v472
  %v661 = vpack.c.b16 %v475, %v473
  %v662 = vpack.c.b16 %v478, %v476
  %v663 = vpack.c.b16 %v479, %v477
  %v664 = vpack.c.b16 %v482, %v480
  %v665 = vpack.c.b16 %v483, %v481
  %v666 = vpack.c.b16 %v486, %v484
  %v667 = vpack.c.b16 %v487, %v485
  %v668 = vpack.c.b16 %v490, %v488
  %v669 = vpack.c.b16 %v491, %v489
  %v670 = vpack.c.b16 %v494, %v492
  %v671 = vpack.c.b16 %v495, %v493
  %v672 = vpack.c.b16 %v498, %v496
  %v673 = vpack.c.b16 %v499, %v497
  %v674 = vpack.c.b16 %v502, %v500
  %v675 = vpack.c.b16 %v503, %v501
  %v676 = vpack.c.b16 %v506, %v504
  %v677 = vpack.c.b16 %v507, %v505
  %v678 = vpack.c.b16 %v510, %v508
  %v679 = vpack.c.b16 %v511, %v509
  %v680 = vpack.c.b16 %v514, %v512
  %v681 = vpack.c.b16 %v515, %v513
  %v682 = vpack.c.b16 %v518, %v516
  %v683 = vpack.c.b16 %v519, %v517
  %v684 = vpack.c.b16 %v522, %v520
  %v685 = vpack.c.b16 %v523, %v521
  %v686 = vpack.c.b16 %v526, %v524
  %v687 = vpack.c.b16 %v527, %v525
  %v688 = vpack.c.b16 %v530, %v528
  %v689 = vpack.c.b16 %v531, %v529
  %v690 = vpack.c.b16 %v534, %v532
  %v691 = vpack.c.b16 %v535, %v533
  %v692 = vpack.c.b16 %v538, %v536
  %v693 = vpack.c.b16 %v539, %v537
  %v694 = vpack.c.b16 %v542, %v540
  %v695 = vpack.c.b16 %v543, %v541
  %v696 = vpack.c.b16 %v546, %v544
  %v697 = vpack.c.b16 %v547, %v545
  %v698 = vpack.c.b16 %v550, %v548
  %v699 = vpack.c.b16 %v551, %v549
  %v700 = vpack.c.b16 %v554, %v552
  %v701 = vpack.c.b16 %v555, %v553
  %v702 = vpack.c.b16 %v558, %v556
  %v703 = vpack.c.b16 %v559, %v557
  %v704 = vpack.c.b16 %v562, %v560
  %v705 = vpack.c.b16 %v563, %v561
  %v706 = vpack.c.b16 %v566, %v564
  %v707 = vpack.c.b16 %v567, %v565
  %v708 = vpack.c.b16 %v570, %v568
  %v709 = vpack.c.b16 %v571, %v569
  %v710 = vpack.c.b16 %v574, %v572
  %v711 = vpack.c.b16 %v575, %v573
  %v712 = vpack.c.b16 %v578, %v576
  %v713 = vpack.c.b16 %v579, %v577
  %v714 = vpack.c.b16 %v582, %v580
  %v715 = vpack.c.b16 %v583, %v581
  %v716 = vpack.c.b16 %v586, %v584
  %v717 = vpack.c.b16 %v587, %v585
  %v718 = vpack.c.b16 %v590, %v588
  %v719 = vpack.c.b16 %v591, %v589
  %v880 = vunpack.c.l.b16 %v169
  %v881 = vunpack.c.l.b16 %v170
  %v882 = vunpack.c.l.b16 %v171
  %v883 = vunpack.c.l.b16 %v172
  %v884 = vunpack.c.l.b16 %v173
  %v885 = vunpack.c.l.b16 %v174
  %v886 = vunpack.c.l.b16 %v175
  %v887 = vunpack.c.l.b16 %v176
  %v888 = vunpack.c.l.b16 %v177
  %v889 = vunpack.c.l.b16 %v178
  %v890 = vunpack.c.l.b16 %v179
  %v891 = vunpack.c.l.b16 %v180
  %v892 = vunpack.c.l.b16 %v181
  %v893 = vunpack.c.l.b16 %v182
  %v894 = vunpack.c.l.b16 %v183
  %v895 = vunpack.c.l.b16 %v184
  %v896 = vunpack.c.l.b16 %v185
  %v897 = vunpack.c.l.b16 %v186
  %v898 = vunpack.c.l.b16 %v187
  %v899 = vunpack.c.l.b16 %v188
  %v900 = vunpack.c.l.b16 %v189
  %v901 = vunpack.c.l.b16 %v190
  %v902 = vunpack.c.l.b16 %v191
  %v903 = vunpack.c.l.b16 %v192
  %v904 = vunpack.c.l.b16 %v193
  %v905 = vunpack.c.l.b16 %v194
  %v906 = vunpack.c.l.b16 %v195
  %v907 = vunpack.c.l.b16 %v196
  %v908 = vunpack.c.l.b16 %v197
  %v909 = vunpack.c.l.b16 %v198
  %v910 = vunpack.c.l.b16 %v199
  %v911 = vunpack.c.l.b16 %v200
  %v912 = vpack.c.b16 %v881, %v880
  %v913 = vpack.c.b16 %v883, %v882
  %v914 = vpack.c.b16 %v885, %v884
  %v915 = vpack.c.b16 %v887, %v886
  %v916 = vpack.c.b16 %v889, %v888
  %v917 = vpack.c.b16 %v891, %v890
  %v918 = vpack.c.b16 %v893, %v892
  %v919 = vpack.c.b16 %v895, %v894
  %v920 = vpack.c.b16 %v897, %v896
  %v921 = vpack.c.b16 %v899, %v898
  %v922 = vpack.c.b16 %v901, %v900
  %v923 = vpack.c.b16 %v903, %v902
  %v924 = vpack.c.b16 %v905, %v904
  %v925 = vpack.c.b16 %v907, %v906
  %v926 = vpack.c.b16 %v909, %v908
  %v927 = vpack.c.b16 %v911, %v910
  %944 = vmatprep.subr.bf16.mxu0 0
  %945 = vmatpush1.bf16.msra.mxu0 %v912
  %946 = vmatprep.subr.bf16.mxu0 0
  %947 = vmatpush1.bf16.msra.mxu0 %v913
  %948 = vmatprep.subr.bf16.mxu0 0
  %949 = vmatpush1.bf16.msra.mxu0 %v914
  %950 = vmatprep.subr.bf16.mxu0 0
  %951 = vmatpush1.bf16.msra.mxu0 %v915
  %952 = vmatprep.subr.bf16.mxu0 0
  %953 = vmatpush1.bf16.msra.mxu0 %v916
  %954 = vmatprep.subr.bf16.mxu0 0
  %955 = vmatpush1.bf16.msra.mxu0 %v917
  %956 = vmatprep.subr.bf16.mxu0 0
  %957 = vmatpush1.bf16.msra.mxu0 %v918
  %958 = vmatprep.subr.bf16.mxu0 0
  %959 = vmatpush1.bf16.msra.mxu0 %v919
  %960 = vmatprep.subr.bf16.mxu0 0
  %961 = vmatpush1.bf16.msra.mxu0 %v920
  %962 = vmatprep.subr.bf16.mxu0 0
  %963 = vmatpush1.bf16.msra.mxu0 %v921
  %964 = vmatprep.subr.bf16.mxu0 0
  %965 = vmatpush1.bf16.msra.mxu0 %v922
  %966 = vmatprep.subr.bf16.mxu0 0
  %967 = vmatpush1.bf16.msra.mxu0 %v923
  %968 = vmatprep.subr.bf16.mxu0 0
  %969 = vmatpush1.bf16.msra.mxu0 %v924
  %970 = vmatprep.subr.bf16.mxu0 0
  %971 = vmatpush1.bf16.msra.mxu0 %v925
  %972 = vmatprep.subr.bf16.mxu0 0
  %973 = vmatpush1.bf16.msra.mxu0 %v926
  %974 = vmatprep.subr.bf16.mxu0 0
  %975 = vmatpush1.bf16.msra.mxu0 %v927
  %976 = vmatprep.mubr.bf16.mxu0 %v593
  %977 = vmatmul.mubr.bf16.gmra.mrb[0].mxu0 %v592
  %v978 = vpop.f32.mrb[0].mxu0
  %v979 = vadd.f32 %v206, %v978
  %v980 = vpop.f32.mrb[0].mxu0
  %v981 = vpop.f32.mrb[0].mxu0
  %v982 = vadd.f32 %v206, %v981
  %v983 = vpop.f32.mrb[0].mxu0
  %984 = vmatprep.mubr.bf16.mxu0 %v595
  %985 = vmatmul.mubr.bf16.gmra.mrb[0].mxu0 %v594
  %v986 = vpop.f32.mrb[0].mxu0
  %v987 = vadd.f32 %v206, %v986
  %v988 = vpop.f32.mrb[0].mxu0
  %v989 = vpop.f32.mrb[0].mxu0
  %v990 = vadd.f32 %v206, %v989
  %v991 = vpop.f32.mrb[0].mxu0
  %992 = vmatprep.mubr.bf16.mxu0 %v597
  %993 = vmatmul.mubr.bf16.gmra.mrb[0].mxu0 %v596
  %v994 = vpop.f32.mrb[0].mxu0
  %v995 = vadd.f32 %v206, %v994
  %v996 = vpop.f32.mrb[0].mxu0
  %v997 = vpop.f32.mrb[0].mxu0
  %v998 = vadd.f32 %v206, %v997
  %v999 = vpop.f32.mrb[0].mxu0
  %1000 = vmatprep.mubr.bf16.mxu0 %v599
  %1001 = vmatmul.mubr.bf16.gmra.mrb[0].mxu0 %v598
  %v1002 = vpop.f32.mrb[0].mxu0
  %v1003 = vadd.f32 %v206, %v1002
  %v1004 = vpop.f32.mrb[0].mxu0
  %v1005 = vpop.f32.mrb[0].mxu0
  %v1006 = vadd.f32 %v206, %v1005
  %v1007 = vpop.f32.mrb[0].mxu0
  %1008 = vmatprep.mubr.bf16.mxu0 %v601
  %1009 = vmatmul.mubr.bf16.gmra.mrb[0].mxu0 %v600
  %v1010 = vpop.f32.mrb[0].mxu0
  %v1011 = vadd.f32 %v206, %v1010
  %v1012 = vpop.f32.mrb[0].mxu0
  %v1013 = vpop.f32.mrb[0].mxu0
  %v1014 = vadd.f32 %v206, %v1013
  %v1015 = vpop.f32.mrb[0].mxu0
  %1016 = vmatprep.mubr.bf16.mxu0 %v603
  %1017 = vmatmul.mubr.bf16.gmra.mrb[0].mxu0 %v602
  %v1018 = vpop.f32.mrb[0].mxu0
  %v1019 = vadd.f32 %v206, %v1018
  %v1020 = vpop.f32.mrb[0].mxu0
  %v1021 = vpop.f32.mrb[0].mxu0
  %v1022 = vadd.f32 %v206, %v1021
  %v1023 = vpop.f32.mrb[0].mxu0
  %1024 = vmatprep.mubr.bf16.mxu0 %v605
  %1025 = vmatmul.mubr.bf16.gmra.mrb[0].mxu0 %v604
  %v1026 = vpop.f32.mrb[0].mxu0
  %v1027 = vadd.f32 %v206, %v1026
  %v1028 = vpop.f32.mrb[0].mxu0
  %v1029 = vpop.f32.mrb[0].mxu0
  %v1030 = vadd.f32 %v206, %v1029
  %v1031 = vpop.f32.mrb[0].mxu0
  %1032 = vmatprep.mubr.bf16.mxu0 %v607
  %1033 = vmatmul.mubr.bf16.gmra.mrb[0].mxu0 %v606
  %v1034 = vpop.f32.mrb[0].mxu0
  %v1035 = vadd.f32 %v206, %v1034
  %v1036 = vpop.f32.mrb[0].mxu0
  %v1037 = vpop.f32.mrb[0].mxu0
  %v1038 = vadd.f32 %v206, %v1037
  %v1039 = vpop.f32.mrb[0].mxu0
  %1040 = vmatprep.mubr.bf16.mxu0 %v609
  %1041 = vmatmul.mubr.bf16.gmra.mrb[0].mxu0 %v608
  %v1042 = vpop.f32.mrb[0].mxu0
  %v1043 = vadd.f32 %v206, %v1042
  %v1044 = vpop.f32.mrb[0].mxu0
  %v1045 = vpop.f32.mrb[0].mxu0
  %v1046 = vadd.f32 %v206, %v1045
  %v1047 = vpop.f32.mrb[0].mxu0
  %1048 = vmatprep.mubr.bf16.mxu0 %v611
  %1049 = vmatmul.mubr.bf16.gmra.mrb[0].mxu0 %v610
  %v1050 = vpop.f32.mrb[0].mxu0
  %v1051 = vadd.f32 %v206, %v1050
  %v1052 = vpop.f32.mrb[0].mxu0
  %v1053 = vpop.f32.mrb[0].mxu0
  %v1054 = vadd.f32 %v206, %v1053
  %v1055 = vpop.f32.mrb[0].mxu0
  %1056 = vmatprep.mubr.bf16.mxu0 %v613
  %1057 = vmatmul.mubr.bf16.gmra.mrb[0].mxu0 %v612
  %v1058 = vpop.f32.mrb[0].mxu0
  %v1059 = vadd.f32 %v206, %v1058
  %v1060 = vpop.f32.mrb[0].mxu0
  %v1061 = vpop.f32.mrb[0].mxu0
  %v1062 = vadd.f32 %v206, %v1061
  %v1063 = vpop.f32.mrb[0].mxu0
  %1064 = vmatprep.mubr.bf16.mxu0 %v615
  %1065 = vmatmul.mubr.bf16.gmra.mrb[0].mxu0 %v614
  %v1066 = vpop.f32.mrb[0].mxu0
  %v1067 = vadd.f32 %v206, %v1066
  %v1068 = vpop.f32.mrb[0].mxu0
  %v1069 = vpop.f32.mrb[0].mxu0
  %v1070 = vadd.f32 %v206, %v1069
  %v1071 = vpop.f32.mrb[0].mxu0
  %1072 = vmatprep.mubr.bf16.mxu0 %v617
  %1073 = vmatmul.mubr.bf16.gmra.mrb[0].mxu0 %v616
  %v1074 = vpop.f32.mrb[0].mxu0
  %v1075 = vadd.f32 %v206, %v1074
  %v1076 = vpop.f32.mrb[0].mxu0
  %v1077 = vpop.f32.mrb[0].mxu0
  %v1078 = vadd.f32 %v206, %v1077
  %v1079 = vpop.f32.mrb[0].mxu0
  %1080 = vmatprep.mubr.bf16.mxu0 %v619
  %1081 = vmatmul.mubr.bf16.gmra.mrb[0].mxu0 %v618
  %v1082 = vpop.f32.mrb[0].mxu0
  %v1083 = vadd.f32 %v206, %v1082
  %v1084 = vpop.f32.mrb[0].mxu0
  %v1085 = vpop.f32.mrb[0].mxu0
  %v1086 = vadd.f32 %v206, %v1085
  %v1087 = vpop.f32.mrb[0].mxu0
  %1088 = vmatprep.mubr.bf16.mxu0 %v621
  %1089 = vmatmul.mubr.bf16.gmra.mrb[0].mxu0 %v620
  %v1090 = vpop.f32.mrb[0].mxu0
  %v1091 = vadd.f32 %v206, %v1090
  %v1092 = vpop.f32.mrb[0].mxu0
  %v1093 = vpop.f32.mrb[0].mxu0
  %v1094 = vadd.f32 %v206, %v1093
  %v1095 = vpop.f32.mrb[0].mxu0
  %1096 = vmatprep.mubr.bf16.mxu0 %v623
  %1097 = vmatmul.mubr.bf16.gmra.mrb[0].mxu0 %v622
  %v1098 = vpop.f32.mrb[0].mxu0
  %v1099 = vadd.f32 %v206, %v1098
  %v1100 = vpop.f32.mrb[0].mxu0
  %v1101 = vpop.f32.mrb[0].mxu0
  %v1102 = vadd.f32 %v206, %v1101
  %v1103 = vpop.f32.mrb[0].mxu0
  %1104 = vmatprep.mubr.bf16.mxu0 %v625
  %1105 = vmatmul.mubr.bf16.gmra.mrb[0].mxu0 %v624
  %v1106 = vpop.f32.mrb[0].mxu0
  %v1107 = vadd.f32 %v206, %v1106
  %v1108 = vpop.f32.mrb[0].mxu0
  %v1109 = vpop.f32.mrb[0].mxu0
  %v1110 = vadd.f32 %v206, %v1109
  %v1111 = vpop.f32.mrb[0].mxu0
  %1112 = vmatprep.mubr.bf16.mxu0 %v627
  %1113 = vmatmul.mubr.bf16.gmra.mrb[0].mxu0 %v626
  %v1114 = vpop.f32.mrb[0].mxu0
  %v1115 = vadd.f32 %v206, %v1114
  %v1116 = vpop.f32.mrb[0].mxu0
  %v1117 = vpop.f32.mrb[0].mxu0
  %v1118 = vadd.f32 %v206, %v1117
  %v1119 = vpop.f32.mrb[0].mxu0
  %1120 = vmatprep.mubr.bf16.mxu0 %v629
  %1121 = vmatmul.mubr.bf16.gmra.mrb[0].mxu0 %v628
  %v1122 = vpop.f32.mrb[0].mxu0
  %v1123 = vadd.f32 %v206, %v1122
  %v1124 = vpop.f32.mrb[0].mxu0
  %v1125 = vpop.f32.mrb[0].mxu0
  %v1126 = vadd.f32 %v206, %v1125
  %v1127 = vpop.f32.mrb[0].mxu0
  %1128 = vmatprep.mubr.bf16.mxu0 %v631
  %1129 = vmatmul.mubr.bf16.gmra.mrb[0].mxu0 %v630
  %v1130 = vpop.f32.mrb[0].mxu0
  %v1131 = vadd.f32 %v206, %v1130
  %v1132 = vpop.f32.mrb[0].mxu0
  %v1133 = vpop.f32.mrb[0].mxu0
  %v1134 = vadd.f32 %v206, %v1133
  %v1135 = vpop.f32.mrb[0].mxu0
  %1136 = vmatprep.mubr.bf16.mxu0 %v633
  %1137 = vmatmul.mubr.bf16.gmra.mrb[0].mxu0 %v632
  %v1138 = vpop.f32.mrb[0].mxu0
  %v1139 = vadd.f32 %v206, %v1138
  %v1140 = vpop.f32.mrb[0].mxu0
  %v1141 = vpop.f32.mrb[0].mxu0
  %v1142 = vadd.f32 %v206, %v1141
  %v1143 = vpop.f32.mrb[0].mxu0
  %1144 = vmatprep.mubr.bf16.mxu0 %v635
  %1145 = vmatmul.mubr.bf16.gmra.mrb[0].mxu0 %v634
  %v1146 = vpop.f32.mrb[0].mxu0
  %v1147 = vadd.f32 %v206, %v1146
  %v1148 = vpop.f32.mrb[0].mxu0
  %v1149 = vpop.f32.mrb[0].mxu0
  %v1150 = vadd.f32 %v206, %v1149
  %v1151 = vpop.f32.mrb[0].mxu0
  %1152 = vmatprep.mubr.bf16.mxu0 %v637
  %1153 = vmatmul.mubr.bf16.gmra.mrb[0].mxu0 %v636
  %v1154 = vpop.f32.mrb[0].mxu0
  %v1155 = vadd.f32 %v206, %v1154
  %v1156 = vpop.f32.mrb[0].mxu0
  %v1157 = vpop.f32.mrb[0].mxu0
  %v1158 = vadd.f32 %v206, %v1157
  %v1159 = vpop.f32.mrb[0].mxu0
  %1160 = vmatprep.mubr.bf16.mxu0 %v639
  %1161 = vmatmul.mubr.bf16.gmra.mrb[0].mxu0 %v638
  %v1162 = vpop.f32.mrb[0].mxu0
  %v1163 = vadd.f32 %v206, %v1162
  %v1164 = vpop.f32.mrb[0].mxu0
  %v1165 = vpop.f32.mrb[0].mxu0
  %v1166 = vadd.f32 %v206, %v1165
  %v1167 = vpop.f32.mrb[0].mxu0
  %1168 = vmatprep.mubr.bf16.mxu0 %v641
  %1169 = vmatmul.mubr.bf16.gmra.mrb[0].mxu0 %v640
  %v1170 = vpop.f32.mrb[0].mxu0
  %v1171 = vadd.f32 %v206, %v1170
  %v1172 = vpop.f32.mrb[0].mxu0
  %v1173 = vpop.f32.mrb[0].mxu0
  %v1174 = vadd.f32 %v206, %v1173
  %v1175 = vpop.f32.mrb[0].mxu0
  %1176 = vmatprep.mubr.bf16.mxu0 %v643
  %1177 = vmatmul.mubr.bf16.gmra.mrb[0].mxu0 %v642
  %v1178 = vpop.f32.mrb[0].mxu0
  %v1179 = vadd.f32 %v206, %v1178
  %v1180 = vpop.f32.mrb[0].mxu0
  %v1181 = vpop.f32.mrb[0].mxu0
  %v1182 = vadd.f32 %v206, %v1181
  %v1183 = vpop.f32.mrb[0].mxu0
  %1184 = vmatprep.mubr.bf16.mxu0 %v645
  %1185 = vmatmul.mubr.bf16.gmra.mrb[0].mxu0 %v644
  %v1186 = vpop.f32.mrb[0].mxu0
  %v1187 = vadd.f32 %v206, %v1186
  %v1188 = vpop.f32.mrb[0].mxu0
  %v1189 = vpop.f32.mrb[0].mxu0
  %v1190 = vadd.f32 %v206, %v1189
  %v1191 = vpop.f32.mrb[0].mxu0
  %1192 = vmatprep.mubr.bf16.mxu0 %v647
  %1193 = vmatmul.mubr.bf16.gmra.mrb[0].mxu0 %v646
  %v1194 = vpop.f32.mrb[0].mxu0
  %v1195 = vadd.f32 %v206, %v1194
  %v1196 = vpop.f32.mrb[0].mxu0
  %v1197 = vpop.f32.mrb[0].mxu0
  %v1198 = vadd.f32 %v206, %v1197
  %v1199 = vpop.f32.mrb[0].mxu0
  %1200 = vmatprep.mubr.bf16.mxu0 %v649
  %1201 = vmatmul.mubr.bf16.gmra.mrb[0].mxu0 %v648
  %v1202 = vpop.f32.mrb[0].mxu0
  %v1203 = vadd.f32 %v206, %v1202
  %v1204 = vpop.f32.mrb[0].mxu0
  %v1205 = vpop.f32.mrb[0].mxu0
  %v1206 = vadd.f32 %v206, %v1205
  %v1207 = vpop.f32.mrb[0].mxu0
  %1208 = vmatprep.mubr.bf16.mxu0 %v651
  %1209 = vmatmul.mubr.bf16.gmra.mrb[0].mxu0 %v650
  %v1210 = vpop.f32.mrb[0].mxu0
  %v1211 = vadd.f32 %v206, %v1210
  %v1212 = vpop.f32.mrb[0].mxu0
  %v1213 = vpop.f32.mrb[0].mxu0
  %v1214 = vadd.f32 %v206, %v1213
  %v1215 = vpop.f32.mrb[0].mxu0
  %1216 = vmatprep.mubr.bf16.mxu0 %v653
  %1217 = vmatmul.mubr.bf16.gmra.mrb[0].mxu0 %v652
  %v1218 = vpop.f32.mrb[0].mxu0
  %v1219 = vadd.f32 %v206, %v1218
  %v1220 = vpop.f32.mrb[0].mxu0
  %v1221 = vpop.f32.mrb[0].mxu0
  %v1222 = vadd.f32 %v206, %v1221
  %v1223 = vpop.f32.mrb[0].mxu0
  %1224 = vmatprep.mubr.bf16.mxu0 %v655
  %1225 = vmatmul.mubr.bf16.gmra.mrb[0].mxu0 %v654
  %v1226 = vpop.f32.mrb[0].mxu0
  %v1227 = vadd.f32 %v206, %v1226
  %v1228 = vpop.f32.mrb[0].mxu0
  %v1229 = vpop.f32.mrb[0].mxu0
  %v1230 = vadd.f32 %v206, %v1229
  %v1231 = vpop.f32.mrb[0].mxu0
  %1232 = vmatprep.mubr.bf16.mxu0 %v657
  %1233 = vmatmul.mubr.bf16.gmra.mrb[0].mxu0 %v656
  %v1234 = vpop.f32.mrb[0].mxu0
  %v1235 = vadd.f32 %v206, %v1234
  %v1236 = vpop.f32.mrb[0].mxu0
  %v1237 = vpop.f32.mrb[0].mxu0
  %v1238 = vadd.f32 %v206, %v1237
  %v1239 = vpop.f32.mrb[0].mxu0
  %1240 = vmatprep.mubr.bf16.mxu0 %v659
  %1241 = vmatmul.mubr.bf16.gmra.mrb[0].mxu0 %v658
  %v1242 = vpop.f32.mrb[0].mxu0
  %v1243 = vadd.f32 %v206, %v1242
  %v1244 = vpop.f32.mrb[0].mxu0
  %v1245 = vpop.f32.mrb[0].mxu0
  %v1246 = vadd.f32 %v206, %v1245
  %v1247 = vpop.f32.mrb[0].mxu0
  %1248 = vmatprep.mubr.bf16.mxu0 %v661
  %1249 = vmatmul.mubr.bf16.gmra.mrb[0].mxu0 %v660
  %v1250 = vpop.f32.mrb[0].mxu0
  %v1251 = vadd.f32 %v206, %v1250
  %v1252 = vpop.f32.mrb[0].mxu0
  %v1253 = vpop.f32.mrb[0].mxu0
  %v1254 = vadd.f32 %v206, %v1253
  %v1255 = vpop.f32.mrb[0].mxu0
  %1256 = vmatprep.mubr.bf16.mxu0 %v663
  %1257 = vmatmul.mubr.bf16.gmra.mrb[0].mxu0 %v662
  %v1258 = vpop.f32.mrb[0].mxu0
  %v1259 = vadd.f32 %v206, %v1258
  %v1260 = vpop.f32.mrb[0].mxu0
  %v1261 = vpop.f32.mrb[0].mxu0
  %v1262 = vadd.f32 %v206, %v1261
  %v1263 = vpop.f32.mrb[0].mxu0
  %1264 = vmatprep.mubr.bf16.mxu0 %v665
  %1265 = vmatmul.mubr.bf16.gmra.mrb[0].mxu0 %v664
  %v1266 = vpop.f32.mrb[0].mxu0
  %v1267 = vadd.f32 %v206, %v1266
  %v1268 = vpop.f32.mrb[0].mxu0
  %v1269 = vpop.f32.mrb[0].mxu0
  %v1270 = vadd.f32 %v206, %v1269
  %v1271 = vpop.f32.mrb[0].mxu0
  %1272 = vmatprep.mubr.bf16.mxu0 %v667
  %1273 = vmatmul.mubr.bf16.gmra.mrb[0].mxu0 %v666
  %v1274 = vpop.f32.mrb[0].mxu0
  %v1275 = vadd.f32 %v206, %v1274
  %v1276 = vpop.f32.mrb[0].mxu0
  %v1277 = vpop.f32.mrb[0].mxu0
  %v1278 = vadd.f32 %v206, %v1277
  %v1279 = vpop.f32.mrb[0].mxu0
  %1280 = vmatprep.mubr.bf16.mxu0 %v669
  %1281 = vmatmul.mubr.bf16.gmra.mrb[0].mxu0 %v668
  %v1282 = vpop.f32.mrb[0].mxu0
  %v1283 = vadd.f32 %v206, %v1282
  %v1284 = vpop.f32.mrb[0].mxu0
  %v1285 = vpop.f32.mrb[0].mxu0
  %v1286 = vadd.f32 %v206, %v1285
  %v1287 = vpop.f32.mrb[0].mxu0
  %1288 = vmatprep.mubr.bf16.mxu0 %v671
  %1289 = vmatmul.mubr.bf16.gmra.mrb[0].mxu0 %v670
  %v1290 = vpop.f32.mrb[0].mxu0
  %v1291 = vadd.f32 %v206, %v1290
  %v1292 = vpop.f32.mrb[0].mxu0
  %v1293 = vpop.f32.mrb[0].mxu0
  %v1294 = vadd.f32 %v206, %v1293
  %v1295 = vpop.f32.mrb[0].mxu0
  %1296 = vmatprep.mubr.bf16.mxu0 %v673
  %1297 = vmatmul.mubr.bf16.gmra.mrb[0].mxu0 %v672
  %v1298 = vpop.f32.mrb[0].mxu0
  %v1299 = vadd.f32 %v206, %v1298
  %v1300 = vpop.f32.mrb[0].mxu0
  %v1301 = vpop.f32.mrb[0].mxu0
  %v1302 = vadd.f32 %v206, %v1301
  %v1303 = vpop.f32.mrb[0].mxu0
  %1304 = vmatprep.mubr.bf16.mxu0 %v675
  %1305 = vmatmul.mubr.bf16.gmra.mrb[0].mxu0 %v674
  %v1306 = vpop.f32.mrb[0].mxu0
  %v1307 = vadd.f32 %v206, %v1306
  %v1308 = vpop.f32.mrb[0].mxu0
  %v1309 = vpop.f32.mrb[0].mxu0
  %v1310 = vadd.f32 %v206, %v1309
  %v1311 = vpop.f32.mrb[0].mxu0
  %1312 = vmatprep.mubr.bf16.mxu0 %v677
  %1313 = vmatmul.mubr.bf16.gmra.mrb[0].mxu0 %v676
  %v1314 = vpop.f32.mrb[0].mxu0
  %v1315 = vadd.f32 %v206, %v1314
  %v1316 = vpop.f32.mrb[0].mxu0
  %v1317 = vpop.f32.mrb[0].mxu0
  %v1318 = vadd.f32 %v206, %v1317
  %v1319 = vpop.f32.mrb[0].mxu0
  %1320 = vmatprep.mubr.bf16.mxu0 %v679
  %1321 = vmatmul.mubr.bf16.gmra.mrb[0].mxu0 %v678
  %v1322 = vpop.f32.mrb[0].mxu0
  %v1323 = vadd.f32 %v206, %v1322
  %v1324 = vpop.f32.mrb[0].mxu0
  %v1325 = vpop.f32.mrb[0].mxu0
  %v1326 = vadd.f32 %v206, %v1325
  %v1327 = vpop.f32.mrb[0].mxu0
  %1328 = vmatprep.mubr.bf16.mxu0 %v681
  %1329 = vmatmul.mubr.bf16.gmra.mrb[0].mxu0 %v680
  %v1330 = vpop.f32.mrb[0].mxu0
  %v1331 = vadd.f32 %v206, %v1330
  %v1332 = vpop.f32.mrb[0].mxu0
  %v1333 = vpop.f32.mrb[0].mxu0
  %v1334 = vadd.f32 %v206, %v1333
  %v1335 = vpop.f32.mrb[0].mxu0
  %1336 = vmatprep.mubr.bf16.mxu0 %v683
  %1337 = vmatmul.mubr.bf16.gmra.mrb[0].mxu0 %v682
  %v1338 = vpop.f32.mrb[0].mxu0
  %v1339 = vadd.f32 %v206, %v1338
  %v1340 = vpop.f32.mrb[0].mxu0
  %v1341 = vpop.f32.mrb[0].mxu0
  %v1342 = vadd.f32 %v206, %v1341
  %v1343 = vpop.f32.mrb[0].mxu0
  %1344 = vmatprep.mubr.bf16.mxu0 %v685
  %1345 = vmatmul.mubr.bf16.gmra.mrb[0].mxu0 %v684
  %v1346 = vpop.f32.mrb[0].mxu0
  %v1347 = vadd.f32 %v206, %v1346
  %v1348 = vpop.f32.mrb[0].mxu0
  %v1349 = vpop.f32.mrb[0].mxu0
  %v1350 = vadd.f32 %v206, %v1349
  %v1351 = vpop.f32.mrb[0].mxu0
  %1352 = vmatprep.mubr.bf16.mxu0 %v687
  %1353 = vmatmul.mubr.bf16.gmra.mrb[0].mxu0 %v686
  %v1354 = vpop.f32.mrb[0].mxu0
  %v1355 = vadd.f32 %v206, %v1354
  %v1356 = vpop.f32.mrb[0].mxu0
  %v1357 = vpop.f32.mrb[0].mxu0
  %v1358 = vadd.f32 %v206, %v1357
  %v1359 = vpop.f32.mrb[0].mxu0
  %1360 = vmatprep.mubr.bf16.mxu0 %v689
  %1361 = vmatmul.mubr.bf16.gmra.mrb[0].mxu0 %v688
  %v1362 = vpop.f32.mrb[0].mxu0
  %v1363 = vadd.f32 %v206, %v1362
  %v1364 = vpop.f32.mrb[0].mxu0
  %v1365 = vpop.f32.mrb[0].mxu0
  %v1366 = vadd.f32 %v206, %v1365
  %v1367 = vpop.f32.mrb[0].mxu0
  %1368 = vmatprep.mubr.bf16.mxu0 %v691
  %1369 = vmatmul.mubr.bf16.gmra.mrb[0].mxu0 %v690
  %v1370 = vpop.f32.mrb[0].mxu0
  %v1371 = vadd.f32 %v206, %v1370
  %v1372 = vpop.f32.mrb[0].mxu0
  %v1373 = vpop.f32.mrb[0].mxu0
  %v1374 = vadd.f32 %v206, %v1373
  %v1375 = vpop.f32.mrb[0].mxu0
  %1376 = vmatprep.mubr.bf16.mxu0 %v693
  %1377 = vmatmul.mubr.bf16.gmra.mrb[0].mxu0 %v692
  %v1378 = vpop.f32.mrb[0].mxu0
  %v1379 = vadd.f32 %v206, %v1378
  %v1380 = vpop.f32.mrb[0].mxu0
  %v1381 = vpop.f32.mrb[0].mxu0
  %v1382 = vadd.f32 %v206, %v1381
  %v1383 = vpop.f32.mrb[0].mxu0
  %1384 = vmatprep.mubr.bf16.mxu0 %v695
  %1385 = vmatmul.mubr.bf16.gmra.mrb[0].mxu0 %v694
  %v1386 = vpop.f32.mrb[0].mxu0
  %v1387 = vadd.f32 %v206, %v1386
  %v1388 = vpop.f32.mrb[0].mxu0
  %v1389 = vpop.f32.mrb[0].mxu0
  %v1390 = vadd.f32 %v206, %v1389
  %v1391 = vpop.f32.mrb[0].mxu0
  %1392 = vmatprep.mubr.bf16.mxu0 %v697
  %1393 = vmatmul.mubr.bf16.gmra.mrb[0].mxu0 %v696
  %v1394 = vpop.f32.mrb[0].mxu0
  %v1395 = vadd.f32 %v206, %v1394
  %v1396 = vpop.f32.mrb[0].mxu0
  %v1397 = vpop.f32.mrb[0].mxu0
  %v1398 = vadd.f32 %v206, %v1397
  %v1399 = vpop.f32.mrb[0].mxu0
  %1400 = vmatprep.mubr.bf16.mxu0 %v699
  %1401 = vmatmul.mubr.bf16.gmra.mrb[0].mxu0 %v698
  %v1402 = vpop.f32.mrb[0].mxu0
  %v1403 = vadd.f32 %v206, %v1402
  %v1404 = vpop.f32.mrb[0].mxu0
  %v1405 = vpop.f32.mrb[0].mxu0
  %v1406 = vadd.f32 %v206, %v1405
  %v1407 = vpop.f32.mrb[0].mxu0
  %1408 = vmatprep.mubr.bf16.mxu0 %v701
  %1409 = vmatmul.mubr.bf16.gmra.mrb[0].mxu0 %v700
  %v1410 = vpop.f32.mrb[0].mxu0
  %v1411 = vadd.f32 %v206, %v1410
  %v1412 = vpop.f32.mrb[0].mxu0
  %v1413 = vpop.f32.mrb[0].mxu0
  %v1414 = vadd.f32 %v206, %v1413
  %v1415 = vpop.f32.mrb[0].mxu0
  %1416 = vmatprep.mubr.bf16.mxu0 %v703
  %1417 = vmatmul.mubr.bf16.gmra.mrb[0].mxu0 %v702
  %v1418 = vpop.f32.mrb[0].mxu0
  %v1419 = vadd.f32 %v206, %v1418
  %v1420 = vpop.f32.mrb[0].mxu0
  %v1421 = vpop.f32.mrb[0].mxu0
  %v1422 = vadd.f32 %v206, %v1421
  %v1423 = vpop.f32.mrb[0].mxu0
  %1424 = vmatprep.mubr.bf16.mxu0 %v705
  %1425 = vmatmul.mubr.bf16.gmra.mrb[0].mxu0 %v704
  %v1426 = vpop.f32.mrb[0].mxu0
  %v1427 = vadd.f32 %v206, %v1426
  %v1428 = vpop.f32.mrb[0].mxu0
  %v1429 = vpop.f32.mrb[0].mxu0
  %v1430 = vadd.f32 %v206, %v1429
  %v1431 = vpop.f32.mrb[0].mxu0
  %1432 = vmatprep.mubr.bf16.mxu0 %v707
  %1433 = vmatmul.mubr.bf16.gmra.mrb[0].mxu0 %v706
  %v1434 = vpop.f32.mrb[0].mxu0
  %v1435 = vadd.f32 %v206, %v1434
  %v1436 = vpop.f32.mrb[0].mxu0
  %v1437 = vpop.f32.mrb[0].mxu0
  %v1438 = vadd.f32 %v206, %v1437
  %v1439 = vpop.f32.mrb[0].mxu0
  %1440 = vmatprep.mubr.bf16.mxu0 %v709
  %1441 = vmatmul.mubr.bf16.gmra.mrb[0].mxu0 %v708
  %v1442 = vpop.f32.mrb[0].mxu0
  %v1443 = vadd.f32 %v206, %v1442
  %v1444 = vpop.f32.mrb[0].mxu0
  %v1445 = vpop.f32.mrb[0].mxu0
  %v1446 = vadd.f32 %v206, %v1445
  %v1447 = vpop.f32.mrb[0].mxu0
  %1448 = vmatprep.mubr.bf16.mxu0 %v711
  %1449 = vmatmul.mubr.bf16.gmra.mrb[0].mxu0 %v710
  %v1450 = vpop.f32.mrb[0].mxu0
  %v1451 = vadd.f32 %v206, %v1450
  %v1452 = vpop.f32.mrb[0].mxu0
  %v1453 = vpop.f32.mrb[0].mxu0
  %v1454 = vadd.f32 %v206, %v1453
  %v1455 = vpop.f32.mrb[0].mxu0
  %1456 = vmatprep.mubr.bf16.mxu0 %v713
  %1457 = vmatmul.mubr.bf16.gmra.mrb[0].mxu0 %v712
  %v1458 = vpop.f32.mrb[0].mxu0
  %v1459 = vadd.f32 %v206, %v1458
  %v1460 = vpop.f32.mrb[0].mxu0
  %v1461 = vpop.f32.mrb[0].mxu0
  %v1462 = vadd.f32 %v206, %v1461
  %v1463 = vpop.f32.mrb[0].mxu0
  %1464 = vmatprep.mubr.bf16.mxu0 %v715
  %1465 = vmatmul.mubr.bf16.gmra.mrb[0].mxu0 %v714
  %v1466 = vpop.f32.mrb[0].mxu0
  %v1467 = vadd.f32 %v206, %v1466
  %v1468 = vpop.f32.mrb[0].mxu0
  %v1469 = vpop.f32.mrb[0].mxu0
  %v1470 = vadd.f32 %v206, %v1469
  %v1471 = vpop.f32.mrb[0].mxu0
  %1472 = vmatprep.mubr.bf16.mxu0 %v717
  %1473 = vmatmul.mubr.bf16.gmra.mrb[0].mxu0 %v716
  %v1474 = vpop.f32.mrb[0].mxu0
  %v1475 = vadd.f32 %v206, %v1474
  %v1476 = vpop.f32.mrb[0].mxu0
  %v1477 = vpop.f32.mrb[0].mxu0
  %v1478 = vadd.f32 %v206, %v1477
  %v1479 = vpop.f32.mrb[0].mxu0
  %1480 = vmatprep.mubr.bf16.mxu0 %v719
  %1481 = vmatmul.mubr.bf16.gmra.mrb[0].mxu0 %v718
  %v1482 = vpop.f32.mrb[0].mxu0
  %v1483 = vadd.f32 %v206, %v1482
  %v1484 = vpop.f32.mrb[0].mxu0
  %v1485 = vpop.f32.mrb[0].mxu0
  %v1486 = vadd.f32 %v206, %v1485
  %v1487 = vpop.f32.mrb[0].mxu0
  %1488 = vdwg.mxu0
  %v1489 = vmax.f32 %v979, 0.0
  %v1490 = vmax.f32 %v982, 0.0
  %v1491 = vmax.f32 %v987, 0.0
  %v1492 = vmax.f32 %v990, 0.0
  %v1493 = vmax.f32 %v995, 0.0
  %v1494 = vmax.f32 %v998, 0.0
  %v1495 = vmax.f32 %v1003, 0.0
  %v1496 = vmax.f32 %v1006, 0.0
  %v1497 = vmax.f32 %v1011, 0.0
  %v1498 = vmax.f32 %v1014, 0.0
  %v1499 = vmax.f32 %v1019, 0.0
  %v1500 = vmax.f32 %v1022, 0.0
  %v1501 = vmax.f32 %v1027, 0.0
  %v1502 = vmax.f32 %v1030, 0.0
  %v1503 = vmax.f32 %v1035, 0.0
  %v1504 = vmax.f32 %v1038, 0.0
  %v1505 = vmax.f32 %v1043, 0.0
  %v1506 = vmax.f32 %v1046, 0.0
  %v1507 = vmax.f32 %v1051, 0.0
  %v1508 = vmax.f32 %v1054, 0.0
  %v1509 = vmax.f32 %v1059, 0.0
  %v1510 = vmax.f32 %v1062, 0.0
  %v1511 = vmax.f32 %v1067, 0.0
  %v1512 = vmax.f32 %v1070, 0.0
  %v1513 = vmax.f32 %v1075, 0.0
  %v1514 = vmax.f32 %v1078, 0.0
  %v1515 = vmax.f32 %v1083, 0.0
  %v1516 = vmax.f32 %v1086, 0.0
  %v1517 = vmax.f32 %v1091, 0.0
  %v1518 = vmax.f32 %v1094, 0.0
  %v1519 = vmax.f32 %v1099, 0.0
  %v1520 = vmax.f32 %v1102, 0.0
  %v1521 = vmax.f32 %v1107, 0.0
  %v1522 = vmax.f32 %v1110, 0.0
  %v1523 = vmax.f32 %v1115, 0.0
  %v1524 = vmax.f32 %v1118, 0.0
  %v1525 = vmax.f32 %v1123, 0.0
  %v1526 = vmax.f32 %v1126, 0.0
  %v1527 = vmax.f32 %v1131, 0.0
  %v1528 = vmax.f32 %v1134, 0.0
  %v1529 = vmax.f32 %v1139, 0.0
  %v1530 = vmax.f32 %v1142, 0.0
  %v1531 = vmax.f32 %v1147, 0.0
  %v1532 = vmax.f32 %v1150, 0.0
  %v1533 = vmax.f32 %v1155, 0.0
  %v1534 = vmax.f32 %v1158, 0.0
  %v1535 = vmax.f32 %v1163, 0.0
  %v1536 = vmax.f32 %v1166, 0.0
  %v1537 = vmax.f32 %v1171, 0.0
  %v1538 = vmax.f32 %v1174, 0.0
  %v1539 = vmax.f32 %v1179, 0.0
  %v1540 = vmax.f32 %v1182, 0.0
  %v1541 = vmax.f32 %v1187, 0.0
  %v1542 = vmax.f32 %v1190, 0.0
  %v1543 = vmax.f32 %v1195, 0.0
  %v1544 = vmax.f32 %v1198, 0.0
  %v1545 = vmax.f32 %v1203, 0.0
  %v1546 = vmax.f32 %v1206, 0.0
  %v1547 = vmax.f32 %v1211, 0.0
  %v1548 = vmax.f32 %v1214, 0.0
  %v1549 = vmax.f32 %v1219, 0.0
  %v1550 = vmax.f32 %v1222, 0.0
  %v1551 = vmax.f32 %v1227, 0.0
  %v1552 = vmax.f32 %v1230, 0.0
  %v1553 = vmax.f32 %v1235, 0.0
  %v1554 = vmax.f32 %v1238, 0.0
  %v1555 = vmax.f32 %v1243, 0.0
  %v1556 = vmax.f32 %v1246, 0.0
  %v1557 = vmax.f32 %v1251, 0.0
  %v1558 = vmax.f32 %v1254, 0.0
  %v1559 = vmax.f32 %v1259, 0.0
  %v1560 = vmax.f32 %v1262, 0.0
  %v1561 = vmax.f32 %v1267, 0.0
  %v1562 = vmax.f32 %v1270, 0.0
  %v1563 = vmax.f32 %v1275, 0.0
  %v1564 = vmax.f32 %v1278, 0.0
  %v1565 = vmax.f32 %v1283, 0.0
  %v1566 = vmax.f32 %v1286, 0.0
  %v1567 = vmax.f32 %v1291, 0.0
  %v1568 = vmax.f32 %v1294, 0.0
  %v1569 = vmax.f32 %v1299, 0.0
  %v1570 = vmax.f32 %v1302, 0.0
  %v1571 = vmax.f32 %v1307, 0.0
  %v1572 = vmax.f32 %v1310, 0.0
  %v1573 = vmax.f32 %v1315, 0.0
  %v1574 = vmax.f32 %v1318, 0.0
  %v1575 = vmax.f32 %v1323, 0.0
  %v1576 = vmax.f32 %v1326, 0.0
  %v1577 = vmax.f32 %v1331, 0.0
  %v1578 = vmax.f32 %v1334, 0.0
  %v1579 = vmax.f32 %v1339, 0.0
  %v1580 = vmax.f32 %v1342, 0.0
  %v1581 = vmax.f32 %v1347, 0.0
  %v1582 = vmax.f32 %v1350, 0.0
  %v1583 = vmax.f32 %v1355, 0.0
  %v1584 = vmax.f32 %v1358, 0.0
  %v1585 = vmax.f32 %v1363, 0.0
  %v1586 = vmax.f32 %v1366, 0.0
  %v1587 = vmax.f32 %v1371, 0.0
  %v1588 = vmax.f32 %v1374, 0.0
  %v1589 = vmax.f32 %v1379, 0.0
  %v1590 = vmax.f32 %v1382, 0.0
  %v1591 = vmax.f32 %v1387, 0.0
  %v1592 = vmax.f32 %v1390, 0.0
  %v1593 = vmax.f32 %v1395, 0.0
  %v1594 = vmax.f32 %v1398, 0.0
  %v1595 = vmax.f32 %v1403, 0.0
  %v1596 = vmax.f32 %v1406, 0.0
  %v1597 = vmax.f32 %v1411, 0.0
  %v1598 = vmax.f32 %v1414, 0.0
  %v1599 = vmax.f32 %v1419, 0.0
  %v1600 = vmax.f32 %v1422, 0.0
  %v1601 = vmax.f32 %v1427, 0.0
  %v1602 = vmax.f32 %v1430, 0.0
  %v1603 = vmax.f32 %v1435, 0.0
  %v1604 = vmax.f32 %v1438, 0.0
  %v1605 = vmax.f32 %v1443, 0.0
  %v1606 = vmax.f32 %v1446, 0.0
  %v1607 = vmax.f32 %v1451, 0.0
  %v1608 = vmax.f32 %v1454, 0.0
  %v1609 = vmax.f32 %v1459, 0.0
  %v1610 = vmax.f32 %v1462, 0.0
  %v1611 = vmax.f32 %v1467, 0.0
  %v1612 = vmax.f32 %v1470, 0.0
  %v1613 = vmax.f32 %v1475, 0.0
  %v1614 = vmax.f32 %v1478, 0.0
  %v1615 = vmax.f32 %v1483, 0.0
  %v1616 = vmax.f32 %v1486, 0.0
  %v1617 = vpack.c.bf16 %v1490, %v1489
  %v1618 = vpack.c.bf16 %v1492, %v1491
  %v1619 = vpack.c.bf16 %v1494, %v1493
  %v1620 = vpack.c.bf16 %v1496, %v1495
  %v1621 = vpack.c.bf16 %v1498, %v1497
  %v1622 = vpack.c.bf16 %v1500, %v1499
  %v1623 = vpack.c.bf16 %v1502, %v1501
  %v1624 = vpack.c.bf16 %v1504, %v1503
  %v1625 = vpack.c.bf16 %v1506, %v1505
  %v1626 = vpack.c.bf16 %v1508, %v1507
  %v1627 = vpack.c.bf16 %v1510, %v1509
  %v1628 = vpack.c.bf16 %v1512, %v1511
  %v1629 = vpack.c.bf16 %v1514, %v1513
  %v1630 = vpack.c.bf16 %v1516, %v1515
  %v1631 = vpack.c.bf16 %v1518, %v1517
  %v1632 = vpack.c.bf16 %v1520, %v1519
  %v1633 = vpack.c.bf16 %v1522, %v1521
  %v1634 = vpack.c.bf16 %v1524, %v1523
  %v1635 = vpack.c.bf16 %v1526, %v1525
  %v1636 = vpack.c.bf16 %v1528, %v1527
  %v1637 = vpack.c.bf16 %v1530, %v1529
  %v1638 = vpack.c.bf16 %v1532, %v1531
  %v1639 = vpack.c.bf16 %v1534, %v1533
  %v1640 = vpack.c.bf16 %v1536, %v1535
  %v1641 = vpack.c.bf16 %v1538, %v1537
  %v1642 = vpack.c.bf16 %v1540, %v1539
  %v1643 = vpack.c.bf16 %v1542, %v1541
  %v1644 = vpack.c.bf16 %v1544, %v1543
  %v1645 = vpack.c.bf16 %v1546, %v1545
  %v1646 = vpack.c.bf16 %v1548, %v1547
  %v1647 = vpack.c.bf16 %v1550, %v1549
  %v1648 = vpack.c.bf16 %v1552, %v1551
  %v1649 = vpack.c.bf16 %v1554, %v1553
  %v1650 = vpack.c.bf16 %v1556, %v1555
  %v1651 = vpack.c.bf16 %v1558, %v1557
  %v1652 = vpack.c.bf16 %v1560, %v1559
  %v1653 = vpack.c.bf16 %v1562, %v1561
  %v1654 = vpack.c.bf16 %v1564, %v1563
  %v1655 = vpack.c.bf16 %v1566, %v1565
  %v1656 = vpack.c.bf16 %v1568, %v1567
  %v1657 = vpack.c.bf16 %v1570, %v1569
  %v1658 = vpack.c.bf16 %v1572, %v1571
  %v1659 = vpack.c.bf16 %v1574, %v1573
  %v1660 = vpack.c.bf16 %v1576, %v1575
  %v1661 = vpack.c.bf16 %v1578, %v1577
  %v1662 = vpack.c.bf16 %v1580, %v1579
  %v1663 = vpack.c.bf16 %v1582, %v1581
  %v1664 = vpack.c.bf16 %v1584, %v1583
  %v1665 = vpack.c.bf16 %v1586, %v1585
  %v1666 = vpack.c.bf16 %v1588, %v1587
  %v1667 = vpack.c.bf16 %v1590, %v1589
  %v1668 = vpack.c.bf16 %v1592, %v1591
  %v1669 = vpack.c.bf16 %v1594, %v1593
  %v1670 = vpack.c.bf16 %v1596, %v1595
  %v1671 = vpack.c.bf16 %v1598, %v1597
  %v1672 = vpack.c.bf16 %v1600, %v1599
  %v1673 = vpack.c.bf16 %v1602, %v1601
  %v1674 = vpack.c.bf16 %v1604, %v1603
  %v1675 = vpack.c.bf16 %v1606, %v1605
  %v1676 = vpack.c.bf16 %v1608, %v1607
  %v1677 = vpack.c.bf16 %v1610, %v1609
  %v1678 = vpack.c.bf16 %v1612, %v1611
  %v1679 = vpack.c.bf16 %v1614, %v1613
  %v1680 = vpack.c.bf16 %v1616, %v1615
  %vm1681 = vcmask 261120
  %1682 = vst.msk [vmem:[#allocation2] sm:$0xff] %vm1681, %v1617
  %1683 = vst.msk [vmem:[#allocation2 + $0x8] sm:$0xff] %vm1681, %v1618
  %1684 = vst.msk [vmem:[#allocation2 + $0x10] sm:$0xff] %vm1681, %v1619
  %1685 = vst.msk [vmem:[#allocation2 + $0x18] sm:$0xff] %vm1681, %v1620
  %1686 = vst.msk [vmem:[#allocation2 + $0x20] sm:$0xff] %vm1681, %v1621
  %1687 = vst.msk [vmem:[#allocation2 + $0x28] sm:$0xff] %vm1681, %v1622
  %1688 = vst.msk [vmem:[#allocation2 + $0x30] sm:$0xff] %vm1681, %v1623
  %1689 = vst.msk [vmem:[#allocation2 + $0x38] sm:$0xff] %vm1681, %v1624
  %1690 = vst.msk [vmem:[#allocation2 + $0x40] sm:$0xff] %vm1681, %v1625
  %1691 = vst.msk [vmem:[#allocation2 + $0x48] sm:$0xff] %vm1681, %v1626
  %1692 = vst.msk [vmem:[#allocation2 + $0x50] sm:$0xff] %vm1681, %v1627
  %1693 = vst.msk [vmem:[#allocation2 + $0x58] sm:$0xff] %vm1681, %v1628
  %1694 = vst.msk [vmem:[#allocation2 + $0x60] sm:$0xff] %vm1681, %v1629
  %1695 = vst.msk [vmem:[#allocation2 + $0x68] sm:$0xff] %vm1681, %v1630
  %1696 = vst.msk [vmem:[#allocation2 + $0x70] sm:$0xff] %vm1681, %v1631
  %1697 = vst.msk [vmem:[#allocation2 + $0x78] sm:$0xff] %vm1681, %v1632
  %1698 = vst.msk [vmem:[#allocation2 + $0x80] sm:$0xff] %vm1681, %v1633
  %1699 = vst.msk [vmem:[#allocation2 + $0x88] sm:$0xff] %vm1681, %v1634
  %1700 = vst.msk [vmem:[#allocation2 + $0x90] sm:$0xff] %vm1681, %v1635
  %1701 = vst.msk [vmem:[#allocation2 + $0x98] sm:$0xff] %vm1681, %v1636
  %1702 = vst.msk [vmem:[#allocation2 + $0xa0] sm:$0xff] %vm1681, %v1637
  %1703 = vst.msk [vmem:[#allocation2 + $0xa8] sm:$0xff] %vm1681, %v1638
  %1704 = vst.msk [vmem:[#allocation2 + $0xb0] sm:$0xff] %vm1681, %v1639
  %1705 = vst.msk [vmem:[#allocation2 + $0xb8] sm:$0xff] %vm1681, %v1640
  %1706 = vst.msk [vmem:[#allocation2 + $0xc0] sm:$0xff] %vm1681, %v1641
  %1707 = vst.msk [vmem:[#allocation2 + $0xc8] sm:$0xff] %vm1681, %v1642
  %1708 = vst.msk [vmem:[#allocation2 + $0xd0] sm:$0xff] %vm1681, %v1643
  %1709 = vst.msk [vmem:[#allocation2 + $0xd8] sm:$0xff] %vm1681, %v1644
  %1710 = vst.msk [vmem:[#allocation2 + $0xe0] sm:$0xff] %vm1681, %v1645
  %1711 = vst.msk [vmem:[#allocation2 + $0xe8] sm:$0xff] %vm1681, %v1646
  %1712 = vst.msk [vmem:[#allocation2 + $0xf0] sm:$0xff] %vm1681, %v1647
  %1713 = vst.msk [vmem:[#allocation2 + $0xf8] sm:$0xff] %vm1681, %v1648
  %1714 = vst.msk [vmem:[#allocation2 + $0x100] sm:$0xff] %vm1681, %v1649
  %1715 = vst.msk [vmem:[#allocation2 + $0x108] sm:$0xff] %vm1681, %v1650
  %1716 = vst.msk [vmem:[#allocation2 + $0x110] sm:$0xff] %vm1681, %v1651
  %1717 = vst.msk [vmem:[#allocation2 + $0x118] sm:$0xff] %vm1681, %v1652
  %1718 = vst.msk [vmem:[#allocation2 + $0x120] sm:$0xff] %vm1681, %v1653
  %1719 = vst.msk [vmem:[#allocation2 + $0x128] sm:$0xff] %vm1681, %v1654
  %1720 = vst.msk [vmem:[#allocation2 + $0x130] sm:$0xff] %vm1681, %v1655
  %1721 = vst.msk [vmem:[#allocation2 + $0x138] sm:$0xff] %vm1681, %v1656
  %1722 = vst.msk [vmem:[#allocation2 + $0x140] sm:$0xff] %vm1681, %v1657
  %1723 = vst.msk [vmem:[#allocation2 + $0x148] sm:$0xff] %vm1681, %v1658
  %1724 = vst.msk [vmem:[#allocation2 + $0x150] sm:$0xff] %vm1681, %v1659
  %1725 = vst.msk [vmem:[#allocation2 + $0x158] sm:$0xff] %vm1681, %v1660
  %1726 = vst.msk [vmem:[#allocation2 + $0x160] sm:$0xff] %vm1681, %v1661
  %1727 = vst.msk [vmem:[#allocation2 + $0x168] sm:$0xff] %vm1681, %v1662
  %1728 = vst.msk [vmem:[#allocation2 + $0x170] sm:$0xff] %vm1681, %v1663
  %1729 = vst.msk [vmem:[#allocation2 + $0x178] sm:$0xff] %vm1681, %v1664
  %1730 = vst.msk [vmem:[#allocation2 + $0x180] sm:$0xff] %vm1681, %v1665
  %1731 = vst.msk [vmem:[#allocation2 + $0x188] sm:$0xff] %vm1681, %v1666
  %1732 = vst.msk [vmem:[#allocation2 + $0x190] sm:$0xff] %vm1681, %v1667
  %1733 = vst.msk [vmem:[#allocation2 + $0x198] sm:$0xff] %vm1681, %v1668
  %1734 = vst.msk [vmem:[#allocation2 + $0x1a0] sm:$0xff] %vm1681, %v1669
  %1735 = vst.msk [vmem:[#allocation2 + $0x1a8] sm:$0xff] %vm1681, %v1670
  %1736 = vst.msk [vmem:[#allocation2 + $0x1b0] sm:$0xff] %vm1681, %v1671
  %1737 = vst.msk [vmem:[#allocation2 + $0x1b8] sm:$0xff] %vm1681, %v1672
  %1738 = vst.msk [vmem:[#allocation2 + $0x1c0] sm:$0xff] %vm1681, %v1673
  %1739 = vst.msk [vmem:[#allocation2 + $0x1c8] sm:$0xff] %vm1681, %v1674
  %1740 = vst.msk [vmem:[#allocation2 + $0x1d0] sm:$0xff] %vm1681, %v1675
  %1741 = vst.msk [vmem:[#allocation2 + $0x1d8] sm:$0xff] %vm1681, %v1676
  %1742 = vst.msk [vmem:[#allocation2 + $0x1e0] sm:$0xff] %vm1681, %v1677
  %1743 = vst.msk [vmem:[#allocation2 + $0x1e8] sm:$0xff] %vm1681, %v1678
  %1744 = vst.msk [vmem:[#allocation2 + $0x1f0] sm:$0xff] %vm1681, %v1679
  %1745 = vst.msk [vmem:[#allocation2 + $0x1f8] sm:$0xff] %vm1681, %v1680
  %v1746 = vld [vmem:[#allocation2] sm:$0xff]
  %s1747 = scalar_lea.vmem [#allocation2], 8
  %v1748 = vld [vmem:[%s1747] sm:$0xff]
  %s1749 = scalar_lea.vmem [#allocation2], 16
  %v1750 = vld [vmem:[%s1749] sm:$0xff]
  %s1751 = scalar_lea.vmem [#allocation2], 24
  %v1752 = vld [vmem:[%s1751] sm:$0xff]
  %s1753 = scalar_lea.vmem [#allocation2], 64
  %v1754 = vld [vmem:[%s1753] sm:$0xff]
  %s1755 = scalar_lea.vmem [#allocation2], 72
  %v1756 = vld [vmem:[%s1755] sm:$0xff]
  %s1757 = scalar_lea.vmem [#allocation2], 80
  %v1758 = vld [vmem:[%s1757] sm:$0xff]
  %s1759 = scalar_lea.vmem [#allocation2], 88
  %v1760 = vld [vmem:[%s1759] sm:$0xff]
  %s1761 = scalar_lea.vmem [#allocation2], 128
  %v1762 = vld [vmem:[%s1761] sm:$0xff]
  %s1763 = scalar_lea.vmem [#allocation2], 136
  %v1764 = vld [vmem:[%s1763] sm:$0xff]
  %s1765 = scalar_lea.vmem [#allocation2], 144
  %v1766 = vld [vmem:[%s1765] sm:$0xff]
  %s1767 = scalar_lea.vmem [#allocation2], 152
  %v1768 = vld [vmem:[%s1767] sm:$0xff]
  %s1769 = scalar_lea.vmem [#allocation2], 192
  %v1770 = vld [vmem:[%s1769] sm:$0xff]
  %s1771 = scalar_lea.vmem [#allocation2], 200
  %v1772 = vld [vmem:[%s1771] sm:$0xff]
  %s1773 = scalar_lea.vmem [#allocation2], 208
  %v1774 = vld [vmem:[%s1773] sm:$0xff]
  %s1775 = scalar_lea.vmem [#allocation2], 216
  %v1776 = vld [vmem:[%s1775] sm:$0xff]
  %1778 = vrot.lane.b32.xlu0 %v1748, 32
  %v1779 = vpop.permute.xlu0 %1778
  %1781 = vrot.lane.b32.xlu0 %v1750, 64
  %v1782 = vpop.permute.xlu0 %1781
  %1784 = vrot.lane.b32.xlu0 %v1752, 96
  %v1785 = vpop.permute.xlu0 %1784
  %1787 = vrot.lane.b32.xlu0 %v1756, 32
  %v1788 = vpop.permute.xlu0 %1787
  %1790 = vrot.lane.b32.xlu0 %v1758, 64
  %v1791 = vpop.permute.xlu0 %1790
  %1793 = vrot.lane.b32.xlu0 %v1760, 96
  %v1794 = vpop.permute.xlu0 %1793
  %1796 = vrot.lane.b32.xlu0 %v1764, 32
  %v1797 = vpop.permute.xlu0 %1796
  %1799 = vrot.lane.b32.xlu0 %v1766, 64
  %v1800 = vpop.permute.xlu0 %1799
  %1802 = vrot.lane.b32.xlu0 %v1768, 96
  %v1803 = vpop.permute.xlu0 %1802
  %1805 = vrot.lane.b32.xlu0 %v1772, 32
  %v1806 = vpop.permute.xlu0 %1805
  %1808 = vrot.lane.b32.xlu0 %v1774, 64
  %v1809 = vpop.permute.xlu0 %1808
  %1811 = vrot.lane.b32.xlu0 %v1776, 96
  %v1812 = vpop.permute.xlu0 %1811
  %v1815 = vsel %vm1681, %v1746, %v1779
  %vm1816 = vcmask 523264
  %v1818 = vsel %vm1816, %v1815, %v1782
  %vm1819 = vcmask 785408
  %v1821 = vsel %vm1819, %v1818, %v1785
  %v1825 = vsel %vm1681, %v1754, %v1788
  %v1827 = vsel %vm1816, %v1825, %v1791
  %v1829 = vsel %vm1819, %v1827, %v1794
  %v1833 = vsel %vm1681, %v1762, %v1797
  %v1835 = vsel %vm1816, %v1833, %v1800
  %v1837 = vsel %vm1819, %v1835, %v1803
  %v1841 = vsel %vm1681, %v1770, %v1806
  %v1843 = vsel %vm1816, %v1841, %v1809
  %v1845 = vsel %vm1819, %v1843, %v1812
  %1847 = vst [vmem:[#allocation3] sm:$0xff] %v1821
  %1848 = vst [vmem:[#allocation3 + $0x8] sm:$0xff] %v1829
  %1849 = vst [vmem:[#allocation3 + $0x10] sm:$0xff] %v1837
  %1850 = vst [vmem:[#allocation3 + $0x18] sm:$0xff] %v1845
  %v1851 = vld [vmem:[%s1749] sm:$0xff]
  %v1852 = vld [vmem:[%s1751] sm:$0xff]
  %s1853 = scalar_lea.vmem [#allocation2], 32
  %v1854 = vld [vmem:[%s1853] sm:$0xff]
  %s1855 = scalar_lea.vmem [#allocation2], 40
  %v1856 = vld [vmem:[%s1855] sm:$0xff]
  %v1857 = vld [vmem:[%s1757] sm:$0xff]
  %v1858 = vld [vmem:[%s1759] sm:$0xff]
  %s1859 = scalar_lea.vmem [#allocation2], 96
  %v1860 = vld [vmem:[%s1859] sm:$0xff]
  %s1861 = scalar_lea.vmem [#allocation2], 104
  %v1862 = vld [vmem:[%s1861] sm:$0xff]
  %v1863 = vld [vmem:[%s1765] sm:$0xff]
  %v1864 = vld [vmem:[%s1767] sm:$0xff]
  %s1865 = scalar_lea.vmem [#allocation2], 160
  %v1866 = vld [vmem:[%s1865] sm:$0xff]
  %s1867 = scalar_lea.vmem [#allocation2], 168
  %v1868 = vld [vmem:[%s1867] sm:$0xff]
  %v1869 = vld [vmem:[%s1773] sm:$0xff]
  %v1870 = vld [vmem:[%s1775] sm:$0xff]
  %s1871 = scalar_lea.vmem [#allocation2], 224
  %v1872 = vld [vmem:[%s1871] sm:$0xff]
  %s1873 = scalar_lea.vmem [#allocation2], 232
  %v1874 = vld [vmem:[%s1873] sm:$0xff]
  %1876 = vrot.lane.b32.xlu0 %v1852, 32
  %v1877 = vpop.permute.xlu0 %1876
  %1879 = vrot.lane.b32.xlu0 %v1854, 64
  %v1880 = vpop.permute.xlu0 %1879
  %1882 = vrot.lane.b32.xlu0 %v1856, 96
  %v1883 = vpop.permute.xlu0 %1882
  %1885 = vrot.lane.b32.xlu0 %v1858, 32
  %v1886 = vpop.permute.xlu0 %1885
  %1888 = vrot.lane.b32.xlu0 %v1860, 64
  %v1889 = vpop.permute.xlu0 %1888
  %1891 = vrot.lane.b32.xlu0 %v1862, 96
  %v1892 = vpop.permute.xlu0 %1891
  %1894 = vrot.lane.b32.xlu0 %v1864, 32
  %v1895 = vpop.permute.xlu0 %1894
  %1897 = vrot.lane.b32.xlu0 %v1866, 64
  %v1898 = vpop.permute.xlu0 %1897
  %1900 = vrot.lane.b32.xlu0 %v1868, 96
  %v1901 = vpop.permute.xlu0 %1900
  %1903 = vrot.lane.b32.xlu0 %v1870, 32
  %v1904 = vpop.permute.xlu0 %1903
  %1906 = vrot.lane.b32.xlu0 %v1872, 64
  %v1907 = vpop.permute.xlu0 %1906
  %1909 = vrot.lane.b32.xlu0 %v1874, 96
  %v1910 = vpop.permute.xlu0 %1909
  %v1913 = vsel %vm1681, %v1851, %v1877
  %v1915 = vsel %vm1816, %v1913, %v1880
  %v1917 = vsel %vm1819, %v1915, %v1883
  %v1921 = vsel %vm1681, %v1857, %v1886
  %v1923 = vsel %vm1816, %v1921, %v1889
  %v1925 = vsel %vm1819, %v1923, %v1892
  %v1929 = vsel %vm1681, %v1863, %v1895
  %v1931 = vsel %vm1816, %v1929, %v1898
  %v1933 = vsel %vm1819, %v1931, %v1901
  %v1937 = vsel %vm1681, %v1869, %v1904
  %v1939 = vsel %vm1816, %v1937, %v1907
  %v1941 = vsel %vm1819, %v1939, %v1910
  %s1943 = scalar_lea.vmem [#allocation3], 32
  %1944 = vst [vmem:[%s1943] sm:$0xff] %v1917
  %1945 = vst [vmem:[%s1943 + $0x8] sm:$0xff] %v1925
  %1946 = vst [vmem:[%s1943 + $0x10] sm:$0xff] %v1933
  %1947 = vst [vmem:[%s1943 + $0x18] sm:$0xff] %v1941
  %v1948 = vld [vmem:[%s1853] sm:$0xff]
  %v1949 = vld [vmem:[%s1855] sm:$0xff]
  %s1950 = scalar_lea.vmem [#allocation2], 48
  %v1951 = vld [vmem:[%s1950] sm:$0xff]
  %s1952 = scalar_lea.vmem [#allocation2], 56
  %v1953 = vld [vmem:[%s1952] sm:$0xff]
  %v1954 = vld [vmem:[%s1859] sm:$0xff]
  %v1955 = vld [vmem:[%s1861] sm:$0xff]
  %s1956 = scalar_lea.vmem [#allocation2], 112
  %v1957 = vld [vmem:[%s1956] sm:$0xff]
  %s1958 = scalar_lea.vmem [#allocation2], 120
  %v1959 = vld [vmem:[%s1958] sm:$0xff]
  %v1960 = vld [vmem:[%s1865] sm:$0xff]
  %v1961 = vld [vmem:[%s1867] sm:$0xff]
  %s1962 = scalar_lea.vmem [#allocation2], 176
  %v1963 = vld [vmem:[%s1962] sm:$0xff]
  %s1964 = scalar_lea.vmem [#allocation2], 184
  %v1965 = vld [vmem:[%s1964] sm:$0xff]
  %v1966 = vld [vmem:[%s1871] sm:$0xff]
  %v1967 = vld [vmem:[%s1873] sm:$0xff]
  %s1968 = scalar_lea.vmem [#allocation2], 240
  %v1969 = vld [vmem:[%s1968] sm:$0xff]
  %s1970 = scalar_lea.vmem [#allocation2], 248
  %v1971 = vld [vmem:[%s1970] sm:$0xff]
  %1973 = vrot.lane.b32.xlu0 %v1949, 32
  %v1974 = vpop.permute.xlu0 %1973
  %1976 = vrot.lane.b32.xlu0 %v1951, 64
  %v1977 = vpop.permute.xlu0 %1976
  %1979 = vrot.lane.b32.xlu0 %v1953, 96
  %v1980 = vpop.permute.xlu0 %1979
  %1982 = vrot.lane.b32.xlu0 %v1955, 32
  %v1983 = vpop.permute.xlu0 %1982
  %1985 = vrot.lane.b32.xlu0 %v1957, 64
  %v1986 = vpop.permute.xlu0 %1985
  %1988 = vrot.lane.b32.xlu0 %v1959, 96
  %v1989 = vpop.permute.xlu0 %1988
  %1991 = vrot.lane.b32.xlu0 %v1961, 32
  %v1992 = vpop.permute.xlu0 %1991
  %1994 = vrot.lane.b32.xlu0 %v1963, 64
  %v1995 = vpop.permute.xlu0 %1994
  %1997 = vrot.lane.b32.xlu0 %v1965, 96
  %v1998 = vpop.permute.xlu0 %1997
  %2000 = vrot.lane.b32.xlu0 %v1967, 32
  %v2001 = vpop.permute.xlu0 %2000
  %2003 = vrot.lane.b32.xlu0 %v1969, 64
  %v2004 = vpop.permute.xlu0 %2003
  %2006 = vrot.lane.b32.xlu0 %v1971, 96
  %v2007 = vpop.permute.xlu0 %2006
  %v2010 = vsel %vm1681, %v1948, %v1974
  %v2012 = vsel %vm1816, %v2010, %v1977
  %v2014 = vsel %vm1819, %v2012, %v1980
  %v2018 = vsel %vm1681, %v1954, %v1983
  %v2020 = vsel %vm1816, %v2018, %v1986
  %v2022 = vsel %vm1819, %v2020, %v1989
  %v2026 = vsel %vm1681, %v1960, %v1992
  %v2028 = vsel %vm1816, %v2026, %v1995
  %v2030 = vsel %vm1819, %v2028, %v1998
  %v2034 = vsel %vm1681, %v1966, %v2001
  %v2036 = vsel %vm1816, %v2034, %v2004
  %v2038 = vsel %vm1819, %v2036, %v2007
  %s2040 = scalar_lea.vmem [#allocation3], 64
  %2041 = vst [vmem:[%s2040] sm:$0xff] %v2014
  %2042 = vst [vmem:[%s2040 + $0x8] sm:$0xff] %v2022
  %2043 = vst [vmem:[%s2040 + $0x10] sm:$0xff] %v2030
  %2044 = vst [vmem:[%s2040 + $0x18] sm:$0xff] %v2038
  %v2045 = vld [vmem:[%s1761] sm:$0xff]
  %v2046 = vld [vmem:[%s1763] sm:$0xff]
  %v2047 = vld [vmem:[%s1765] sm:$0xff]
  %v2048 = vld [vmem:[%s1767] sm:$0xff]
  %v2049 = vld [vmem:[%s1769] sm:$0xff]
  %v2050 = vld [vmem:[%s1771] sm:$0xff]
  %v2051 = vld [vmem:[%s1773] sm:$0xff]
  %v2052 = vld [vmem:[%s1775] sm:$0xff]
  %s2053 = scalar_lea.vmem [#allocation2], 256
  %v2054 = vld [vmem:[%s2053] sm:$0xff]
  %s2055 = scalar_lea.vmem [#allocation2], 264
  %v2056 = vld [vmem:[%s2055] sm:$0xff]
  %s2057 = scalar_lea.vmem [#allocation2], 272
  %v2058 = vld [vmem:[%s2057] sm:$0xff]
  %s2059 = scalar_lea.vmem [#allocation2], 280
  %v2060 = vld [vmem:[%s2059] sm:$0xff]
  %s2061 = scalar_lea.vmem [#allocation2], 320
  %v2062 = vld [vmem:[%s2061] sm:$0xff]
  %s2063 = scalar_lea.vmem [#allocation2], 328
  %v2064 = vld [vmem:[%s2063] sm:$0xff]
  %s2065 = scalar_lea.vmem [#allocation2], 336
  %v2066 = vld [vmem:[%s2065] sm:$0xff]
  %s2067 = scalar_lea.vmem [#allocation2], 344
  %v2068 = vld [vmem:[%s2067] sm:$0xff]
  %2070 = vrot.lane.b32.xlu0 %v2046, 32
  %v2071 = vpop.permute.xlu0 %2070
  %2073 = vrot.lane.b32.xlu0 %v2047, 64
  %v2074 = vpop.permute.xlu0 %2073
  %2076 = vrot.lane.b32.xlu0 %v2048, 96
  %v2077 = vpop.permute.xlu0 %2076
  %2079 = vrot.lane.b32.xlu0 %v2050, 32
  %v2080 = vpop.permute.xlu0 %2079
  %2082 = vrot.lane.b32.xlu0 %v2051, 64
  %v2083 = vpop.permute.xlu0 %2082
  %2085 = vrot.lane.b32.xlu0 %v2052, 96
  %v2086 = vpop.permute.xlu0 %2085
  %2088 = vrot.lane.b32.xlu0 %v2056, 32
  %v2089 = vpop.permute.xlu0 %2088
  %2091 = vrot.lane.b32.xlu0 %v2058, 64
  %v2092 = vpop.permute.xlu0 %2091
  %2094 = vrot.lane.b32.xlu0 %v2060, 96
  %v2095 = vpop.permute.xlu0 %2094
  %2097 = vrot.lane.b32.xlu0 %v2064, 32
  %v2098 = vpop.permute.xlu0 %2097
  %2100 = vrot.lane.b32.xlu0 %v2066, 64
  %v2101 = vpop.permute.xlu0 %2100
  %2103 = vrot.lane.b32.xlu0 %v2068, 96
  %v2104 = vpop.permute.xlu0 %2103
  %v2107 = vsel %vm1681, %v2045, %v2071
  %v2109 = vsel %vm1816, %v2107, %v2074
  %v2111 = vsel %vm1819, %v2109, %v2077
  %v2115 = vsel %vm1681, %v2049, %v2080
  %v2117 = vsel %vm1816, %v2115, %v2083
  %v2119 = vsel %vm1819, %v2117, %v2086
  %v2123 = vsel %vm1681, %v2054, %v2089
  %v2125 = vsel %vm1816, %v2123, %v2092
  %v2127 = vsel %vm1819, %v2125, %v2095
  %v2131 = vsel %vm1681, %v2062, %v2098
  %v2133 = vsel %vm1816, %v2131, %v2101
  %v2135 = vsel %vm1819, %v2133, %v2104
  %s2137 = scalar_lea.vmem [#allocation3], 96
  %2138 = vst [vmem:[%s2137] sm:$0xff] %v2111
  %2139 = vst [vmem:[%s2137 + $0x8] sm:$0xff] %v2119
  %2140 = vst [vmem:[%s2137 + $0x10] sm:$0xff] %v2127
  %2141 = vst [vmem:[%s2137 + $0x18] sm:$0xff] %v2135
  %v2142 = vld [vmem:[%s1765] sm:$0xff]
  %v2143 = vld [vmem:[%s1767] sm:$0xff]
  %v2144 = vld [vmem:[%s1865] sm:$0xff]
  %v2145 = vld [vmem:[%s1867] sm:$0xff]
  %v2146 = vld [vmem:[%s1773] sm:$0xff]
  %v2147 = vld [vmem:[%s1775] sm:$0xff]
  %v2148 = vld [vmem:[%s1871] sm:$0xff]
  %v2149 = vld [vmem:[%s1873] sm:$0xff]
  %v2150 = vld [vmem:[%s2057] sm:$0xff]
  %v2151 = vld [vmem:[%s2059] sm:$0xff]
  %s2152 = scalar_lea.vmem [#allocation2], 288
  %v2153 = vld [vmem:[%s2152] sm:$0xff]
  %s2154 = scalar_lea.vmem [#allocation2], 296
  %v2155 = vld [vmem:[%s2154] sm:$0xff]
  %v2156 = vld [vmem:[%s2065] sm:$0xff]
  %v2157 = vld [vmem:[%s2067] sm:$0xff]
  %s2158 = scalar_lea.vmem [#allocation2], 352
  %v2159 = vld [vmem:[%s2158] sm:$0xff]
  %s2160 = scalar_lea.vmem [#allocation2], 360
  %v2161 = vld [vmem:[%s2160] sm:$0xff]
  %2163 = vrot.lane.b32.xlu0 %v2143, 32
  %v2164 = vpop.permute.xlu0 %2163
  %2166 = vrot.lane.b32.xlu0 %v2144, 64
  %v2167 = vpop.permute.xlu0 %2166
  %2169 = vrot.lane.b32.xlu0 %v2145, 96
  %v2170 = vpop.permute.xlu0 %2169
  %2172 = vrot.lane.b32.xlu0 %v2147, 32
  %v2173 = vpop.permute.xlu0 %2172
  %2175 = vrot.lane.b32.xlu0 %v2148, 64
  %v2176 = vpop.permute.xlu0 %2175
  %2178 = vrot.lane.b32.xlu0 %v2149, 96
  %v2179 = vpop.permute.xlu0 %2178
  %2181 = vrot.lane.b32.xlu0 %v2151, 32
  %v2182 = vpop.permute.xlu0 %2181
  %2184 = vrot.lane.b32.xlu0 %v2153, 64
  %v2185 = vpop.permute.xlu0 %2184
  %2187 = vrot.lane.b32.xlu0 %v2155, 96
  %v2188 = vpop.permute.xlu0 %2187
  %2190 = vrot.lane.b32.xlu0 %v2157, 32
  %v2191 = vpop.permute.xlu0 %2190
  %2193 = vrot.lane.b32.xlu0 %v2159, 64
  %v2194 = vpop.permute.xlu0 %2193
  %2196 = vrot.lane.b32.xlu0 %v2161, 96
  %v2197 = vpop.permute.xlu0 %2196
  %v2200 = vsel %vm1681, %v2142, %v2164
  %v2202 = vsel %vm1816, %v2200, %v2167
  %v2204 = vsel %vm1819, %v2202, %v2170
  %v2208 = vsel %vm1681, %v2146, %v2173
  %v2210 = vsel %vm1816, %v2208, %v2176
  %v2212 = vsel %vm1819, %v2210, %v2179
  %v2216 = vsel %vm1681, %v2150, %v2182
  %v2218 = vsel %vm1816, %v2216, %v2185
  %v2220 = vsel %vm1819, %v2218, %v2188
  %v2224 = vsel %vm1681, %v2156, %v2191
  %v2226 = vsel %vm1816, %v2224, %v2194
  %v2228 = vsel %vm1819, %v2226, %v2197
  %s2230 = scalar_lea.vmem [#allocation3], 128
  %2231 = vst [vmem:[%s2230] sm:$0xff] %v2204
  %2232 = vst [vmem:[%s2230 + $0x8] sm:$0xff] %v2212
  %2233 = vst [vmem:[%s2230 + $0x10] sm:$0xff] %v2220
  %2234 = vst [vmem:[%s2230 + $0x18] sm:$0xff] %v2228
  %v2235 = vld [vmem:[%s1865] sm:$0xff]
  %v2236 = vld [vmem:[%s1867] sm:$0xff]
  %v2237 = vld [vmem:[%s1962] sm:$0xff]
  %v2238 = vld [vmem:[%s1964] sm:$0xff]
  %v2239 = vld [vmem:[%s1871] sm:$0xff]
  %v2240 = vld [vmem:[%s1873] sm:$0xff]
  %v2241 = vld [vmem:[%s1968] sm:$0xff]
  %v2242 = vld [vmem:[%s1970] sm:$0xff]
  %v2243 = vld [vmem:[%s2152] sm:$0xff]
  %v2244 = vld [vmem:[%s2154] sm:$0xff]
  %s2245 = scalar_lea.vmem [#allocation2], 304
  %v2246 = vld [vmem:[%s2245] sm:$0xff]
  %s2247 = scalar_lea.vmem [#allocation2], 312
  %v2248 = vld [vmem:[%s2247] sm:$0xff]
  %v2249 = vld [vmem:[%s2158] sm:$0xff]
  %v2250 = vld [vmem:[%s2160] sm:$0xff]
  %s2251 = scalar_lea.vmem [#allocation2], 368
  %v2252 = vld [vmem:[%s2251] sm:$0xff]
  %s2253 = scalar_lea.vmem [#allocation2], 376
  %v2254 = vld [vmem:[%s2253] sm:$0xff]
  %2256 = vrot.lane.b32.xlu0 %v2236, 32
  %v2257 = vpop.permute.xlu0 %2256
  %2259 = vrot.lane.b32.xlu0 %v2237, 64
  %v2260 = vpop.permute.xlu0 %2259
  %2262 = vrot.lane.b32.xlu0 %v2238, 96
  %v2263 = vpop.permute.xlu0 %2262
  %2265 = vrot.lane.b32.xlu0 %v2240, 32
  %v2266 = vpop.permute.xlu0 %2265
  %2268 = vrot.lane.b32.xlu0 %v2241, 64
  %v2269 = vpop.permute.xlu0 %2268
  %2271 = vrot.lane.b32.xlu0 %v2242, 96
  %v2272 = vpop.permute.xlu0 %2271
  %2274 = vrot.lane.b32.xlu0 %v2244, 32
  %v2275 = vpop.permute.xlu0 %2274
  %2277 = vrot.lane.b32.xlu0 %v2246, 64
  %v2278 = vpop.permute.xlu0 %2277
  %2280 = vrot.lane.b32.xlu0 %v2248, 96
  %v2281 = vpop.permute.xlu0 %2280
  %2283 = vrot.lane.b32.xlu0 %v2250, 32
  %v2284 = vpop.permute.xlu0 %2283
  %2286 = vrot.lane.b32.xlu0 %v2252, 64
  %v2287 = vpop.permute.xlu0 %2286
  %2289 = vrot.lane.b32.xlu0 %v2254, 96
  %v2290 = vpop.permute.xlu0 %2289
  %v2293 = vsel %vm1681, %v2235, %v2257
  %v2295 = vsel %vm1816, %v2293, %v2260
  %v2297 = vsel %vm1819, %v2295, %v2263
  %v2301 = vsel %vm1681, %v2239, %v2266
  %v2303 = vsel %vm1816, %v2301, %v2269
  %v2305 = vsel %vm1819, %v2303, %v2272
  %v2309 = vsel %vm1681, %v2243, %v2275
  %v2311 = vsel %vm1816, %v2309, %v2278
  %v2313 = vsel %vm1819, %v2311, %v2281
  %v2317 = vsel %vm1681, %v2249, %v2284
  %v2319 = vsel %vm1816, %v2317, %v2287
  %v2321 = vsel %vm1819, %v2319, %v2290
  %s2323 = scalar_lea.vmem [#allocation3], 160
  %2324 = vst [vmem:[%s2323] sm:$0xff] %v2297
  %2325 = vst [vmem:[%s2323 + $0x8] sm:$0xff] %v2305
  %2326 = vst [vmem:[%s2323 + $0x10] sm:$0xff] %v2313
  %2327 = vst [vmem:[%s2323 + $0x18] sm:$0xff] %v2321
  %v2328 = vld [vmem:[%s2053] sm:$0xff]
  %v2329 = vld [vmem:[%s2055] sm:$0xff]
  %v2330 = vld [vmem:[%s2057] sm:$0xff]
  %v2331 = vld [vmem:[%s2059] sm:$0xff]
  %v2332 = vld [vmem:[%s2061] sm:$0xff]
  %v2333 = vld [vmem:[%s2063] sm:$0xff]
  %v2334 = vld [vmem:[%s2065] sm:$0xff]
  %v2335 = vld [vmem:[%s2067] sm:$0xff]
  %s2336 = scalar_lea.vmem [#allocation2], 384
  %v2337 = vld [vmem:[%s2336] sm:$0xff]
  %s2338 = scalar_lea.vmem [#allocation2], 392
  %v2339 = vld [vmem:[%s2338] sm:$0xff]
  %s2340 = scalar_lea.vmem [#allocation2], 400
  %v2341 = vld [vmem:[%s2340] sm:$0xff]
  %s2342 = scalar_lea.vmem [#allocation2], 408
  %v2343 = vld [vmem:[%s2342] sm:$0xff]
  %s2344 = scalar_lea.vmem [#allocation2], 448
  %v2345 = vld [vmem:[%s2344] sm:$0xff]
  %s2346 = scalar_lea.vmem [#allocation2], 456
  %v2347 = vld [vmem:[%s2346] sm:$0xff]
  %s2348 = scalar_lea.vmem [#allocation2], 464
  %v2349 = vld [vmem:[%s2348] sm:$0xff]
  %s2350 = scalar_lea.vmem [#allocation2], 472
  %v2351 = vld [vmem:[%s2350] sm:$0xff]
  %2353 = vrot.lane.b32.xlu0 %v2329, 32
  %v2354 = vpop.permute.xlu0 %2353
  %2356 = vrot.lane.b32.xlu0 %v2330, 64
  %v2357 = vpop.permute.xlu0 %2356
  %2359 = vrot.lane.b32.xlu0 %v2331, 96
  %v2360 = vpop.permute.xlu0 %2359
  %2362 = vrot.lane.b32.xlu0 %v2333, 32
  %v2363 = vpop.permute.xlu0 %2362
  %2365 = vrot.lane.b32.xlu0 %v2334, 64
  %v2366 = vpop.permute.xlu0 %2365
  %2368 = vrot.lane.b32.xlu0 %v2335, 96
  %v2369 = vpop.permute.xlu0 %2368
  %2371 = vrot.lane.b32.xlu0 %v2339, 32
  %v2372 = vpop.permute.xlu0 %2371
  %2374 = vrot.lane.b32.xlu0 %v2341, 64
  %v2375 = vpop.permute.xlu0 %2374
  %2377 = vrot.lane.b32.xlu0 %v2343, 96
  %v2378 = vpop.permute.xlu0 %2377
  %2380 = vrot.lane.b32.xlu0 %v2347, 32
  %v2381 = vpop.permute.xlu0 %2380
  %2383 = vrot.lane.b32.xlu0 %v2349, 64
  %v2384 = vpop.permute.xlu0 %2383
  %2386 = vrot.lane.b32.xlu0 %v2351, 96
  %v2387 = vpop.permute.xlu0 %2386
  %v2390 = vsel %vm1681, %v2328, %v2354
  %v2392 = vsel %vm1816, %v2390, %v2357
  %v2394 = vsel %vm1819, %v2392, %v2360
  %v2398 = vsel %vm1681, %v2332, %v2363
  %v2400 = vsel %vm1816, %v2398, %v2366
  %v2402 = vsel %vm1819, %v2400, %v2369
  %v2406 = vsel %vm1681, %v2337, %v2372
  %v2408 = vsel %vm1816, %v2406, %v2375
  %v2410 = vsel %vm1819, %v2408, %v2378
  %v2414 = vsel %vm1681, %v2345, %v2381
  %v2416 = vsel %vm1816, %v2414, %v2384
  %v2418 = vsel %vm1819, %v2416, %v2387
  %s2420 = scalar_lea.vmem [#allocation3], 192
  %2421 = vst [vmem:[%s2420] sm:$0xff] %v2394
  %2422 = vst [vmem:[%s2420 + $0x8] sm:$0xff] %v2402
  %2423 = vst [vmem:[%s2420 + $0x10] sm:$0xff] %v2410
  %2424 = vst [vmem:[%s2420 + $0x18] sm:$0xff] %v2418
  %v2425 = vld [vmem:[%s2057] sm:$0xff]
  %v2426 = vld [vmem:[%s2059] sm:$0xff]
  %v2427 = vld [vmem:[%s2152] sm:$0xff]
  %v2428 = vld [vmem:[%s2154] sm:$0xff]
  %v2429 = vld [vmem:[%s2065] sm:$0xff]
  %v2430 = vld [vmem:[%s2067] sm:$0xff]
  %v2431 = vld [vmem:[%s2158] sm:$0xff]
  %v2432 = vld [vmem:[%s2160] sm:$0xff]
  %v2433 = vld [vmem:[%s2340] sm:$0xff]
  %v2434 = vld [vmem:[%s2342] sm:$0xff]
  %s2435 = scalar_lea.vmem [#allocation2], 416
  %v2436 = vld [vmem:[%s2435] sm:$0xff]
  %s2437 = scalar_lea.vmem [#allocation2], 424
  %v2438 = vld [vmem:[%s2437] sm:$0xff]
  %v2439 = vld [vmem:[%s2348] sm:$0xff]
  %v2440 = vld [vmem:[%s2350] sm:$0xff]
  %s2441 = scalar_lea.vmem [#allocation2], 480
  %v2442 = vld [vmem:[%s2441] sm:$0xff]
  %s2443 = scalar_lea.vmem [#allocation2], 488
  %v2444 = vld [vmem:[%s2443] sm:$0xff]
  %2446 = vrot.lane.b32.xlu0 %v2426, 32
  %v2447 = vpop.permute.xlu0 %2446
  %2449 = vrot.lane.b32.xlu0 %v2427, 64
  %v2450 = vpop.permute.xlu0 %2449
  %2452 = vrot.lane.b32.xlu0 %v2428, 96
  %v2453 = vpop.permute.xlu0 %2452
  %2455 = vrot.lane.b32.xlu0 %v2430, 32
  %v2456 = vpop.permute.xlu0 %2455
  %2458 = vrot.lane.b32.xlu0 %v2431, 64
  %v2459 = vpop.permute.xlu0 %2458
  %2461 = vrot.lane.b32.xlu0 %v2432, 96
  %v2462 = vpop.permute.xlu0 %2461
  %2464 = vrot.lane.b32.xlu0 %v2434, 32
  %v2465 = vpop.permute.xlu0 %2464
  %2467 = vrot.lane.b32.xlu0 %v2436, 64
  %v2468 = vpop.permute.xlu0 %2467
  %2470 = vrot.lane.b32.xlu0 %v2438, 96
  %v2471 = vpop.permute.xlu0 %2470
  %2473 = vrot.lane.b32.xlu0 %v2440, 32
  %v2474 = vpop.permute.xlu0 %2473
  %2476 = vrot.lane.b32.xlu0 %v2442, 64
  %v2477 = vpop.permute.xlu0 %2476
  %2479 = vrot.lane.b32.xlu0 %v2444, 96
  %v2480 = vpop.permute.xlu0 %2479
  %v2483 = vsel %vm1681, %v2425, %v2447
  %v2485 = vsel %vm1816, %v2483, %v2450
  %v2487 = vsel %vm1819, %v2485, %v2453
  %v2491 = vsel %vm1681, %v2429, %v2456
  %v2493 = vsel %vm1816, %v2491, %v2459
  %v2495 = vsel %vm1819, %v2493, %v2462
  %v2499 = vsel %vm1681, %v2433, %v2465
  %v2501 = vsel %vm1816, %v2499, %v2468
  %v2503 = vsel %vm1819, %v2501, %v2471
  %v2507 = vsel %vm1681, %v2439, %v2474
  %v2509 = vsel %vm1816, %v2507, %v2477
  %v2511 = vsel %vm1819, %v2509, %v2480
  %s2513 = scalar_lea.vmem [#allocation3], 224
  %2514 = vst [vmem:[%s2513] sm:$0xff] %v2487
  %2515 = vst [vmem:[%s2513 + $0x8] sm:$0xff] %v2495
  %2516 = vst [vmem:[%s2513 + $0x10] sm:$0xff] %v2503
  %2517 = vst [vmem:[%s2513 + $0x18] sm:$0xff] %v2511
  %v2518 = vld [vmem:[%s2152] sm:$0xff]
  %v2519 = vld [vmem:[%s2154] sm:$0xff]
  %v2520 = vld [vmem:[%s2245] sm:$0xff]
  %v2521 = vld [vmem:[%s2247] sm:$0xff]
  %v2522 = vld [vmem:[%s2158] sm:$0xff]
  %v2523 = vld [vmem:[%s2160] sm:$0xff]
  %v2524 = vld [vmem:[%s2251] sm:$0xff]
  %v2525 = vld [vmem:[%s2253] sm:$0xff]
  %v2526 = vld [vmem:[%s2435] sm:$0xff]
  %v2527 = vld [vmem:[%s2437] sm:$0xff]
  %s2528 = scalar_lea.vmem [#allocation2], 432
  %v2529 = vld [vmem:[%s2528] sm:$0xff]
  %s2530 = scalar_lea.vmem [#allocation2], 440
  %v2531 = vld [vmem:[%s2530] sm:$0xff]
  %v2532 = vld [vmem:[%s2441] sm:$0xff]
  %v2533 = vld [vmem:[%s2443] sm:$0xff]
  %s2534 = scalar_lea.vmem [#allocation2], 496
  %v2535 = vld [vmem:[%s2534] sm:$0xff]
  %s2536 = scalar_lea.vmem [#allocation2], 504
  %v2537 = vld [vmem:[%s2536] sm:$0xff]
  %2539 = vrot.lane.b32.xlu0 %v2519, 32
  %v2540 = vpop.permute.xlu0 %2539
  %2542 = vrot.lane.b32.xlu0 %v2520, 64
  %v2543 = vpop.permute.xlu0 %2542
  %2545 = vrot.lane.b32.xlu0 %v2521, 96
  %v2546 = vpop.permute.xlu0 %2545
  %2548 = vrot.lane.b32.xlu0 %v2523, 32
  %v2549 = vpop.permute.xlu0 %2548
  %2551 = vrot.lane.b32.xlu0 %v2524, 64
  %v2552 = vpop.permute.xlu0 %2551
  %2554 = vrot.lane.b32.xlu0 %v2525, 96
  %v2555 = vpop.permute.xlu0 %2554
  %2557 = vrot.lane.b32.xlu0 %v2527, 32
  %v2558 = vpop.permute.xlu0 %2557
  %2560 = vrot.lane.b32.xlu0 %v2529, 64
  %v2561 = vpop.permute.xlu0 %2560
  %2563 = vrot.lane.b32.xlu0 %v2531, 96
  %v2564 = vpop.permute.xlu0 %2563
  %2566 = vrot.lane.b32.xlu0 %v2533, 32
  %v2567 = vpop.permute.xlu0 %2566
  %2569 = vrot.lane.b32.xlu0 %v2535, 64
  %v2570 = vpop.permute.xlu0 %2569
  %2572 = vrot.lane.b32.xlu0 %v2537, 96
  %v2573 = vpop.permute.xlu0 %2572
  %v2576 = vsel %vm1681, %v2518, %v2540
  %v2578 = vsel %vm1816, %v2576, %v2543
  %v2580 = vsel %vm1819, %v2578, %v2546
  %v2584 = vsel %vm1681, %v2522, %v2549
  %v2586 = vsel %vm1816, %v2584, %v2552
  %v2588 = vsel %vm1819, %v2586, %v2555
  %v2592 = vsel %vm1681, %v2526, %v2558
  %v2594 = vsel %vm1816, %v2592, %v2561
  %v2596 = vsel %vm1819, %v2594, %v2564
  %v2600 = vsel %vm1681, %v2532, %v2567
  %v2602 = vsel %vm1816, %v2600, %v2570
  %v2604 = vsel %vm1819, %v2602, %v2573
  %s2606 = scalar_lea.vmem [#allocation3], 256
  %2607 = vst [vmem:[%s2606] sm:$0xff] %v2580
  %2608 = vst [vmem:[%s2606 + $0x8] sm:$0xff] %v2588
  %2609 = vst [vmem:[%s2606 + $0x10] sm:$0xff] %v2596
  %2610 = vst [vmem:[%s2606 + $0x18] sm:$0xff] %v2604
  %v2611 = vld [vmem:[#allocation3] sm:$0xff]
  %v2612 = vld [vmem:[#allocation3 + $0x8] sm:$0xff]
  %v2613 = vld [vmem:[#allocation3 + $0x10] sm:$0xff]
  %v2614 = vld [vmem:[#allocation3 + $0x18] sm:$0xff]
  %v2615 = vld [vmem:[#allocation3 + $0x20] sm:$0xff]
  %v2616 = vld [vmem:[#allocation3 + $0x28] sm:$0xff]
  %v2617 = vld [vmem:[#allocation3 + $0x30] sm:$0xff]
  %v2618 = vld [vmem:[#allocation3 + $0x38] sm:$0xff]
  %v2619 = vld [vmem:[#allocation3 + $0x40] sm:$0xff]
  %v2620 = vld [vmem:[#allocation3 + $0x48] sm:$0xff]
  %v2621 = vld [vmem:[#allocation3 + $0x50] sm:$0xff]
  %v2622 = vld [vmem:[#allocation3 + $0x58] sm:$0xff]
  %v2623 = vld [vmem:[#allocation3 + $0x60] sm:$0xff]
  %v2624 = vld [vmem:[#allocation3 + $0x68] sm:$0xff]
  %v2625 = vld [vmem:[#allocation3 + $0x70] sm:$0xff]
  %v2626 = vld [vmem:[#allocation3 + $0x78] sm:$0xff]
  %v2627 = vld [vmem:[#allocation3 + $0x80] sm:$0xff]
  %v2628 = vld [vmem:[#allocation3 + $0x88] sm:$0xff]
  %v2629 = vld [vmem:[#allocation3 + $0x90] sm:$0xff]
  %v2630 = vld [vmem:[#allocation3 + $0x98] sm:$0xff]
  %v2631 = vld [vmem:[#allocation3 + $0xa0] sm:$0xff]
  %v2632 = vld [vmem:[#allocation3 + $0xa8] sm:$0xff]
  %v2633 = vld [vmem:[#allocation3 + $0xb0] sm:$0xff]
  %v2634 = vld [vmem:[#allocation3 + $0xb8] sm:$0xff]
  %v2635 = vld [vmem:[#allocation3 + $0xc0] sm:$0xff]
  %v2636 = vld [vmem:[#allocation3 + $0xc8] sm:$0xff]
  %v2637 = vld [vmem:[#allocation3 + $0xd0] sm:$0xff]
  %v2638 = vld [vmem:[#allocation3 + $0xd8] sm:$0xff]
  %v2639 = vld [vmem:[#allocation3 + $0xe0] sm:$0xff]
  %v2640 = vld [vmem:[#allocation3 + $0xe8] sm:$0xff]
  %v2641 = vld [vmem:[#allocation3 + $0xf0] sm:$0xff]
  %v2642 = vld [vmem:[#allocation3 + $0xf8] sm:$0xff]
  %v2643 = vld [vmem:[#allocation3 + $0x100] sm:$0xff]
  %v2644 = vld [vmem:[#allocation3 + $0x108] sm:$0xff]
  %v2645 = vld [vmem:[#allocation3 + $0x110] sm:$0xff]
  %v2646 = vld [vmem:[#allocation3 + $0x118] sm:$0xff]
  %v2647 = vld [vmem:[%s3] sm:$0xf]
  %v2648 = vld [vmem:[%s3 + $0x4] sm:$0xf]
  %v2649 = vld [vmem:[%s3 + $0x8] sm:$0xf]
  %v2650 = vld [vmem:[%s3 + $0xc] sm:$0xf]
  %v2651 = vld [vmem:[%s3 + $0x10] sm:$0xf]
  %v2652 = vld [vmem:[%s3 + $0x14] sm:$0xf]
  %v2653 = vld [vmem:[%s3 + $0x18] sm:$0xf]
  %v2654 = vld [vmem:[%s3 + $0x1c] sm:$0xf]
  %v2655 = vld [vmem:[%s3 + $0x20] sm:$0xf]
  %v2656 = vld [vmem:[%s3 + $0x24] sm:$0xf]
  %v2657 = vld [vmem:[%s3 + $0x28] sm:$0xf]
  %v2658 = vld [vmem:[%s3 + $0x2c] sm:$0xf]
  %v2659 = vld [vmem:[%s3 + $0x30] sm:$0xf]
  %v2660 = vld [vmem:[%s3 + $0x34] sm:$0xf]
  %v2661 = vld [vmem:[%s3 + $0x38] sm:$0xf]
  %v2662 = vld [vmem:[%s3 + $0x3c] sm:$0xf]
  %v2663 = vld [vmem:[%s3 + $0x40] sm:$0xf]
  %v2664 = vld [vmem:[%s3 + $0x44] sm:$0xf]
  %v2665 = vld [vmem:[%s3 + $0x48] sm:$0xf]
  %v2666 = vld [vmem:[%s3 + $0x4c] sm:$0xf]
  %v2667 = vld [vmem:[%s3 + $0x50] sm:$0xf]
  %v2668 = vld [vmem:[%s3 + $0x54] sm:$0xf]
  %v2669 = vld [vmem:[%s3 + $0x58] sm:$0xf]
  %v2670 = vld [vmem:[%s3 + $0x5c] sm:$0xf]
  %v2671 = vld [vmem:[%s3 + $0x60] sm:$0xf]
  %v2672 = vld [vmem:[%s3 + $0x64] sm:$0xf]
  %v2673 = vld [vmem:[%s3 + $0x68] sm:$0xf]
  %v2674 = vld [vmem:[%s3 + $0x6c] sm:$0xf]
  %v2675 = vld [vmem:[%s3 + $0x70] sm:$0xf]
  %v2676 = vld [vmem:[%s3 + $0x74] sm:$0xf]
  %v2677 = vld [vmem:[%s3 + $0x78] sm:$0xf]
  %v2678 = vld [vmem:[%s3 + $0x7c] sm:$0xf]
  %v2679 = vld [vmem:[%s3 + $0x80] sm:$0xf]
  %v2680 = vld [vmem:[%s3 + $0x84] sm:$0xf]
  %v2681 = vld [vmem:[%s3 + $0x88] sm:$0xf]
  %v2682 = vld [vmem:[%s3 + $0x8c] sm:$0xf]
  %v2683 = vld [vmem:[%s3 + $0x90] sm:$0xf]
  %v2684 = vld [vmem:[%s3 + $0x94] sm:$0xf]
  %v2685 = vld [vmem:[%s3 + $0x98] sm:$0xf]
  %v2686 = vld [vmem:[%s3 + $0x9c] sm:$0xf]
  %v2687 = vld [vmem:[%s3 + $0xa0] sm:$0xf]
  %v2688 = vld [vmem:[%s3 + $0xa4] sm:$0xf]
  %v2689 = vld [vmem:[%s3 + $0xa8] sm:$0xf]
  %v2690 = vld [vmem:[%s3 + $0xac] sm:$0xf]
  %v2691 = vld [vmem:[%s3 + $0xb0] sm:$0xf]
  %v2692 = vld [vmem:[%s3 + $0xb4] sm:$0xf]
  %v2693 = vld [vmem:[%s3 + $0xb8] sm:$0xf]
  %v2694 = vld [vmem:[%s3 + $0xbc] sm:$0xf]
  %v2695 = vld [vmem:[%s3 + $0xc0] sm:$0xf]
  %v2696 = vld [vmem:[%s3 + $0xc4] sm:$0xf]
  %v2697 = vld [vmem:[%s3 + $0xc8] sm:$0xf]
  %v2698 = vld [vmem:[%s3 + $0xcc] sm:$0xf]
  %v2699 = vld [vmem:[%s3 + $0xd0] sm:$0xf]
  %v2700 = vld [vmem:[%s3 + $0xd4] sm:$0xf]
  %v2701 = vld [vmem:[%s3 + $0xd8] sm:$0xf]
  %v2702 = vld [vmem:[%s3 + $0xdc] sm:$0xf]
  %v2703 = vld [vmem:[%s3 + $0xe0] sm:$0xf]
  %v2704 = vld [vmem:[%s3 + $0xe4] sm:$0xf]
  %v2705 = vld [vmem:[%s3 + $0xe8] sm:$0xf]
  %v2706 = vld [vmem:[%s3 + $0xec] sm:$0xf]
  %v2707 = vld [vmem:[%s3 + $0xf0] sm:$0xf]
  %v2708 = vld [vmem:[%s3 + $0xf4] sm:$0xf]
  %v2709 = vld [vmem:[%s3 + $0xf8] sm:$0xf]
  %v2710 = vld [vmem:[%s3 + $0xfc] sm:$0xf]
  %v2711 = vld [vmem:[%s4] sm:$0x1]
  %v2713 = vlaneseq
  %v2714 = vshrl.u32 %v2713, 7
  %v2715 = vsub.s32 0, %v2714
  %v2716 = vrot.slane %v2711, %v2715
  %v2782 = vunpack.c.l.b16 %v2647
  %v2783 = vunpack.c.l.b16 %v2648
  %v2784 = vunpack.c.l.b16 %v2649
  %v2785 = vunpack.c.l.b16 %v2650
  %v2786 = vunpack.c.l.b16 %v2651
  %v2787 = vunpack.c.l.b16 %v2652
  %v2788 = vunpack.c.l.b16 %v2653
  %v2789 = vunpack.c.l.b16 %v2654
  %v2790 = vunpack.c.l.b16 %v2655
  %v2791 = vunpack.c.l.b16 %v2656
  %v2792 = vunpack.c.l.b16 %v2657
  %v2793 = vunpack.c.l.b16 %v2658
  %v2794 = vunpack.c.l.b16 %v2659
  %v2795 = vunpack.c.l.b16 %v2660
  %v2796 = vunpack.c.l.b16 %v2661
  %v2797 = vunpack.c.l.b16 %v2662
  %v2798 = vunpack.c.l.b16 %v2663
  %v2799 = vunpack.c.l.b16 %v2664
  %v2800 = vunpack.c.l.b16 %v2665
  %v2801 = vunpack.c.l.b16 %v2666
  %v2802 = vunpack.c.l.b16 %v2667
  %v2803 = vunpack.c.l.b16 %v2668
  %v2804 = vunpack.c.l.b16 %v2669
  %v2805 = vunpack.c.l.b16 %v2670
  %v2806 = vunpack.c.l.b16 %v2671
  %v2807 = vunpack.c.l.b16 %v2672
  %v2808 = vunpack.c.l.b16 %v2673
  %v2809 = vunpack.c.l.b16 %v2674
  %v2810 = vunpack.c.l.b16 %v2675
  %v2811 = vunpack.c.l.b16 %v2676
  %v2812 = vunpack.c.l.b16 %v2677
  %v2813 = vunpack.c.l.b16 %v2678
  %v2814 = vunpack.c.l.b16 %v2679
  %v2815 = vunpack.c.l.b16 %v2680
  %v2816 = vunpack.c.l.b16 %v2681
  %v2817 = vunpack.c.l.b16 %v2682
  %v2818 = vunpack.c.l.b16 %v2683
  %v2819 = vunpack.c.l.b16 %v2684
  %v2820 = vunpack.c.l.b16 %v2685
  %v2821 = vunpack.c.l.b16 %v2686
  %v2822 = vunpack.c.l.b16 %v2687
  %v2823 = vunpack.c.l.b16 %v2688
  %v2824 = vunpack.c.l.b16 %v2689
  %v2825 = vunpack.c.l.b16 %v2690
  %v2826 = vunpack.c.l.b16 %v2691
  %v2827 = vunpack.c.l.b16 %v2692
  %v2828 = vunpack.c.l.b16 %v2693
  %v2829 = vunpack.c.l.b16 %v2694
  %v2830 = vunpack.c.l.b16 %v2695
  %v2831 = vunpack.c.l.b16 %v2696
  %v2832 = vunpack.c.l.b16 %v2697
  %v2833 = vunpack.c.l.b16 %v2698
  %v2834 = vunpack.c.l.b16 %v2699
  %v2835 = vunpack.c.l.b16 %v2700
  %v2836 = vunpack.c.l.b16 %v2701
  %v2837 = vunpack.c.l.b16 %v2702
  %v2838 = vunpack.c.l.b16 %v2703
  %v2839 = vunpack.c.l.b16 %v2704
  %v2840 = vunpack.c.l.b16 %v2705
  %v2841 = vunpack.c.l.b16 %v2706
  %v2842 = vunpack.c.l.b16 %v2707
  %v2843 = vunpack.c.l.b16 %v2708
  %v2844 = vunpack.c.l.b16 %v2709
  %v2845 = vunpack.c.l.b16 %v2710
  %v2846 = vpack.c.b16 %v2783, %v2782
  %v2847 = vpack.c.b16 %v2785, %v2784
  %v2848 = vpack.c.b16 %v2787, %v2786
  %v2849 = vpack.c.b16 %v2789, %v2788
  %v2850 = vpack.c.b16 %v2791, %v2790
  %v2851 = vpack.c.b16 %v2793, %v2792
  %v2852 = vpack.c.b16 %v2795, %v2794
  %v2853 = vpack.c.b16 %v2797, %v2796
  %v2854 = vpack.c.b16 %v2799, %v2798
  %v2855 = vpack.c.b16 %v2801, %v2800
  %v2856 = vpack.c.b16 %v2803, %v2802
  %v2857 = vpack.c.b16 %v2805, %v2804
  %v2858 = vpack.c.b16 %v2807, %v2806
  %v2859 = vpack.c.b16 %v2809, %v2808
  %v2860 = vpack.c.b16 %v2811, %v2810
  %v2861 = vpack.c.b16 %v2813, %v2812
  %v2862 = vpack.c.b16 %v2815, %v2814
  %v2863 = vpack.c.b16 %v2817, %v2816
  %v2864 = vpack.c.b16 %v2819, %v2818
  %v2865 = vpack.c.b16 %v2821, %v2820
  %v2866 = vpack.c.b16 %v2823, %v2822
  %v2867 = vpack.c.b16 %v2825, %v2824
  %v2868 = vpack.c.b16 %v2827, %v2826
  %v2869 = vpack.c.b16 %v2829, %v2828
  %v2870 = vpack.c.b16 %v2831, %v2830
  %v2871 = vpack.c.b16 %v2833, %v2832
  %v2872 = vpack.c.b16 %v2835, %v2834
  %v2873 = vpack.c.b16 %v2837, %v2836
  %v2874 = vpack.c.b16 %v2839, %v2838
  %v2875 = vpack.c.b16 %v2841, %v2840
  %v2876 = vpack.c.b16 %v2843, %v2842
  %v2877 = vpack.c.b16 %v2845, %v2844
  %2910 = vmatprep.subr.bf16.mxu0 0
  %2911 = vmatpush1.bf16.msra.mxu0 %v2846
  %2912 = vmatprep.subr.bf16.mxu0 0
  %2913 = vmatpush1.bf16.msra.mxu0 %v2847
  %2914 = vmatprep.subr.bf16.mxu0 0
  %2915 = vmatpush1.bf16.msra.mxu0 %v2848
  %2916 = vmatprep.subr.bf16.mxu0 0
  %2917 = vmatpush1.bf16.msra.mxu0 %v2849
  %2918 = vmatprep.subr.bf16.mxu0 0
  %2919 = vmatpush1.bf16.msra.mxu0 %v2850
  %2920 = vmatprep.subr.bf16.mxu0 0
  %2921 = vmatpush1.bf16.msra.mxu0 %v2851
  %2922 = vmatprep.subr.bf16.mxu0 0
  %2923 = vmatpush1.bf16.msra.mxu0 %v2852
  %2924 = vmatprep.subr.bf16.mxu0 0
  %2925 = vmatpush1.bf16.msra.mxu0 %v2853
  %2926 = vmatprep.subr.bf16.mxu0 0
  %2927 = vmatpush1.bf16.msra.mxu0 %v2854
  %2928 = vmatprep.subr.bf16.mxu0 0
  %2929 = vmatpush1.bf16.msra.mxu0 %v2855
  %2930 = vmatprep.subr.bf16.mxu0 0
  %2931 = vmatpush1.bf16.msra.mxu0 %v2856
  %2932 = vmatprep.subr.bf16.mxu0 0
  %2933 = vmatpush1.bf16.msra.mxu0 %v2857
  %2934 = vmatprep.subr.bf16.mxu0 0
  %2935 = vmatpush1.bf16.msra.mxu0 %v2858
  %2936 = vmatprep.subr.bf16.mxu0 0
  %2937 = vmatpush1.bf16.msra.mxu0 %v2859
  %2938 = vmatprep.subr.bf16.mxu0 0
  %2939 = vmatpush1.bf16.msra.mxu0 %v2860
  %2940 = vmatprep.subr.bf16.mxu0 0
  %2941 = vmatpush1.bf16.msra.mxu0 %v2861
  %2942 = vmatprep.mubr.bf16.mxu0 %v2612
  %2943 = vmatmul.mubr.bf16.gmra.mrb[0].mxu0 %v2611
  %v2944 = vpop.f32.mrb[0].mxu0
  %v2945 = vadd.f32 %v2716, %v2944
  %v2946 = vpop.f32.mrb[0].mxu0
  %v2947 = vpop.f32.mrb[0].mxu0
  %v2948 = vadd.f32 %v2716, %v2947
  %v2949 = vpop.f32.mrb[0].mxu0
  %2950 = vmatprep.mubr.bf16.mxu0 %v2616
  %2951 = vmatmul.mubr.bf16.gmra.mrb[0].mxu0 %v2615
  %v2952 = vpop.f32.mrb[0].mxu0
  %v2953 = vadd.f32 %v2716, %v2952
  %v2954 = vpop.f32.mrb[0].mxu0
  %v2955 = vpop.f32.mrb[0].mxu0
  %v2956 = vadd.f32 %v2716, %v2955
  %v2957 = vpop.f32.mrb[0].mxu0
  %2958 = vmatprep.mubr.bf16.mxu0 %v2620
  %2959 = vmatmul.mubr.bf16.gmra.mrb[0].mxu0 %v2619
  %v2960 = vpop.f32.mrb[0].mxu0
  %v2961 = vadd.f32 %v2716, %v2960
  %v2962 = vpop.f32.mrb[0].mxu0
  %v2963 = vpop.f32.mrb[0].mxu0
  %v2964 = vadd.f32 %v2716, %v2963
  %v2965 = vpop.f32.mrb[0].mxu0
  %2966 = vmatprep.mubr.bf16.mxu0 %v2624
  %2967 = vmatmul.mubr.bf16.gmra.mrb[0].mxu0 %v2623
  %v2968 = vpop.f32.mrb[0].mxu0
  %v2969 = vadd.f32 %v2716, %v2968
  %v2970 = vpop.f32.mrb[0].mxu0
  %v2971 = vpop.f32.mrb[0].mxu0
  %v2972 = vadd.f32 %v2716, %v2971
  %v2973 = vpop.f32.mrb[0].mxu0
  %2974 = vmatprep.mubr.bf16.mxu0 %v2628
  %2975 = vmatmul.mubr.bf16.gmra.mrb[0].mxu0 %v2627
  %v2976 = vpop.f32.mrb[0].mxu0
  %v2977 = vadd.f32 %v2716, %v2976
  %v2978 = vpop.f32.mrb[0].mxu0
  %v2979 = vpop.f32.mrb[0].mxu0
  %v2980 = vadd.f32 %v2716, %v2979
  %v2981 = vpop.f32.mrb[0].mxu0
  %2982 = vmatprep.mubr.bf16.mxu0 %v2632
  %2983 = vmatmul.mubr.bf16.gmra.mrb[0].mxu0 %v2631
  %v2984 = vpop.f32.mrb[0].mxu0
  %v2985 = vadd.f32 %v2716, %v2984
  %v2986 = vpop.f32.mrb[0].mxu0
  %v2987 = vpop.f32.mrb[0].mxu0
  %v2988 = vadd.f32 %v2716, %v2987
  %v2989 = vpop.f32.mrb[0].mxu0
  %2990 = vmatprep.mubr.bf16.mxu0 %v2636
  %2991 = vmatmul.mubr.bf16.gmra.mrb[0].mxu0 %v2635
  %v2992 = vpop.f32.mrb[0].mxu0
  %v2993 = vadd.f32 %v2716, %v2992
  %v2994 = vpop.f32.mrb[0].mxu0
  %v2995 = vpop.f32.mrb[0].mxu0
  %v2996 = vadd.f32 %v2716, %v2995
  %v2997 = vpop.f32.mrb[0].mxu0
  %2998 = vmatprep.mubr.bf16.mxu0 %v2640
  %2999 = vmatmul.mubr.bf16.gmra.mrb[0].mxu0 %v2639
  %v3000 = vpop.f32.mrb[0].mxu0
  %v3001 = vadd.f32 %v2716, %v3000
  %v3002 = vpop.f32.mrb[0].mxu0
  %v3003 = vpop.f32.mrb[0].mxu0
  %v3004 = vadd.f32 %v2716, %v3003
  %v3005 = vpop.f32.mrb[0].mxu0
  %3006 = vmatprep.mubr.bf16.mxu0 %v2644
  %3007 = vmatmul.mubr.bf16.gmra.mrb[0].mxu0 %v2643
  %v3008 = vpop.f32.mrb[0].mxu0
  %v3009 = vadd.f32 %v2716, %v3008
  %v3010 = vpop.f32.mrb[0].mxu0
  %v3011 = vpop.f32.mrb[0].mxu0
  %v3012 = vadd.f32 %v2716, %v3011
  %v3013 = vpop.f32.mrb[0].mxu0
  %3014 = vdwg.mxu0
  %3015 = vmatprep.subr.bf16.mxu0 0
  %3016 = vmatpush1.bf16.msra.mxu0 %v2862
  %3017 = vmatprep.subr.bf16.mxu0 0
  %3018 = vmatpush1.bf16.msra.mxu0 %v2863
  %3019 = vmatprep.subr.bf16.mxu0 0
  %3020 = vmatpush1.bf16.msra.mxu0 %v2864
  %3021 = vmatprep.subr.bf16.mxu0 0
  %3022 = vmatpush1.bf16.msra.mxu0 %v2865
  %3023 = vmatprep.subr.bf16.mxu0 0
  %3024 = vmatpush1.bf16.msra.mxu0 %v2866
  %3025 = vmatprep.subr.bf16.mxu0 0
  %3026 = vmatpush1.bf16.msra.mxu0 %v2867
  %3027 = vmatprep.subr.bf16.mxu0 0
  %3028 = vmatpush1.bf16.msra.mxu0 %v2868
  %3029 = vmatprep.subr.bf16.mxu0 0
  %3030 = vmatpush1.bf16.msra.mxu0 %v2869
  %3031 = vmatprep.subr.bf16.mxu0 0
  %3032 = vmatpush1.bf16.msra.mxu0 %v2870
  %3033 = vmatprep.subr.bf16.mxu0 0
  %3034 = vmatpush1.bf16.msra.mxu0 %v2871
  %3035 = vmatprep.subr.bf16.mxu0 0
  %3036 = vmatpush1.bf16.msra.mxu0 %v2872
  %3037 = vmatprep.subr.bf16.mxu0 0
  %3038 = vmatpush1.bf16.msra.mxu0 %v2873
  %3039 = vmatprep.subr.bf16.mxu0 0
  %3040 = vmatpush1.bf16.msra.mxu0 %v2874
  %3041 = vmatprep.subr.bf16.mxu0 0
  %3042 = vmatpush1.bf16.msra.mxu0 %v2875
  %3043 = vmatprep.subr.bf16.mxu0 0
  %3044 = vmatpush1.bf16.msra.mxu0 %v2876
  %3045 = vmatprep.subr.bf16.mxu0 0
  %3046 = vmatpush1.bf16.msra.mxu0 %v2877
  %3047 = vmatprep.mubr.bf16.mxu0 %v2614
  %3048 = vmatmul.mubr.bf16.gmra.mrb[0].mxu0 %v2613
  %v3049 = vpop.f32.mrb[0].mxu0
  %v3050 = vadd.f32 %v2945, %v3049
  %v3051 = vpop.f32.mrb[0].mxu0
  %v3052 = vpop.f32.mrb[0].mxu0
  %v3053 = vadd.f32 %v2948, %v3052
  %v3054 = vpop.f32.mrb[0].mxu0
  %3055 = vmatprep.mubr.bf16.mxu0 %v2618
  %3056 = vmatmul.mubr.bf16.gmra.mrb[0].mxu0 %v2617
  %v3057 = vpop.f32.mrb[0].mxu0
  %v3058 = vadd.f32 %v2953, %v3057
  %v3059 = vpop.f32.mrb[0].mxu0
  %v3060 = vpop.f32.mrb[0].mxu0
  %v3061 = vadd.f32 %v2956, %v3060
  %v3062 = vpop.f32.mrb[0].mxu0
  %3063 = vmatprep.mubr.bf16.mxu0 %v2622
  %3064 = vmatmul.mubr.bf16.gmra.mrb[0].mxu0 %v2621
  %v3065 = vpop.f32.mrb[0].mxu0
  %v3066 = vadd.f32 %v2961, %v3065
  %v3067 = vpop.f32.mrb[0].mxu0
  %v3068 = vpop.f32.mrb[0].mxu0
  %v3069 = vadd.f32 %v2964, %v3068
  %v3070 = vpop.f32.mrb[0].mxu0
  %3071 = vmatprep.mubr.bf16.mxu0 %v2626
  %3072 = vmatmul.mubr.bf16.gmra.mrb[0].mxu0 %v2625
  %v3073 = vpop.f32.mrb[0].mxu0
  %v3074 = vadd.f32 %v2969, %v3073
  %v3075 = vpop.f32.mrb[0].mxu0
  %v3076 = vpop.f32.mrb[0].mxu0
  %v3077 = vadd.f32 %v2972, %v3076
  %v3078 = vpop.f32.mrb[0].mxu0
  %3079 = vmatprep.mubr.bf16.mxu0 %v2630
  %3080 = vmatmul.mubr.bf16.gmra.mrb[0].mxu0 %v2629
  %v3081 = vpop.f32.mrb[0].mxu0
  %v3082 = vadd.f32 %v2977, %v3081
  %v3083 = vpop.f32.mrb[0].mxu0
  %v3084 = vpop.f32.mrb[0].mxu0
  %v3085 = vadd.f32 %v2980, %v3084
  %v3086 = vpop.f32.mrb[0].mxu0
  %3087 = vmatprep.mubr.bf16.mxu0 %v2634
  %3088 = vmatmul.mubr.bf16.gmra.mrb[0].mxu0 %v2633
  %v3089 = vpop.f32.mrb[0].mxu0
  %v3090 = vadd.f32 %v2985, %v3089
  %v3091 = vpop.f32.mrb[0].mxu0
  %v3092 = vpop.f32.mrb[0].mxu0
  %v3093 = vadd.f32 %v2988, %v3092
  %v3094 = vpop.f32.mrb[0].mxu0
  %3095 = vmatprep.mubr.bf16.mxu0 %v2638
  %3096 = vmatmul.mubr.bf16.gmra.mrb[0].mxu0 %v2637
  %v3097 = vpop.f32.mrb[0].mxu0
  %v3098 = vadd.f32 %v2993, %v3097
  %v3099 = vpop.f32.mrb[0].mxu0
  %v3100 = vpop.f32.mrb[0].mxu0
  %v3101 = vadd.f32 %v2996, %v3100
  %v3102 = vpop.f32.mrb[0].mxu0
  %3103 = vmatprep.mubr.bf16.mxu0 %v2642
  %3104 = vmatmul.mubr.bf16.gmra.mrb[0].mxu0 %v2641
  %v3105 = vpop.f32.mrb[0].mxu0
  %v3106 = vadd.f32 %v3001, %v3105
  %v3107 = vpop.f32.mrb[0].mxu0
  %v3108 = vpop.f32.mrb[0].mxu0
  %v3109 = vadd.f32 %v3004, %v3108
  %v3110 = vpop.f32.mrb[0].mxu0
  %3111 = vmatprep.mubr.bf16.mxu0 %v2646
  %3112 = vmatmul.mubr.bf16.gmra.mrb[0].mxu0 %v2645
  %v3113 = vpop.f32.mrb[0].mxu0
  %v3114 = vadd.f32 %v3009, %v3113
  %v3115 = vpop.f32.mrb[0].mxu0
  %v3116 = vpop.f32.mrb[0].mxu0
  %v3117 = vadd.f32 %v3012, %v3116
  %v3118 = vpop.f32.mrb[0].mxu0
  %3119 = vdwg.mxu0
  %v3120 = vmax.f32 %v3050, 0.0
  %v3121 = vmax.f32 %v3053, 0.0
  %v3122 = vmax.f32 %v3058, 0.0
  %v3123 = vmax.f32 %v3061, 0.0
  %v3124 = vmax.f32 %v3066, 0.0
  %v3125 = vmax.f32 %v3069, 0.0
  %v3126 = vmax.f32 %v3074, 0.0
  %v3127 = vmax.f32 %v3077, 0.0
  %v3128 = vmax.f32 %v3082, 0.0
  %v3129 = vmax.f32 %v3085, 0.0
  %v3130 = vmax.f32 %v3090, 0.0
  %v3131 = vmax.f32 %v3093, 0.0
  %v3132 = vmax.f32 %v3098, 0.0
  %v3133 = vmax.f32 %v3101, 0.0
  %v3134 = vmax.f32 %v3106, 0.0
  %v3135 = vmax.f32 %v3109, 0.0
  %v3136 = vmax.f32 %v3114, 0.0
  %v3137 = vmax.f32 %v3117, 0.0
  %v3138 = vpack.c.bf16 %v3121, %v3120
  %v3139 = vpack.c.bf16 %v3123, %v3122
  %v3140 = vpack.c.bf16 %v3125, %v3124
  %v3141 = vpack.c.bf16 %v3127, %v3126
  %v3142 = vpack.c.bf16 %v3129, %v3128
  %v3143 = vpack.c.bf16 %v3131, %v3130
  %v3144 = vpack.c.bf16 %v3133, %v3132
  %v3145 = vpack.c.bf16 %v3135, %v3134
  %v3146 = vpack.c.bf16 %v3137, %v3136
  %3147 = vst.msk [vmem:[#allocation4] sm:$0xff] %vm1816, %v3138
  %3148 = vst.msk [vmem:[#allocation4 + $0x8] sm:$0xff] %vm1816, %v3139
  %3149 = vst.msk [vmem:[#allocation4 + $0x10] sm:$0xff] %vm1816, %v3140
  %3150 = vst.msk [vmem:[#allocation4 + $0x18] sm:$0xff] %vm1816, %v3141
  %3151 = vst.msk [vmem:[#allocation4 + $0x20] sm:$0xff] %vm1816, %v3142
  %3152 = vst.msk [vmem:[#allocation4 + $0x28] sm:$0xff] %vm1816, %v3143
  %3153 = vst.msk [vmem:[#allocation4 + $0x30] sm:$0xff] %vm1816, %v3144
  %3154 = vst.msk [vmem:[#allocation4 + $0x38] sm:$0xff] %vm1816, %v3145
  %3155 = vst.msk [vmem:[#allocation4 + $0x40] sm:$0xff] %vm1816, %v3146
  %v3156 = vld [vmem:[#allocation4] sm:$0xff]
  %v3157 = vld [vmem:[%s5] sm:$0xf]
  %v3158 = vld [vmem:[%s5 + $0x4] sm:$0xf]
  %v3159 = vld [vmem:[%s5 + $0x8] sm:$0xf]
  %v3160 = vld [vmem:[%s5 + $0xc] sm:$0xf]
  %v3161 = vld [vmem:[%s5 + $0x10] sm:$0xf]
  %v3162 = vld [vmem:[%s5 + $0x14] sm:$0xf]
  %v3163 = vld [vmem:[%s5 + $0x18] sm:$0xf]
  %v3164 = vld [vmem:[%s5 + $0x1c] sm:$0xf]
  %s3165 = scalar_lea.vmem [#allocation4], 8
  %v3166 = vld [vmem:[%s3165] sm:$0xff]
  %s3167 = scalar_lea.vmem %s5, 32
  %v3168 = vld [vmem:[%s3167] sm:$0xf]
  %v3169 = vld [vmem:[%s3167 + $0x4] sm:$0xf]
  %v3170 = vld [vmem:[%s3167 + $0x8] sm:$0xf]
  %v3171 = vld [vmem:[%s3167 + $0xc] sm:$0xf]
  %v3172 = vld [vmem:[%s3167 + $0x10] sm:$0xf]
  %v3173 = vld [vmem:[%s3167 + $0x14] sm:$0xf]
  %v3174 = vld [vmem:[%s3167 + $0x18] sm:$0xf]
  %v3175 = vld [vmem:[%s3167 + $0x1c] sm:$0xf]
  %v3184 = vunpack.c.l.b16 %v3168
  %v3185 = vunpack.c.l.b16 %v3169
  %v3186 = vunpack.c.l.b16 %v3170
  %v3187 = vunpack.c.l.b16 %v3171
  %v3188 = vunpack.c.l.b16 %v3172
  %v3189 = vunpack.c.l.b16 %v3173
  %v3190 = vunpack.c.l.b16 %v3174
  %v3191 = vunpack.c.l.b16 %v3175
  %v3192 = vpack.c.b16 %v3185, %v3184
  %v3193 = vpack.c.b16 %v3187, %v3186
  %v3194 = vpack.c.b16 %v3189, %v3188
  %v3195 = vpack.c.b16 %v3191, %v3190
  %v3201 = vsel %vm1816, %v3166, 0
  %3203 = vmatprep.subr.bf16.mxu0 0
  %3204 = vmatpush1.bf16.msra.mxu0 %v3192
  %3205 = vmatprep.subr.bf16.mxu0 0
  %3206 = vmatpush1.bf16.msra.mxu0 %v3193
  %3207 = vmatprep.subr.bf16.mxu0 0
  %3208 = vmatpush1.bf16.msra.mxu0 %v3194
  %3209 = vmatprep.subr.bf16.mxu0 0
  %3210 = vmatpush1.bf16.msra.mxu0 %v3195
  %3211 = vmatprep.subr.bf16.mxu0 0
  %3212 = vmatpush1.bf16.msra.mxu0 0
  %3213 = vmatprep.subr.bf16.mxu0 0
  %3214 = vmatpush1.bf16.msra.mxu0 0
  %3215 = vmatprep.subr.bf16.mxu0 0
  %3216 = vmatpush1.bf16.msra.mxu0 0
  %3217 = vmatprep.subr.bf16.mxu0 0
  %3218 = vmatpush1.bf16.msra.mxu0 0
  %3219 = vmatprep.subr.bf16.mxu0 0
  %3220 = vmatpush1.bf16.msra.mxu0 0
  %3221 = vmatprep.subr.bf16.mxu0 0
  %3222 = vmatpush1.bf16.msra.mxu0 0
  %3223 = vmatprep.subr.bf16.mxu0 0
  %3224 = vmatpush1.bf16.msra.mxu0 0
  %3225 = vmatprep.subr.bf16.mxu0 0
  %3226 = vmatpush1.bf16.msra.mxu0 0
  %3227 = vmatprep.subr.bf16.mxu0 0
  %3228 = vmatpush1.bf16.msra.mxu0 0
  %3229 = vmatprep.subr.bf16.mxu0 0
  %3230 = vmatpush1.bf16.msra.mxu0 0
  %3231 = vmatprep.subr.bf16.mxu0 0
  %3232 = vmatpush1.bf16.msra.mxu0 0
  %3233 = vmatprep.subr.bf16.mxu0 0
  %3234 = vmatpush1.bf16.msra.mxu0 0
  %3235 = vmatprep.mubr.bf16.mxu0 0
  %3236 = vmatmul.mubr.bf16.gmra.mrb[0].mxu0 %v3201
  %v3237 = vpop.f32.mrb[0].mxu0
  %v3238 = vadd.f32 0.0, %v3237
  %v3239 = vpop.f32.mrb[0].mxu0
  %v3240 = vpop.f32.mrb[0].mxu0
  %v3241 = vadd.f32 0.0, %v3240
  %v3242 = vpop.f32.mrb[0].mxu0
  %3243 = vdwg.mxu0
  %v3252 = vunpack.c.l.b16 %v3157
  %v3253 = vunpack.c.l.b16 %v3158
  %v3254 = vunpack.c.l.b16 %v3159
  %v3255 = vunpack.c.l.b16 %v3160
  %v3256 = vunpack.c.l.b16 %v3161
  %v3257 = vunpack.c.l.b16 %v3162
  %v3258 = vunpack.c.l.b16 %v3163
  %v3259 = vunpack.c.l.b16 %v3164
  %v3260 = vpack.c.b16 %v3253, %v3252
  %v3261 = vpack.c.b16 %v3255, %v3254
  %v3262 = vpack.c.b16 %v3257, %v3256
  %v3263 = vpack.c.b16 %v3259, %v3258
  %v3269 = vsel %vm1816, %v3156, 0
  %3271 = vmatprep.subr.bf16.mxu0 0
  %3272 = vmatpush1.bf16.msra.mxu0 %v3260
  %3273 = vmatprep.subr.bf16.mxu0 0
  %3274 = vmatpush1.bf16.msra.mxu0 %v3261
  %3275 = vmatprep.subr.bf16.mxu0 0
  %3276 = vmatpush1.bf16.msra.mxu0 %v3262
  %3277 = vmatprep.subr.bf16.mxu0 0
  %3278 = vmatpush1.bf16.msra.mxu0 %v3263
  %3279 = vmatprep.subr.bf16.mxu0 0
  %3280 = vmatpush1.bf16.msra.mxu0 0
  %3281 = vmatprep.subr.bf16.mxu0 0
  %3282 = vmatpush1.bf16.msra.mxu0 0
  %3283 = vmatprep.subr.bf16.mxu0 0
  %3284 = vmatpush1.bf16.msra.mxu0 0
  %3285 = vmatprep.subr.bf16.mxu0 0
  %3286 = vmatpush1.bf16.msra.mxu0 0
  %3287 = vmatprep.subr.bf16.mxu0 0
  %3288 = vmatpush1.bf16.msra.mxu0 0
  %3289 = vmatprep.subr.bf16.mxu0 0
  %3290 = vmatpush1.bf16.msra.mxu0 0
  %3291 = vmatprep.subr.bf16.mxu0 0
  %3292 = vmatpush1.bf16.msra.mxu0 0
  %3293 = vmatprep.subr.bf16.mxu0 0
  %3294 = vmatpush1.bf16.msra.mxu0 0
  %3295 = vmatprep.subr.bf16.mxu0 0
  %3296 = vmatpush1.bf16.msra.mxu0 0
  %3297 = vmatprep.subr.bf16.mxu0 0
  %3298 = vmatpush1.bf16.msra.mxu0 0
  %3299 = vmatprep.subr.bf16.mxu0 0
  %3300 = vmatpush1.bf16.msra.mxu0 0
  %3301 = vmatprep.subr.bf16.mxu0 0
  %3302 = vmatpush1.bf16.msra.mxu0 0
  %3303 = vmatprep.mubr.bf16.mxu0 0
  %3304 = vmatmul.mubr.bf16.gmra.mrb[0].mxu0 %v3269
  %v3305 = vpop.f32.mrb[0].mxu0
  %v3306 = vadd.f32 %v3238, %v3305
  %v3307 = vpop.f32.mrb[0].mxu0
  %v3308 = vpop.f32.mrb[0].mxu0
  %v3309 = vadd.f32 %v3241, %v3308
  %v3310 = vpop.f32.mrb[0].mxu0
  %3311 = vdwg.mxu0
  %s3312 = scalar_lea.vmem [#allocation4], 16
  %v3313 = vld [vmem:[%s3312] sm:$0xff]
  %s3314 = scalar_lea.vmem %s5, 64
  %v3315 = vld [vmem:[%s3314] sm:$0xf]
  %v3316 = vld [vmem:[%s3314 + $0x4] sm:$0xf]
  %v3317 = vld [vmem:[%s3314 + $0x8] sm:$0xf]
  %v3318 = vld [vmem:[%s3314 + $0xc] sm:$0xf]
  %v3319 = vld [vmem:[%s3314 + $0x10] sm:$0xf]
  %v3320 = vld [vmem:[%s3314 + $0x14] sm:$0xf]
  %v3321 = vld [vmem:[%s3314 + $0x18] sm:$0xf]
  %v3322 = vld [vmem:[%s3314 + $0x1c] sm:$0xf]
  %v3331 = vunpack.c.l.b16 %v3315
  %v3332 = vunpack.c.l.b16 %v3316
  %v3333 = vunpack.c.l.b16 %v3317
  %v3334 = vunpack.c.l.b16 %v3318
  %v3335 = vunpack.c.l.b16 %v3319
  %v3336 = vunpack.c.l.b16 %v3320
  %v3337 = vunpack.c.l.b16 %v3321
  %v3338 = vunpack.c.l.b16 %v3322
  %v3339 = vpack.c.b16 %v3332, %v3331
  %v3340 = vpack.c.b16 %v3334, %v3333
  %v3341 = vpack.c.b16 %v3336, %v3335
  %v3342 = vpack.c.b16 %v3338, %v3337
  %v3348 = vsel %vm1816, %v3313, 0
  %3350 = vmatprep.subr.bf16.mxu0 0
  %3351 = vmatpush1.bf16.msra.mxu0 %v3339
  %3352 = vmatprep.subr.bf16.mxu0 0
  %3353 = vmatpush1.bf16.msra.mxu0 %v3340
  %3354 = vmatprep.subr.bf16.mxu0 0
  %3355 = vmatpush1.bf16.msra.mxu0 %v3341
  %3356 = vmatprep.subr.bf16.mxu0 0
  %3357 = vmatpush1.bf16.msra.mxu0 %v3342
  %3358 = vmatprep.subr.bf16.mxu0 0
  %3359 = vmatpush1.bf16.msra.mxu0 0
  %3360 = vmatprep.subr.bf16.mxu0 0
  %3361 = vmatpush1.bf16.msra.mxu0 0
  %3362 = vmatprep.subr.bf16.mxu0 0
  %3363 = vmatpush1.bf16.msra.mxu0 0
  %3364 = vmatprep.subr.bf16.mxu0 0
  %3365 = vmatpush1.bf16.msra.mxu0 0
  %3366 = vmatprep.subr.bf16.mxu0 0
  %3367 = vmatpush1.bf16.msra.mxu0 0
  %3368 = vmatprep.subr.bf16.mxu0 0
  %3369 = vmatpush1.bf16.msra.mxu0 0
  %3370 = vmatprep.subr.bf16.mxu0 0
  %3371 = vmatpush1.bf16.msra.mxu0 0
  %3372 = vmatprep.subr.bf16.mxu0 0
  %3373 = vmatpush1.bf16.msra.mxu0 0
  %3374 = vmatprep.subr.bf16.mxu0 0
  %3375 = vmatpush1.bf16.msra.mxu0 0
  %3376 = vmatprep.subr.bf16.mxu0 0
  %3377 = vmatpush1.bf16.msra.mxu0 0
  %3378 = vmatprep.subr.bf16.mxu0 0
  %3379 = vmatpush1.bf16.msra.mxu0 0
  %3380 = vmatprep.subr.bf16.mxu0 0
  %3381 = vmatpush1.bf16.msra.mxu0 0
  %3382 = vmatprep.mubr.bf16.mxu0 0
  %3383 = vmatmul.mubr.bf16.gmra.mrb[0].mxu0 %v3348
  %v3384 = vpop.f32.mrb[0].mxu0
  %v3385 = vadd.f32 0.0, %v3384
  %v3386 = vpop.f32.mrb[0].mxu0
  %v3387 = vpop.f32.mrb[0].mxu0
  %v3388 = vadd.f32 0.0, %v3387
  %v3389 = vpop.f32.mrb[0].mxu0
  %3390 = vdwg.mxu0
  %v3391 = vadd.f32 %v3306, %v3385
  %v3392 = vadd.f32 %v3309, %v3388
  %s3393 = scalar_lea.vmem [#allocation4], 24
  %v3394 = vld [vmem:[%s3393] sm:$0xff]
  %s3395 = scalar_lea.vmem %s5, 96
  %v3396 = vld [vmem:[%s3395] sm:$0xf]
  %v3397 = vld [vmem:[%s3395 + $0x4] sm:$0xf]
  %v3398 = vld [vmem:[%s3395 + $0x8] sm:$0xf]
  %v3399 = vld [vmem:[%s3395 + $0xc] sm:$0xf]
  %v3400 = vld [vmem:[%s3395 + $0x10] sm:$0xf]
  %v3401 = vld [vmem:[%s3395 + $0x14] sm:$0xf]
  %v3402 = vld [vmem:[%s3395 + $0x18] sm:$0xf]
  %v3403 = vld [vmem:[%s3395 + $0x1c] sm:$0xf]
  %v3412 = vunpack.c.l.b16 %v3396
  %v3413 = vunpack.c.l.b16 %v3397
  %v3414 = vunpack.c.l.b16 %v3398
  %v3415 = vunpack.c.l.b16 %v3399
  %v3416 = vunpack.c.l.b16 %v3400
  %v3417 = vunpack.c.l.b16 %v3401
  %v3418 = vunpack.c.l.b16 %v3402
  %v3419 = vunpack.c.l.b16 %v3403
  %v3420 = vpack.c.b16 %v3413, %v3412
  %v3421 = vpack.c.b16 %v3415, %v3414
  %v3422 = vpack.c.b16 %v3417, %v3416
  %v3423 = vpack.c.b16 %v3419, %v3418
  %v3429 = vsel %vm1816, %v3394, 0
  %3431 = vmatprep.subr.bf16.mxu0 0
  %3432 = vmatpush1.bf16.msra.mxu0 %v3420
  %3433 = vmatprep.subr.bf16.mxu0 0
  %3434 = vmatpush1.bf16.msra.mxu0 %v3421
  %3435 = vmatprep.subr.bf16.mxu0 0
  %3436 = vmatpush1.bf16.msra.mxu0 %v3422
  %3437 = vmatprep.subr.bf16.mxu0 0
  %3438 = vmatpush1.bf16.msra.mxu0 %v3423
  %3439 = vmatprep.subr.bf16.mxu0 0
  %3440 = vmatpush1.bf16.msra.mxu0 0
  %3441 = vmatprep.subr.bf16.mxu0 0
  %3442 = vmatpush1.bf16.msra.mxu0 0
  %3443 = vmatprep.subr.bf16.mxu0 0
  %3444 = vmatpush1.bf16.msra.mxu0 0
  %3445 = vmatprep.subr.bf16.mxu0 0
  %3446 = vmatpush1.bf16.msra.mxu0 0
  %3447 = vmatprep.subr.bf16.mxu0 0
  %3448 = vmatpush1.bf16.msra.mxu0 0
  %3449 = vmatprep.subr.bf16.mxu0 0
  %3450 = vmatpush1.bf16.msra.mxu0 0
  %3451 = vmatprep.subr.bf16.mxu0 0
  %3452 = vmatpush1.bf16.msra.mxu0 0
  %3453 = vmatprep.subr.bf16.mxu0 0
  %3454 = vmatpush1.bf16.msra.mxu0 0
  %3455 = vmatprep.subr.bf16.mxu0 0
  %3456 = vmatpush1.bf16.msra.mxu0 0
  %3457 = vmatprep.subr.bf16.mxu0 0
  %3458 = vmatpush1.bf16.msra.mxu0 0
  %3459 = vmatprep.subr.bf16.mxu0 0
  %3460 = vmatpush1.bf16.msra.mxu0 0
  %3461 = vmatprep.subr.bf16.mxu0 0
  %3462 = vmatpush1.bf16.msra.mxu0 0
  %3463 = vmatprep.mubr.bf16.mxu0 0
  %3464 = vmatmul.mubr.bf16.gmra.mrb[0].mxu0 %v3429
  %v3465 = vpop.f32.mrb[0].mxu0
  %v3466 = vadd.f32 0.0, %v3465
  %v3467 = vpop.f32.mrb[0].mxu0
  %v3468 = vpop.f32.mrb[0].mxu0
  %v3469 = vadd.f32 0.0, %v3468
  %v3470 = vpop.f32.mrb[0].mxu0
  %3471 = vdwg.mxu0
  %v3472 = vadd.f32 %v3391, %v3466
  %v3473 = vadd.f32 %v3392, %v3469
  %s3474 = scalar_lea.vmem [#allocation4], 32
  %v3475 = vld [vmem:[%s3474] sm:$0xff]
  %s3476 = scalar_lea.vmem %s5, 128
  %v3477 = vld [vmem:[%s3476] sm:$0xf]
  %v3478 = vld [vmem:[%s3476 + $0x4] sm:$0xf]
  %v3479 = vld [vmem:[%s3476 + $0x8] sm:$0xf]
  %v3480 = vld [vmem:[%s3476 + $0xc] sm:$0xf]
  %v3481 = vld [vmem:[%s3476 + $0x10] sm:$0xf]
  %v3482 = vld [vmem:[%s3476 + $0x14] sm:$0xf]
  %v3483 = vld [vmem:[%s3476 + $0x18] sm:$0xf]
  %v3484 = vld [vmem:[%s3476 + $0x1c] sm:$0xf]
  %v3493 = vunpack.c.l.b16 %v3477
  %v3494 = vunpack.c.l.b16 %v3478
  %v3495 = vunpack.c.l.b16 %v3479
  %v3496 = vunpack.c.l.b16 %v3480
  %v3497 = vunpack.c.l.b16 %v3481
  %v3498 = vunpack.c.l.b16 %v3482
  %v3499 = vunpack.c.l.b16 %v3483
  %v3500 = vunpack.c.l.b16 %v3484
  %v3501 = vpack.c.b16 %v3494, %v3493
  %v3502 = vpack.c.b16 %v3496, %v3495
  %v3503 = vpack.c.b16 %v3498, %v3497
  %v3504 = vpack.c.b16 %v3500, %v3499
  %v3510 = vsel %vm1816, %v3475, 0
  %3512 = vmatprep.subr.bf16.mxu0 0
  %3513 = vmatpush1.bf16.msra.mxu0 %v3501
  %3514 = vmatprep.subr.bf16.mxu0 0
  %3515 = vmatpush1.bf16.msra.mxu0 %v3502
  %3516 = vmatprep.subr.bf16.mxu0 0
  %3517 = vmatpush1.bf16.msra.mxu0 %v3503
  %3518 = vmatprep.subr.bf16.mxu0 0
  %3519 = vmatpush1.bf16.msra.mxu0 %v3504
  %3520 = vmatprep.subr.bf16.mxu0 0
  %3521 = vmatpush1.bf16.msra.mxu0 0
  %3522 = vmatprep.subr.bf16.mxu0 0
  %3523 = vmatpush1.bf16.msra.mxu0 0
  %3524 = vmatprep.subr.bf16.mxu0 0
  %3525 = vmatpush1.bf16.msra.mxu0 0
  %3526 = vmatprep.subr.bf16.mxu0 0
  %3527 = vmatpush1.bf16.msra.mxu0 0
  %3528 = vmatprep.subr.bf16.mxu0 0
  %3529 = vmatpush1.bf16.msra.mxu0 0
  %3530 = vmatprep.subr.bf16.mxu0 0
  %3531 = vmatpush1.bf16.msra.mxu0 0
  %3532 = vmatprep.subr.bf16.mxu0 0
  %3533 = vmatpush1.bf16.msra.mxu0 0
  %3534 = vmatprep.subr.bf16.mxu0 0
  %3535 = vmatpush1.bf16.msra.mxu0 0
  %3536 = vmatprep.subr.bf16.mxu0 0
  %3537 = vmatpush1.bf16.msra.mxu0 0
  %3538 = vmatprep.subr.bf16.mxu0 0
  %3539 = vmatpush1.bf16.msra.mxu0 0
  %3540 = vmatprep.subr.bf16.mxu0 0
  %3541 = vmatpush1.bf16.msra.mxu0 0
  %3542 = vmatprep.subr.bf16.mxu0 0
  %3543 = vmatpush1.bf16.msra.mxu0 0
  %3544 = vmatprep.mubr.bf16.mxu0 0
  %3545 = vmatmul.mubr.bf16.gmra.mrb[0].mxu0 %v3510
  %v3546 = vpop.f32.mrb[0].mxu0
  %v3547 = vadd.f32 0.0, %v3546
  %v3548 = vpop.f32.mrb[0].mxu0
  %v3549 = vpop.f32.mrb[0].mxu0
  %v3550 = vadd.f32 0.0, %v3549
  %v3551 = vpop.f32.mrb[0].mxu0
  %3552 = vdwg.mxu0
  %v3553 = vadd.f32 %v3472, %v3547
  %v3554 = vadd.f32 %v3473, %v3550
  %s3555 = scalar_lea.vmem [#allocation4], 40
  %v3556 = vld [vmem:[%s3555] sm:$0xff]
  %s3557 = scalar_lea.vmem %s5, 160
  %v3558 = vld [vmem:[%s3557] sm:$0xf]
  %v3559 = vld [vmem:[%s3557 + $0x4] sm:$0xf]
  %v3560 = vld [vmem:[%s3557 + $0x8] sm:$0xf]
  %v3561 = vld [vmem:[%s3557 + $0xc] sm:$0xf]
  %v3562 = vld [vmem:[%s3557 + $0x10] sm:$0xf]
  %v3563 = vld [vmem:[%s3557 + $0x14] sm:$0xf]
  %v3564 = vld [vmem:[%s3557 + $0x18] sm:$0xf]
  %v3565 = vld [vmem:[%s3557 + $0x1c] sm:$0xf]
  %v3574 = vunpack.c.l.b16 %v3558
  %v3575 = vunpack.c.l.b16 %v3559
  %v3576 = vunpack.c.l.b16 %v3560
  %v3577 = vunpack.c.l.b16 %v3561
  %v3578 = vunpack.c.l.b16 %v3562
  %v3579 = vunpack.c.l.b16 %v3563
  %v3580 = vunpack.c.l.b16 %v3564
  %v3581 = vunpack.c.l.b16 %v3565
  %v3582 = vpack.c.b16 %v3575, %v3574
  %v3583 = vpack.c.b16 %v3577, %v3576
  %v3584 = vpack.c.b16 %v3579, %v3578
  %v3585 = vpack.c.b16 %v3581, %v3580
  %v3591 = vsel %vm1816, %v3556, 0
  %3593 = vmatprep.subr.bf16.mxu0 0
  %3594 = vmatpush1.bf16.msra.mxu0 %v3582
  %3595 = vmatprep.subr.bf16.mxu0 0
  %3596 = vmatpush1.bf16.msra.mxu0 %v3583
  %3597 = vmatprep.subr.bf16.mxu0 0
  %3598 = vmatpush1.bf16.msra.mxu0 %v3584
  %3599 = vmatprep.subr.bf16.mxu0 0
  %3600 = vmatpush1.bf16.msra.mxu0 %v3585
  %3601 = vmatprep.subr.bf16.mxu0 0
  %3602 = vmatpush1.bf16.msra.mxu0 0
  %3603 = vmatprep.subr.bf16.mxu0 0
  %3604 = vmatpush1.bf16.msra.mxu0 0
  %3605 = vmatprep.subr.bf16.mxu0 0
  %3606 = vmatpush1.bf16.msra.mxu0 0
  %3607 = vmatprep.subr.bf16.mxu0 0
  %3608 = vmatpush1.bf16.msra.mxu0 0
  %3609 = vmatprep.subr.bf16.mxu0 0
  %3610 = vmatpush1.bf16.msra.mxu0 0
  %3611 = vmatprep.subr.bf16.mxu0 0
  %3612 = vmatpush1.bf16.msra.mxu0 0
  %3613 = vmatprep.subr.bf16.mxu0 0
  %3614 = vmatpush1.bf16.msra.mxu0 0
  %3615 = vmatprep.subr.bf16.mxu0 0
  %3616 = vmatpush1.bf16.msra.mxu0 0
  %3617 = vmatprep.subr.bf16.mxu0 0
  %3618 = vmatpush1.bf16.msra.mxu0 0
  %3619 = vmatprep.subr.bf16.mxu0 0
  %3620 = vmatpush1.bf16.msra.mxu0 0
  %3621 = vmatprep.subr.bf16.mxu0 0
  %3622 = vmatpush1.bf16.msra.mxu0 0
  %3623 = vmatprep.subr.bf16.mxu0 0
  %3624 = vmatpush1.bf16.msra.mxu0 0
  %3625 = vmatprep.mubr.bf16.mxu0 0
  %3626 = vmatmul.mubr.bf16.gmra.mrb[0].mxu0 %v3591
  %v3627 = vpop.f32.mrb[0].mxu0
  %v3628 = vadd.f32 0.0, %v3627
  %v3629 = vpop.f32.mrb[0].mxu0
  %v3630 = vpop.f32.mrb[0].mxu0
  %v3631 = vadd.f32 0.0, %v3630
  %v3632 = vpop.f32.mrb[0].mxu0
  %3633 = vdwg.mxu0
  %v3634 = vadd.f32 %v3553, %v3628
  %v3635 = vadd.f32 %v3554, %v3631
  %s3636 = scalar_lea.vmem [#allocation4], 48
  %v3637 = vld [vmem:[%s3636] sm:$0xff]
  %s3638 = scalar_lea.vmem %s5, 192
  %v3639 = vld [vmem:[%s3638] sm:$0xf]
  %v3640 = vld [vmem:[%s3638 + $0x4] sm:$0xf]
  %v3641 = vld [vmem:[%s3638 + $0x8] sm:$0xf]
  %v3642 = vld [vmem:[%s3638 + $0xc] sm:$0xf]
  %v3643 = vld [vmem:[%s3638 + $0x10] sm:$0xf]
  %v3644 = vld [vmem:[%s3638 + $0x14] sm:$0xf]
  %v3645 = vld [vmem:[%s3638 + $0x18] sm:$0xf]
  %v3646 = vld [vmem:[%s3638 + $0x1c] sm:$0xf]
  %v3655 = vunpack.c.l.b16 %v3639
  %v3656 = vunpack.c.l.b16 %v3640
  %v3657 = vunpack.c.l.b16 %v3641
  %v3658 = vunpack.c.l.b16 %v3642
  %v3659 = vunpack.c.l.b16 %v3643
  %v3660 = vunpack.c.l.b16 %v3644
  %v3661 = vunpack.c.l.b16 %v3645
  %v3662 = vunpack.c.l.b16 %v3646
  %v3663 = vpack.c.b16 %v3656, %v3655
  %v3664 = vpack.c.b16 %v3658, %v3657
  %v3665 = vpack.c.b16 %v3660, %v3659
  %v3666 = vpack.c.b16 %v3662, %v3661
  %v3672 = vsel %vm1816, %v3637, 0
  %3674 = vmatprep.subr.bf16.mxu0 0
  %3675 = vmatpush1.bf16.msra.mxu0 %v3663
  %3676 = vmatprep.subr.bf16.mxu0 0
  %3677 = vmatpush1.bf16.msra.mxu0 %v3664
  %3678 = vmatprep.subr.bf16.mxu0 0
  %3679 = vmatpush1.bf16.msra.mxu0 %v3665
  %3680 = vmatprep.subr.bf16.mxu0 0
  %3681 = vmatpush1.bf16.msra.mxu0 %v3666
  %3682 = vmatprep.subr.bf16.mxu0 0
  %3683 = vmatpush1.bf16.msra.mxu0 0
  %3684 = vmatprep.subr.bf16.mxu0 0
  %3685 = vmatpush1.bf16.msra.mxu0 0
  %3686 = vmatprep.subr.bf16.mxu0 0
  %3687 = vmatpush1.bf16.msra.mxu0 0
  %3688 = vmatprep.subr.bf16.mxu0 0
  %3689 = vmatpush1.bf16.msra.mxu0 0
  %3690 = vmatprep.subr.bf16.mxu0 0
  %3691 = vmatpush1.bf16.msra.mxu0 0
  %3692 = vmatprep.subr.bf16.mxu0 0
  %3693 = vmatpush1.bf16.msra.mxu0 0
  %3694 = vmatprep.subr.bf16.mxu0 0
  %3695 = vmatpush1.bf16.msra.mxu0 0
  %3696 = vmatprep.subr.bf16.mxu0 0
  %3697 = vmatpush1.bf16.msra.mxu0 0
  %3698 = vmatprep.subr.bf16.mxu0 0
  %3699 = vmatpush1.bf16.msra.mxu0 0
  %3700 = vmatprep.subr.bf16.mxu0 0
  %3701 = vmatpush1.bf16.msra.mxu0 0
  %3702 = vmatprep.subr.bf16.mxu0 0
  %3703 = vmatpush1.bf16.msra.mxu0 0
  %3704 = vmatprep.subr.bf16.mxu0 0
  %3705 = vmatpush1.bf16.msra.mxu0 0
  %3706 = vmatprep.mubr.bf16.mxu0 0
  %3707 = vmatmul.mubr.bf16.gmra.mrb[0].mxu0 %v3672
  %v3708 = vpop.f32.mrb[0].mxu0
  %v3709 = vadd.f32 0.0, %v3708
  %v3710 = vpop.f32.mrb[0].mxu0
  %v3711 = vpop.f32.mrb[0].mxu0
  %v3712 = vadd.f32 0.0, %v3711
  %v3713 = vpop.f32.mrb[0].mxu0
  %3714 = vdwg.mxu0
  %v3715 = vadd.f32 %v3634, %v3709
  %v3716 = vadd.f32 %v3635, %v3712
  %s3717 = scalar_lea.vmem [#allocation4], 56
  %v3718 = vld [vmem:[%s3717] sm:$0xff]
  %s3719 = scalar_lea.vmem %s5, 224
  %v3720 = vld [vmem:[%s3719] sm:$0xf]
  %v3721 = vld [vmem:[%s3719 + $0x4] sm:$0xf]
  %v3722 = vld [vmem:[%s3719 + $0x8] sm:$0xf]
  %v3723 = vld [vmem:[%s3719 + $0xc] sm:$0xf]
  %v3724 = vld [vmem:[%s3719 + $0x10] sm:$0xf]
  %v3725 = vld [vmem:[%s3719 + $0x14] sm:$0xf]
  %v3726 = vld [vmem:[%s3719 + $0x18] sm:$0xf]
  %v3727 = vld [vmem:[%s3719 + $0x1c] sm:$0xf]
  %v3736 = vunpack.c.l.b16 %v3720
  %v3737 = vunpack.c.l.b16 %v3721
  %v3738 = vunpack.c.l.b16 %v3722
  %v3739 = vunpack.c.l.b16 %v3723
  %v3740 = vunpack.c.l.b16 %v3724
  %v3741 = vunpack.c.l.b16 %v3725
  %v3742 = vunpack.c.l.b16 %v3726
  %v3743 = vunpack.c.l.b16 %v3727
  %v3744 = vpack.c.b16 %v3737, %v3736
  %v3745 = vpack.c.b16 %v3739, %v3738
  %v3746 = vpack.c.b16 %v3741, %v3740
  %v3747 = vpack.c.b16 %v3743, %v3742
  %v3753 = vsel %vm1816, %v3718, 0
  %3755 = vmatprep.subr.bf16.mxu0 0
  %3756 = vmatpush1.bf16.msra.mxu0 %v3744
  %3757 = vmatprep.subr.bf16.mxu0 0
  %3758 = vmatpush1.bf16.msra.mxu0 %v3745
  %3759 = vmatprep.subr.bf16.mxu0 0
  %3760 = vmatpush1.bf16.msra.mxu0 %v3746
  %3761 = vmatprep.subr.bf16.mxu0 0
  %3762 = vmatpush1.bf16.msra.mxu0 %v3747
  %3763 = vmatprep.subr.bf16.mxu0 0
  %3764 = vmatpush1.bf16.msra.mxu0 0
  %3765 = vmatprep.subr.bf16.mxu0 0
  %3766 = vmatpush1.bf16.msra.mxu0 0
  %3767 = vmatprep.subr.bf16.mxu0 0
  %3768 = vmatpush1.bf16.msra.mxu0 0
  %3769 = vmatprep.subr.bf16.mxu0 0
  %3770 = vmatpush1.bf16.msra.mxu0 0
  %3771 = vmatprep.subr.bf16.mxu0 0
  %3772 = vmatpush1.bf16.msra.mxu0 0
  %3773 = vmatprep.subr.bf16.mxu0 0
  %3774 = vmatpush1.bf16.msra.mxu0 0
  %3775 = vmatprep.subr.bf16.mxu0 0
  %3776 = vmatpush1.bf16.msra.mxu0 0
  %3777 = vmatprep.subr.bf16.mxu0 0
  %3778 = vmatpush1.bf16.msra.mxu0 0
  %3779 = vmatprep.subr.bf16.mxu0 0
  %3780 = vmatpush1.bf16.msra.mxu0 0
  %3781 = vmatprep.subr.bf16.mxu0 0
  %3782 = vmatpush1.bf16.msra.mxu0 0
  %3783 = vmatprep.subr.bf16.mxu0 0
  %3784 = vmatpush1.bf16.msra.mxu0 0
  %3785 = vmatprep.subr.bf16.mxu0 0
  %3786 = vmatpush1.bf16.msra.mxu0 0
  %3787 = vmatprep.mubr.bf16.mxu0 0
  %3788 = vmatmul.mubr.bf16.gmra.mrb[0].mxu0 %v3753
  %v3789 = vpop.f32.mrb[0].mxu0
  %v3790 = vadd.f32 0.0, %v3789
  %v3791 = vpop.f32.mrb[0].mxu0
  %v3792 = vpop.f32.mrb[0].mxu0
  %v3793 = vadd.f32 0.0, %v3792
  %v3794 = vpop.f32.mrb[0].mxu0
  %3795 = vdwg.mxu0
  %v3796 = vadd.f32 %v3715, %v3790
  %v3797 = vadd.f32 %v3716, %v3793
  %s3798 = scalar_lea.vmem [#allocation4], 64
  %v3799 = vld [vmem:[%s3798] sm:$0xff]
  %s3800 = scalar_lea.vmem %s5, 256
  %v3801 = vld [vmem:[%s3800] sm:$0xf]
  %v3802 = vld [vmem:[%s3800 + $0x4] sm:$0xf]
  %v3803 = vld [vmem:[%s3800 + $0x8] sm:$0xf]
  %v3804 = vld [vmem:[%s3800 + $0xc] sm:$0xf]
  %v3805 = vld [vmem:[%s3800 + $0x10] sm:$0xf]
  %v3806 = vld [vmem:[%s3800 + $0x14] sm:$0xf]
  %v3807 = vld [vmem:[%s3800 + $0x18] sm:$0xf]
  %v3808 = vld [vmem:[%s3800 + $0x1c] sm:$0xf]
  %v3817 = vunpack.c.l.b16 %v3801
  %v3818 = vunpack.c.l.b16 %v3802
  %v3819 = vunpack.c.l.b16 %v3803
  %v3820 = vunpack.c.l.b16 %v3804
  %v3821 = vunpack.c.l.b16 %v3805
  %v3822 = vunpack.c.l.b16 %v3806
  %v3823 = vunpack.c.l.b16 %v3807
  %v3824 = vunpack.c.l.b16 %v3808
  %v3825 = vpack.c.b16 %v3818, %v3817
  %v3826 = vpack.c.b16 %v3820, %v3819
  %v3827 = vpack.c.b16 %v3822, %v3821
  %v3828 = vpack.c.b16 %v3824, %v3823
  %v3834 = vsel %vm1816, %v3799, 0
  %3836 = vmatprep.subr.bf16.mxu0 0
  %3837 = vmatpush1.bf16.msra.mxu0 %v3825
  %3838 = vmatprep.subr.bf16.mxu0 0
  %3839 = vmatpush1.bf16.msra.mxu0 %v3826
  %3840 = vmatprep.subr.bf16.mxu0 0
  %3841 = vmatpush1.bf16.msra.mxu0 %v3827
  %3842 = vmatprep.subr.bf16.mxu0 0
  %3843 = vmatpush1.bf16.msra.mxu0 %v3828
  %3844 = vmatprep.subr.bf16.mxu0 0
  %3845 = vmatpush1.bf16.msra.mxu0 0
  %3846 = vmatprep.subr.bf16.mxu0 0
  %3847 = vmatpush1.bf16.msra.mxu0 0
  %3848 = vmatprep.subr.bf16.mxu0 0
  %3849 = vmatpush1.bf16.msra.mxu0 0
  %3850 = vmatprep.subr.bf16.mxu0 0
  %3851 = vmatpush1.bf16.msra.mxu0 0
  %3852 = vmatprep.subr.bf16.mxu0 0
  %3853 = vmatpush1.bf16.msra.mxu0 0
  %3854 = vmatprep.subr.bf16.mxu0 0
  %3855 = vmatpush1.bf16.msra.mxu0 0
  %3856 = vmatprep.subr.bf16.mxu0 0
  %3857 = vmatpush1.bf16.msra.mxu0 0
  %3858 = vmatprep.subr.bf16.mxu0 0
  %3859 = vmatpush1.bf16.msra.mxu0 0
  %3860 = vmatprep.subr.bf16.mxu0 0
  %3861 = vmatpush1.bf16.msra.mxu0 0
  %3862 = vmatprep.subr.bf16.mxu0 0
  %3863 = vmatpush1.bf16.msra.mxu0 0
  %3864 = vmatprep.subr.bf16.mxu0 0
  %3865 = vmatpush1.bf16.msra.mxu0 0
  %3866 = vmatprep.subr.bf16.mxu0 0
  %3867 = vmatpush1.bf16.msra.mxu0 0
  %3868 = vmatprep.mubr.bf16.mxu0 0
  %3869 = vmatmul.mubr.bf16.gmra.mrb[0].mxu0 %v3834
  %v3870 = vpop.f32.mrb[0].mxu0
  %v3871 = vadd.f32 0.0, %v3870
  %v3872 = vpop.f32.mrb[0].mxu0
  %v3873 = vpop.f32.mrb[0].mxu0
  %v3874 = vadd.f32 0.0, %v3873
  %v3875 = vpop.f32.mrb[0].mxu0
  %3876 = vdwg.mxu0
  %v3877 = vadd.f32 %v3796, %v3871
  %v3878 = vadd.f32 %v3797, %v3874
  %v3879 = vld [vmem:[%s6] sm:$0x1]
  %v3881 = vlaneseq
  %v3882 = vshrl.u32 %v3881, 7
  %v3883 = vsub.s32 0, %v3882
  %v3884 = vrot.slane %v3879, %v3883
  %v3886 = vadd.f32 %v3877, %v3884
  %v3887 = vadd.f32 %v3878, %v3884
  %v3888 = vmax.f32 %v3886, 0.0
  %v3889 = vmax.f32 %v3887, 0.0
  %v3890 = vpack.c.bf16 %v3889, %v3888
  %v3891 = vld [vmem:[%s7] sm:$0xff]
  %v3892 = vld [vmem:[%s7 + $0x8] sm:$0xff]
  %v3893 = vld [vmem:[%s7 + $0x10] sm:$0xff]
  %v3894 = vld [vmem:[%s7 + $0x18] sm:$0xff]
  %v3895 = vld [vmem:[%s7 + $0x20] sm:$0xff]
  %v3896 = vld [vmem:[%s7 + $0x28] sm:$0xff]
  %v3897 = vld [vmem:[%s7 + $0x30] sm:$0xff]
  %v3898 = vld [vmem:[%s7 + $0x38] sm:$0xff]
  %v3899 = vld [vmem:[%s7 + $0x40] sm:$0xff]
  %v3900 = vld [vmem:[%s7 + $0x48] sm:$0xff]
  %v3901 = vld [vmem:[%s7 + $0x50] sm:$0xff]
  %v3902 = vld [vmem:[%s7 + $0x58] sm:$0xff]
  %v3903 = vld [vmem:[%s7 + $0x60] sm:$0xff]
  %v3904 = vld [vmem:[%s7 + $0x68] sm:$0xff]
  %v3905 = vld [vmem:[%s7 + $0x70] sm:$0xff]
  %v3906 = vld [vmem:[%s7 + $0x78] sm:$0xff]
  %v3907 = vld [vmem:[%s8] sm:$0xf]
  %v3909 = vlaneseq
  %v3910 = vshrl.u32 %v3909, 7
  %v3911 = vsub.s32 0, %v3910
  %v3912 = vrot.slane %v3907, %v3911
  %v3913 = vlaneseq
  %v3914 = vshrl.u32 %v3913, 7
  %v3915 = vsub.s32 1, %v3914
  %v3916 = vrot.slane %v3907, %v3915
  %v3917 = vlaneseq
  %v3918 = vshrl.u32 %v3917, 7
  %v3919 = vsub.s32 2, %v3918
  %v3920 = vrot.slane %v3907, %v3919
  %v3921 = vlaneseq
  %v3922 = vshrl.u32 %v3921, 7
  %v3923 = vsub.s32 3, %v3922
  %v3924 = vrot.slane %v3907, %v3923
  %v3945 = vunpack.c.l.b16 %v3891
  %v3946 = vunpack.c.h.b16 %v3891
  %v3947 = vunpack.c.l.b16 %v3892
  %v3948 = vunpack.c.h.b16 %v3892
  %v3949 = vunpack.c.l.b16 %v3893
  %v3950 = vunpack.c.h.b16 %v3893
  %v3951 = vunpack.c.l.b16 %v3894
  %v3952 = vunpack.c.h.b16 %v3894
  %v3953 = vunpack.c.l.b16 %v3895
  %v3954 = vunpack.c.h.b16 %v3895
  %v3955 = vunpack.c.l.b16 %v3896
  %v3956 = vunpack.c.h.b16 %v3896
  %v3957 = vunpack.c.l.b16 %v3897
  %v3958 = vunpack.c.h.b16 %v3897
  %v3959 = vunpack.c.l.b16 %v3898
  %v3960 = vunpack.c.h.b16 %v3898
  %v3961 = vunpack.c.l.b16 %v3899
  %v3962 = vunpack.c.h.b16 %v3899
  %v3963 = vunpack.c.l.b16 %v3900
  %v3964 = vunpack.c.h.b16 %v3900
  %v3965 = vunpack.c.l.b16 %v3901
  %v3966 = vunpack.c.h.b16 %v3901
  %v3967 = vunpack.c.l.b16 %v3902
  %v3968 = vunpack.c.h.b16 %v3902
  %v3969 = vunpack.c.l.b16 %v3903
  %v3970 = vunpack.c.h.b16 %v3903
  %v3971 = vunpack.c.l.b16 %v3904
  %v3972 = vunpack.c.h.b16 %v3904
  %v3973 = vunpack.c.l.b16 %v3905
  %v3974 = vunpack.c.h.b16 %v3905
  %v3975 = vunpack.c.l.b16 %v3906
  %v3976 = vunpack.c.h.b16 %v3906
  %v3977 = vpack.c.b16 %v3949, %v3945
  %v3978 = vpack.c.b16 %v3950, %v3946
  %v3979 = vpack.c.b16 %v3951, %v3947
  %v3980 = vpack.c.b16 %v3952, %v3948
  %v3981 = vpack.c.b16 %v3957, %v3953
  %v3982 = vpack.c.b16 %v3958, %v3954
  %v3983 = vpack.c.b16 %v3959, %v3955
  %v3984 = vpack.c.b16 %v3960, %v3956
  %v3985 = vpack.c.b16 %v3965, %v3961
  %v3986 = vpack.c.b16 %v3966, %v3962
  %v3987 = vpack.c.b16 %v3967, %v3963
  %v3988 = vpack.c.b16 %v3968, %v3964
  %v3989 = vpack.c.b16 %v3973, %v3969
  %v3990 = vpack.c.b16 %v3974, %v3970
  %v3991 = vpack.c.b16 %v3975, %v3971
  %v3992 = vpack.c.b16 %v3976, %v3972
  %v4010 = vsel %vm1816, %v3890, 0
  %4012 = vmatprep.subr.bf16.mxu0 %v3978
  %4013 = vmatpush1.bf16.msra.mxu0 %v3977
  %4014 = vmatprep.subr.bf16.mxu0 %v3982
  %4015 = vmatpush1.bf16.msra.mxu0 %v3981
  %4016 = vmatprep.subr.bf16.mxu0 %v3986
  %4017 = vmatpush1.bf16.msra.mxu0 %v3985
  %4018 = vmatprep.subr.bf16.mxu0 %v3990
  %4019 = vmatpush1.bf16.msra.mxu0 %v3989
  %4020 = vmatprep.subr.bf16.mxu0 0
  %4021 = vmatpush1.bf16.msra.mxu0 0
  %4022 = vmatprep.subr.bf16.mxu0 0
  %4023 = vmatpush1.bf16.msra.mxu0 0
  %4024 = vmatprep.subr.bf16.mxu0 0
  %4025 = vmatpush1.bf16.msra.mxu0 0
  %4026 = vmatprep.subr.bf16.mxu0 0
  %4027 = vmatpush1.bf16.msra.mxu0 0
  %4028 = vmatprep.subr.bf16.mxu0 0
  %4029 = vmatpush1.bf16.msra.mxu0 0
  %4030 = vmatprep.subr.bf16.mxu0 0
  %4031 = vmatpush1.bf16.msra.mxu0 0
  %4032 = vmatprep.subr.bf16.mxu0 0
  %4033 = vmatpush1.bf16.msra.mxu0 0
  %4034 = vmatprep.subr.bf16.mxu0 0
  %4035 = vmatpush1.bf16.msra.mxu0 0
  %4036 = vmatprep.subr.bf16.mxu0 0
  %4037 = vmatpush1.bf16.msra.mxu0 0
  %4038 = vmatprep.subr.bf16.mxu0 0
  %4039 = vmatpush1.bf16.msra.mxu0 0
  %4040 = vmatprep.subr.bf16.mxu0 0
  %4041 = vmatpush1.bf16.msra.mxu0 0
  %4042 = vmatprep.subr.bf16.mxu0 0
  %4043 = vmatpush1.bf16.msra.mxu0 0
  %4044 = vmatprep.mubr.bf16.mxu0 0
  %4045 = vmatmul.mubr.bf16.gmra.mrb[0].mxu0 %v4010
  %v4046 = vpop.f32.mrb[0].mxu0
  %v4047 = vadd.f32 %v3912, %v4046
  %v4048 = vpop.f32.mrb[0].mxu0
  %v4049 = vadd.f32 %v3916, %v4048
  %v4050 = vpop.f32.mrb[0].mxu0
  %v4051 = vadd.f32 %v3912, %v4050
  %v4052 = vpop.f32.mrb[0].mxu0
  %v4053 = vadd.f32 %v3916, %v4052
  %4054 = vdwg.mxu0
  %4055 = vmatprep.subr.bf16.mxu0 %v3980
  %4056 = vmatpush1.bf16.msra.mxu0 %v3979
  %4057 = vmatprep.subr.bf16.mxu0 %v3984
  %4058 = vmatpush1.bf16.msra.mxu0 %v3983
  %4059 = vmatprep.subr.bf16.mxu0 %v3988
  %4060 = vmatpush1.bf16.msra.mxu0 %v3987
  %4061 = vmatprep.subr.bf16.mxu0 %v3992
  %4062 = vmatpush1.bf16.msra.mxu0 %v3991
  %4063 = vmatprep.subr.bf16.mxu0 0
  %4064 = vmatpush1.bf16.msra.mxu0 0
  %4065 = vmatprep.subr.bf16.mxu0 0
  %4066 = vmatpush1.bf16.msra.mxu0 0
  %4067 = vmatprep.subr.bf16.mxu0 0
  %4068 = vmatpush1.bf16.msra.mxu0 0
  %4069 = vmatprep.subr.bf16.mxu0 0
  %4070 = vmatpush1.bf16.msra.mxu0 0
  %4071 = vmatprep.subr.bf16.mxu0 0
  %4072 = vmatpush1.bf16.msra.mxu0 0
  %4073 = vmatprep.subr.bf16.mxu0 0
  %4074 = vmatpush1.bf16.msra.mxu0 0
  %4075 = vmatprep.subr.bf16.mxu0 0
  %4076 = vmatpush1.bf16.msra.mxu0 0
  %4077 = vmatprep.subr.bf16.mxu0 0
  %4078 = vmatpush1.bf16.msra.mxu0 0
  %4079 = vmatprep.subr.bf16.mxu0 0
  %4080 = vmatpush1.bf16.msra.mxu0 0
  %4081 = vmatprep.subr.bf16.mxu0 0
  %4082 = vmatpush1.bf16.msra.mxu0 0
  %4083 = vmatprep.subr.bf16.mxu0 0
  %4084 = vmatpush1.bf16.msra.mxu0 0
  %4085 = vmatprep.subr.bf16.mxu0 0
  %4086 = vmatpush1.bf16.msra.mxu0 0
  %4087 = vmatprep.mubr.bf16.mxu0 0
  %4088 = vmatmul.mubr.bf16.gmra.mrb[0].mxu0 %v4010
  %v4089 = vpop.f32.mrb[0].mxu0
  %v4090 = vadd.f32 %v3920, %v4089
  %v4091 = vpop.f32.mrb[0].mxu0
  %v4092 = vadd.f32 %v3924, %v4091
  %v4093 = vpop.f32.mrb[0].mxu0
  %v4094 = vadd.f32 %v3920, %v4093
  %v4095 = vpop.f32.mrb[0].mxu0
  %v4096 = vadd.f32 %v3924, %v4095
  %4097 = vdwg.mxu0
  %v4098 = vmax.f32 %v4047, 0.0
  %v4099 = vmax.f32 %v4049, 0.0
  %v4100 = vmax.f32 %v4090, 0.0
  %v4101 = vmax.f32 %v4092, 0.0
  %v4102 = vmax.f32 %v4051, 0.0
  %v4103 = vmax.f32 %v4053, 0.0
  %v4104 = vmax.f32 %v4094, 0.0
  %v4105 = vmax.f32 %v4096, 0.0
  %v4106 = vpack.c.bf16 %v4102, %v4098
  %v4107 = vpack.c.bf16 %v4103, %v4099
  %v4108 = vpack.c.bf16 %v4104, %v4100
  %v4109 = vpack.c.bf16 %v4105, %v4101
  %v4110 = vld [vmem:[%s9] sm:$0xf]
  %v4111 = vld [vmem:[%s9 + $0x4] sm:$0xf]
  %v4112 = vld [vmem:[%s9 + $0x8] sm:$0xf]
  %v4113 = vld [vmem:[%s9 + $0xc] sm:$0xf]
  %v4114 = vld [vmem:[%s9 + $0x10] sm:$0xf]
  %v4115 = vld [vmem:[%s9 + $0x14] sm:$0xf]
  %v4116 = vld [vmem:[%s9 + $0x18] sm:$0xf]
  %v4117 = vld [vmem:[%s9 + $0x1c] sm:$0xf]
  %v4118 = vld [vmem:[%s9 + $0x20] sm:$0xf]
  %v4119 = vld [vmem:[%s9 + $0x24] sm:$0xf]
  %v4120 = vld [vmem:[%s9 + $0x28] sm:$0xf]
  %v4121 = vld [vmem:[%s9 + $0x2c] sm:$0xf]
  %v4122 = vld [vmem:[%s9 + $0x30] sm:$0xf]
  %v4123 = vld [vmem:[%s9 + $0x34] sm:$0xf]
  %v4124 = vld [vmem:[%s9 + $0x38] sm:$0xf]
  %v4125 = vld [vmem:[%s9 + $0x3c] sm:$0xf]
  %v4126 = vld [vmem:[%s9 + $0x40] sm:$0xf]
  %v4127 = vld [vmem:[%s9 + $0x44] sm:$0xf]
  %v4128 = vld [vmem:[%s9 + $0x48] sm:$0xf]
  %v4129 = vld [vmem:[%s9 + $0x4c] sm:$0xf]
  %v4130 = vld [vmem:[%s9 + $0x50] sm:$0xf]
  %v4131 = vld [vmem:[%s9 + $0x54] sm:$0xf]
  %v4132 = vld [vmem:[%s9 + $0x58] sm:$0xf]
  %v4133 = vld [vmem:[%s9 + $0x5c] sm:$0xf]
  %v4134 = vld [vmem:[%s9 + $0x60] sm:$0xf]
  %v4135 = vld [vmem:[%s9 + $0x64] sm:$0xf]
  %v4136 = vld [vmem:[%s9 + $0x68] sm:$0xf]
  %v4137 = vld [vmem:[%s9 + $0x6c] sm:$0xf]
  %v4138 = vld [vmem:[%s9 + $0x70] sm:$0xf]
  %v4139 = vld [vmem:[%s9 + $0x74] sm:$0xf]
  %v4140 = vld [vmem:[%s9 + $0x78] sm:$0xf]
  %v4141 = vld [vmem:[%s9 + $0x7c] sm:$0xf]
  %v4142 = vld [vmem:[%s9 + $0x80] sm:$0xf]
  %v4143 = vld [vmem:[%s9 + $0x84] sm:$0xf]
  %v4144 = vld [vmem:[%s9 + $0x88] sm:$0xf]
  %v4145 = vld [vmem:[%s9 + $0x8c] sm:$0xf]
  %v4146 = vld [vmem:[%s9 + $0x90] sm:$0xf]
  %v4147 = vld [vmem:[%s9 + $0x94] sm:$0xf]
  %v4148 = vld [vmem:[%s9 + $0x98] sm:$0xf]
  %v4149 = vld [vmem:[%s9 + $0x9c] sm:$0xf]
  %v4150 = vld [vmem:[%s9 + $0xa0] sm:$0xf]
  %v4151 = vld [vmem:[%s9 + $0xa4] sm:$0xf]
  %v4152 = vld [vmem:[%s9 + $0xa8] sm:$0xf]
  %v4153 = vld [vmem:[%s9 + $0xac] sm:$0xf]
  %v4154 = vld [vmem:[%s9 + $0xb0] sm:$0xf]
  %v4155 = vld [vmem:[%s9 + $0xb4] sm:$0xf]
  %v4156 = vld [vmem:[%s9 + $0xb8] sm:$0xf]
  %v4157 = vld [vmem:[%s9 + $0xbc] sm:$0xf]
  %v4158 = vld [vmem:[%s9 + $0xc0] sm:$0xf]
  %v4159 = vld [vmem:[%s9 + $0xc4] sm:$0xf]
  %v4160 = vld [vmem:[%s9 + $0xc8] sm:$0xf]
  %v4161 = vld [vmem:[%s9 + $0xcc] sm:$0xf]
  %v4162 = vld [vmem:[%s9 + $0xd0] sm:$0xf]
  %v4163 = vld [vmem:[%s9 + $0xd4] sm:$0xf]
  %v4164 = vld [vmem:[%s9 + $0xd8] sm:$0xf]
  %v4165 = vld [vmem:[%s9 + $0xdc] sm:$0xf]
  %v4166 = vld [vmem:[%s9 + $0xe0] sm:$0xf]
  %v4167 = vld [vmem:[%s9 + $0xe4] sm:$0xf]
  %v4168 = vld [vmem:[%s9 + $0xe8] sm:$0xf]
  %v4169 = vld [vmem:[%s9 + $0xec] sm:$0xf]
  %v4170 = vld [vmem:[%s9 + $0xf0] sm:$0xf]
  %v4171 = vld [vmem:[%s9 + $0xf4] sm:$0xf]
  %v4172 = vld [vmem:[%s9 + $0xf8] sm:$0xf]
  %v4173 = vld [vmem:[%s9 + $0xfc] sm:$0xf]
  %v4174 = vld [vmem:[%s10] sm:$0x1]
  %v4176 = vlaneseq
  %v4177 = vshrl.u32 %v4176, 7
  %v4178 = vsub.s32 0, %v4177
  %v4179 = vrot.slane %v4174, %v4178
  %v4245 = vunpack.c.l.b16 %v4110
  %v4246 = vunpack.c.l.b16 %v4111
  %v4247 = vunpack.c.l.b16 %v4112
  %v4248 = vunpack.c.l.b16 %v4113
  %v4249 = vunpack.c.l.b16 %v4114
  %v4250 = vunpack.c.l.b16 %v4115
  %v4251 = vunpack.c.l.b16 %v4116
  %v4252 = vunpack.c.l.b16 %v4117
  %v4253 = vunpack.c.l.b16 %v4118
  %v4254 = vunpack.c.l.b16 %v4119
  %v4255 = vunpack.c.l.b16 %v4120
  %v4256 = vunpack.c.l.b16 %v4121
  %v4257 = vunpack.c.l.b16 %v4122
  %v4258 = vunpack.c.l.b16 %v4123
  %v4259 = vunpack.c.l.b16 %v4124
  %v4260 = vunpack.c.l.b16 %v4125
  %v4261 = vunpack.c.l.b16 %v4126
  %v4262 = vunpack.c.l.b16 %v4127
  %v4263 = vunpack.c.l.b16 %v4128
  %v4264 = vunpack.c.l.b16 %v4129
  %v4265 = vunpack.c.l.b16 %v4130
  %v4266 = vunpack.c.l.b16 %v4131
  %v4267 = vunpack.c.l.b16 %v4132
  %v4268 = vunpack.c.l.b16 %v4133
  %v4269 = vunpack.c.l.b16 %v4134
  %v4270 = vunpack.c.l.b16 %v4135
  %v4271 = vunpack.c.l.b16 %v4136
  %v4272 = vunpack.c.l.b16 %v4137
  %v4273 = vunpack.c.l.b16 %v4138
  %v4274 = vunpack.c.l.b16 %v4139
  %v4275 = vunpack.c.l.b16 %v4140
  %v4276 = vunpack.c.l.b16 %v4141
  %v4277 = vunpack.c.l.b16 %v4142
  %v4278 = vunpack.c.l.b16 %v4143
  %v4279 = vunpack.c.l.b16 %v4144
  %v4280 = vunpack.c.l.b16 %v4145
  %v4281 = vunpack.c.l.b16 %v4146
  %v4282 = vunpack.c.l.b16 %v4147
  %v4283 = vunpack.c.l.b16 %v4148
  %v4284 = vunpack.c.l.b16 %v4149
  %v4285 = vunpack.c.l.b16 %v4150
  %v4286 = vunpack.c.l.b16 %v4151
  %v4287 = vunpack.c.l.b16 %v4152
  %v4288 = vunpack.c.l.b16 %v4153
  %v4289 = vunpack.c.l.b16 %v4154
  %v4290 = vunpack.c.l.b16 %v4155
  %v4291 = vunpack.c.l.b16 %v4156
  %v4292 = vunpack.c.l.b16 %v4157
  %v4293 = vunpack.c.l.b16 %v4158
  %v4294 = vunpack.c.l.b16 %v4159
  %v4295 = vunpack.c.l.b16 %v4160
  %v4296 = vunpack.c.l.b16 %v4161
  %v4297 = vunpack.c.l.b16 %v4162
  %v4298 = vunpack.c.l.b16 %v4163
  %v4299 = vunpack.c.l.b16 %v4164
  %v4300 = vunpack.c.l.b16 %v4165
  %v4301 = vunpack.c.l.b16 %v4166
  %v4302 = vunpack.c.l.b16 %v4167
  %v4303 = vunpack.c.l.b16 %v4168
  %v4304 = vunpack.c.l.b16 %v4169
  %v4305 = vunpack.c.l.b16 %v4170
  %v4306 = vunpack.c.l.b16 %v4171
  %v4307 = vunpack.c.l.b16 %v4172
  %v4308 = vunpack.c.l.b16 %v4173
  %v4309 = vpack.c.b16 %v4246, %v4245
  %v4310 = vpack.c.b16 %v4248, %v4247
  %v4311 = vpack.c.b16 %v4250, %v4249
  %v4312 = vpack.c.b16 %v4252, %v4251
  %v4313 = vpack.c.b16 %v4254, %v4253
  %v4314 = vpack.c.b16 %v4256, %v4255
  %v4315 = vpack.c.b16 %v4258, %v4257
  %v4316 = vpack.c.b16 %v4260, %v4259
  %v4317 = vpack.c.b16 %v4262, %v4261
  %v4318 = vpack.c.b16 %v4264, %v4263
  %v4319 = vpack.c.b16 %v4266, %v4265
  %v4320 = vpack.c.b16 %v4268, %v4267
  %v4321 = vpack.c.b16 %v4270, %v4269
  %v4322 = vpack.c.b16 %v4272, %v4271
  %v4323 = vpack.c.b16 %v4274, %v4273
  %v4324 = vpack.c.b16 %v4276, %v4275
  %v4325 = vpack.c.b16 %v4278, %v4277
  %v4326 = vpack.c.b16 %v4280, %v4279
  %v4327 = vpack.c.b16 %v4282, %v4281
  %v4328 = vpack.c.b16 %v4284, %v4283
  %v4329 = vpack.c.b16 %v4286, %v4285
  %v4330 = vpack.c.b16 %v4288, %v4287
  %v4331 = vpack.c.b16 %v4290, %v4289
  %v4332 = vpack.c.b16 %v4292, %v4291
  %v4333 = vpack.c.b16 %v4294, %v4293
  %v4334 = vpack.c.b16 %v4296, %v4295
  %v4335 = vpack.c.b16 %v4298, %v4297
  %v4336 = vpack.c.b16 %v4300, %v4299
  %v4337 = vpack.c.b16 %v4302, %v4301
  %v4338 = vpack.c.b16 %v4304, %v4303
  %v4339 = vpack.c.b16 %v4306, %v4305
  %v4340 = vpack.c.b16 %v4308, %v4307
  %4373 = vmatprep.subr.bf16.mxu0 0
  %4374 = vmatpush1.bf16.msra.mxu0 %v4309
  %4375 = vmatprep.subr.bf16.mxu0 0
  %4376 = vmatpush1.bf16.msra.mxu0 %v4310
  %4377 = vmatprep.subr.bf16.mxu0 0
  %4378 = vmatpush1.bf16.msra.mxu0 %v4311
  %4379 = vmatprep.subr.bf16.mxu0 0
  %4380 = vmatpush1.bf16.msra.mxu0 %v4312
  %4381 = vmatprep.subr.bf16.mxu0 0
  %4382 = vmatpush1.bf16.msra.mxu0 %v4313
  %4383 = vmatprep.subr.bf16.mxu0 0
  %4384 = vmatpush1.bf16.msra.mxu0 %v4314
  %4385 = vmatprep.subr.bf16.mxu0 0
  %4386 = vmatpush1.bf16.msra.mxu0 %v4315
  %4387 = vmatprep.subr.bf16.mxu0 0
  %4388 = vmatpush1.bf16.msra.mxu0 %v4316
  %4389 = vmatprep.subr.bf16.mxu0 0
  %4390 = vmatpush1.bf16.msra.mxu0 %v4317
  %4391 = vmatprep.subr.bf16.mxu0 0
  %4392 = vmatpush1.bf16.msra.mxu0 %v4318
  %4393 = vmatprep.subr.bf16.mxu0 0
  %4394 = vmatpush1.bf16.msra.mxu0 %v4319
  %4395 = vmatprep.subr.bf16.mxu0 0
  %4396 = vmatpush1.bf16.msra.mxu0 %v4320
  %4397 = vmatprep.subr.bf16.mxu0 0
  %4398 = vmatpush1.bf16.msra.mxu0 %v4321
  %4399 = vmatprep.subr.bf16.mxu0 0
  %4400 = vmatpush1.bf16.msra.mxu0 %v4322
  %4401 = vmatprep.subr.bf16.mxu0 0
  %4402 = vmatpush1.bf16.msra.mxu0 %v4323
  %4403 = vmatprep.subr.bf16.mxu0 0
  %4404 = vmatpush1.bf16.msra.mxu0 %v4324
  %4405 = vmatprep.mubr.bf16.mxu0 %v4107
  %4406 = vmatmul.mubr.bf16.gmra.mrb[0].mxu0 %v4106
  %v4407 = vpop.f32.mrb[0].mxu0
  %v4408 = vadd.f32 %v4179, %v4407
  %v4409 = vpop.f32.mrb[0].mxu0
  %v4410 = vpop.f32.mrb[0].mxu0
  %v4411 = vadd.f32 %v4179, %v4410
  %v4412 = vpop.f32.mrb[0].mxu0
  %4413 = vdwg.mxu0
  %4414 = vmatprep.subr.bf16.mxu0 0
  %4415 = vmatpush1.bf16.msra.mxu0 %v4325
  %4416 = vmatprep.subr.bf16.mxu0 0
  %4417 = vmatpush1.bf16.msra.mxu0 %v4326
  %4418 = vmatprep.subr.bf16.mxu0 0
  %4419 = vmatpush1.bf16.msra.mxu0 %v4327
  %4420 = vmatprep.subr.bf16.mxu0 0
  %4421 = vmatpush1.bf16.msra.mxu0 %v4328
  %4422 = vmatprep.subr.bf16.mxu0 0
  %4423 = vmatpush1.bf16.msra.mxu0 %v4329
  %4424 = vmatprep.subr.bf16.mxu0 0
  %4425 = vmatpush1.bf16.msra.mxu0 %v4330
  %4426 = vmatprep.subr.bf16.mxu0 0
  %4427 = vmatpush1.bf16.msra.mxu0 %v4331
  %4428 = vmatprep.subr.bf16.mxu0 0
  %4429 = vmatpush1.bf16.msra.mxu0 %v4332
  %4430 = vmatprep.subr.bf16.mxu0 0
  %4431 = vmatpush1.bf16.msra.mxu0 %v4333
  %4432 = vmatprep.subr.bf16.mxu0 0
  %4433 = vmatpush1.bf16.msra.mxu0 %v4334
  %4434 = vmatprep.subr.bf16.mxu0 0
  %4435 = vmatpush1.bf16.msra.mxu0 %v4335
  %4436 = vmatprep.subr.bf16.mxu0 0
  %4437 = vmatpush1.bf16.msra.mxu0 %v4336
  %4438 = vmatprep.subr.bf16.mxu0 0
  %4439 = vmatpush1.bf16.msra.mxu0 %v4337
  %4440 = vmatprep.subr.bf16.mxu0 0
  %4441 = vmatpush1.bf16.msra.mxu0 %v4338
  %4442 = vmatprep.subr.bf16.mxu0 0
  %4443 = vmatpush1.bf16.msra.mxu0 %v4339
  %4444 = vmatprep.subr.bf16.mxu0 0
  %4445 = vmatpush1.bf16.msra.mxu0 %v4340
  %4446 = vmatprep.mubr.bf16.mxu0 %v4109
  %4447 = vmatmul.mubr.bf16.gmra.mrb[0].mxu0 %v4108
  %v4448 = vpop.f32.mrb[0].mxu0
  %v4449 = vadd.f32 %v4408, %v4448
  %v4450 = vpop.f32.mrb[0].mxu0
  %v4451 = vpop.f32.mrb[0].mxu0
  %v4452 = vadd.f32 %v4411, %v4451
  %v4453 = vpop.f32.mrb[0].mxu0
  %4454 = vdwg.mxu0
  %4455 = vst [vmem:[%s11] sm:$0xff] %v4449
  %4456 = vst [vmem:[%s11 + $0x8] sm:$0xff] %v4452
  %v4457 = vlaneseq
  %v4458 = vand.u32 %v4457, 127
  %vm4459 = vcmp.lt.s32.totalorder %v4458, 6
  %v4460 = vsel %vm4459, %v4449, -1e+30
  %v4461 = vsel %vm4459, %v4452, -1e+30
  %4462 = vmax.xlane.f32.xlu0 %v4460
  %v4463 = vpop.xlane.xlu0 %4462
  %4464 = vmax.xlane.f32.xlu0 %v4461
  %v4465 = vpop.xlane.xlu0 %4464
  %v4466 = vsub.f32 %v4460, %v4463
  %v4467 = vsub.f32 %v4461, %v4465
  %v4468 = vmul.f32 %v4466, 1.442695
  %v4469 = vpow.pop %v4468
  %v4470 = vmul.f32 %v4467, 1.442695
  %v4471 = vpow.pop %v4470
  %v4472 = vsel %vm4459, %v4469, 0.0
  %v4473 = vsel %vm4459, %v4471, 0.0
  %4474 = vadd.xlane.f32.xlu0 %v4472
  %v4475 = vpop.xlane.xlu0 %4474
  %4476 = vadd.xlane.f32.xlu0 %v4473
  %v4477 = vpop.xlane.xlu0 %4476
  %v4478 = vlog2.pop %v4475
  %v4479 = vmul.f32 %v4478, 0.6931472
  %v4480 = vlog2.pop %v4477
  %v4481 = vmul.f32 %v4480, 0.6931472
  %v4482 = vsub.f32 %v4466, %v4479
  %v4483 = vsub.f32 %v4467, %v4481
  %v4484 = vsel %vm4459, %v4482, 0.0
  %v4485 = vsel %vm4459, %v4483, 0.0
  %4486 = vst [vmem:[%s12] sm:$0xff] %v4484
  %4487 = vst [vmem:[%s12 + $0x8] sm:$0xff] %v4485
  // Predicated region
  $region46: #{_forward.1} parent=0 // pred_check
    _
  $region47: #{_forward.1} parent=0 // pred_check_branch
    %4489 = sbr.rel (0) target = $region49
  $region48: #{_forward.1} parent=0 // pred_region
    _
  $region49: #{_forward.1} parent=0 // pred_fallthru
    _
  // Predicated region
  $region50: #{_forward.1} parent=0 // pred_check
    _
  $region51: #{_forward.1} parent=0 // pred_check_branch
    %4491 = sbr.rel (0) target = $region53
  $region52: #{_forward.1} parent=0 // pred_region
    _
  $region53: #{_forward.1} parent=0 // pred_fallthru
    _
  // Predicated region
  $region54: #{_forward.1} parent=0 // pred_check
    _
  $region55: #{_forward.1} parent=0 // pred_check_branch
    %4493 = sbr.rel (0) target = $region57
  $region56: #{_forward.1} parent=0 // pred_region
    _
  $region57: #{_forward.1} parent=0 // pred_fallthru
    _
  // Predicated region
  $region58: #{_forward.1} parent=0 // pred_check
    _
  $region59: #{_forward.1} parent=0 // pred_check_branch
    %4495 = sbr.rel (0) target = $region61
  $region60: #{_forward.1} parent=0 // pred_region
    _
  $region61: #{_forward.1} parent=0 // pred_fallthru
    _

</llo_original>
